<compile_context>
chip_gen: v5e
topology: v5e:2x2
jax: 0.10.0
libtpu: 0.0.40
codegen_flags: <defaults>
</compile_context>

<pallas_src>
import jax
import jax.numpy as jnp
from jax import lax
from jax.experimental import pallas as pl
from jax.experimental.pallas import tpu as pltpu


def _round_up(x, m):
    return (x + m - 1) // m * m


# ----------------------------------------------------------------------------
# Fused kernel: full DenseDDCB forward for B_blk images per grid step.
# ----------------------------------------------------------------------------
def _make_fused_kernel(nb_layers, in_planes, growth, H, W, B, seg, top_off):
    HW = H * W
    c_final = in_planes + nb_layers * growth

    def kernel(x_ref, sc_ref, sh_ref, w_ref, sc1_ref, sh1_ref, w1t_ref, o_ref,
               feat_ref, pad_ref, cols_ref):
        # The halo of the padded-activation scratch must be zero.  Zero it
        # unconditionally every grid step (scratch is per-core; the parallel
        # batch axis may be sharded across v7x's two TensorCores).  The buffer
        # is tiny (bf16), so a full memset is cheap; interiors are fully
        # overwritten every layer.
        pad_ref[...] = jnp.zeros(pad_ref.shape, pad_ref.dtype)

        # Seed the VMEM-resident dense feature map (channels-first, H*W on
        # lanes).  One full-width store per image.
        for b in range(B):
            feat_ref[:in_planes, b * HW:(b + 1) * HW] = x_ref[b]

        # Column-within-row index for horizontal zero-padding masks (hoisted
        # out of the layer loop -- broadcasts are not CSE'd by JAX).
        xcol = lax.broadcasted_iota(jnp.int32, (1, HW), 1) % W

        for i in range(nb_layers):
            cin = in_planes + i * growth
            d = i + 1                                   # dilation ("visual")
            scale = sc_ref[i, :cin, :]                  # (cin, 1) f32
            shift = sh_ref[i, :cin, :]                  # (cin, 1) f32

            # BN (inference, folded) + ReLU over the concatenated features,
            # then cast once to bf16 on the way into the padded scratch.
            act = jnp.maximum(feat_ref[:cin, :] * scale + shift, 0.0)
            act_bf = act.astype(jnp.bfloat16)

            # Horizontal zero-padding masks for this layer's dilation.
            keep_l = xcol >= d          # valid lanes for taps with ox = -d
            keep_r = xcol < (W - d)     # valid lanes for taps with ox = +d

            # Place activation into the zero-haloed flattened scratch
            # (lane offset b*seg + top_off is a multiple of 128 -> aligned).
            for b in range(B):
                base = b * seg + top_off
                pad_ref[:cin, base:base + HW] = act_bf[:, b * HW:(b + 1) * HW]

            # im2col: gather the 9 dilated taps as static lane slices of the
            # flattened padded activation; mask wrapped horizontal columns.
            k = 0
            for dy in range(3):
                for dx in range(3):
                    oy = (dy - 1) * d
                    ox = (dx - 1) * d
                    for b in range(B):
                        off = b * seg + top_off + oy * W + ox
                        tap = pad_ref[:cin, off:off + HW]     # (cin, HW) bf16
                        if ox < 0:
                            tap = jnp.where(keep_l, tap, 0.0)
                        elif ox > 0:
                            tap = jnp.where(keep_r, tap, 0.0)
                        cols_ref[k * cin:(k + 1) * cin,
                                 b * HW:(b + 1) * HW] = tap
                    k += 1

            # One MXU matmul per layer: (growth, 9*cin) @ (9*cin, B*HW);
            # the wide B*HW dim sits on the MXU's wide side.
            w_i = w_ref[i, :, :9 * cin]                       # bf16
            out = lax.dot_general(w_i, cols_ref[:9 * cin, :],
                                  dimension_numbers=(((1,), (0,)), ((), ())),
                                  preferred_element_type=jnp.float32)
            # Dense connectivity: append the new channels (full-lane store).
            feat_ref[cin:cin + growth, :] = out

        # Tail: relu1(conv1(relu1(bn1(feat)))) -- channels-first throughout.
        act1 = jnp.maximum(feat_ref[...] * sc1_ref[...] + sh1_ref[...], 0.0)
        y = lax.dot_general(w1t_ref[...], act1.astype(jnp.bfloat16),
                            dimension_numbers=(((1,), (0,)), ((), ())),
                            preferred_element_type=jnp.float32)
        y = jnp.maximum(y, 0.0)
        for b in range(B):
            o_ref[b] = y[:, b * HW:(b + 1) * HW]

    return kernel


# ----------------------------------------------------------------------------
# Public wrapper: NCHW in / NCHW out; everything hot runs inside one kernel.
# ----------------------------------------------------------------------------
def dense_ddcb_forward(x_nchw, params, *, block_batch=2):
    N, C0, H, W = x_nchw.shape
    layers = params["layers"]
    nb_layers = len(layers)
    growth = layers[0]["w"].shape[-1]
    c_final = C0 + nb_layers * growth
    out_planes = params["w1"].shape[-1]
    max_cin = C0 + (nb_layers - 1) * growth
    dmax = nb_layers
    HW = H * W
    K9 = 9 * max_cin

    B = block_batch if (N % block_batch == 0) else 1

    # Flattened, per-image padded-activation geometry (lane axis = spatial).
    #   top_off : lane offset of the image interior inside its segment
    #             (>= dmax*(W+1) so every tap slice stays in-bounds;
    #              rounded to 128 so interior writes are lane-aligned)
    #   seg     : per-image segment stride (rounded to 128)
    top_off = _round_up(dmax * (W + 1), 128)
    seg = _round_up(top_off + HW + dmax * (W + 1), 128)

    # Free layout changes at the boundary: NCHW -> (N, C0, H*W).
    x = x_nchw.reshape(N, C0, HW)

    # Pack per-layer constants into stacked, max_cin-padded operands.
    scales = jnp.zeros((nb_layers, max_cin, 1), jnp.float32)
    shifts = jnp.zeros((nb_layers, max_cin, 1), jnp.float32)
    wpack = jnp.zeros((nb_layers, growth, K9), jnp.bfloat16)
    for i, lp in enumerate(layers):
        cin = C0 + i * growth
        scales = scales.at[i, :cin, 0].set(lp["scale"])
        shifts = shifts.at[i, :cin, 0].set(lp["shift"])
        # (3,3,cin,growth) -> (9*cin, growth) -> (growth, 9*cin); the K order
        # (tap-major, channel-minor) must match the im2col gather order.
        wflat = lp["w"].reshape(9 * cin, growth).T.astype(jnp.bfloat16)
        wpack = wpack.at[i, :, :9 * cin].set(wflat)

    scale1 = params["scale1"].reshape(c_final, 1)
    shift1 = params["shift1"].reshape(c_final, 1)
    w1t = params["w1"].T.astype(jnp.bfloat16)            # (out_planes, c_final)

    kernel = _make_fused_kernel(nb_layers, C0, growth, H, W, B, seg, top_off)

    def const_spec(shape):
        nd = len(shape)
        return pl.BlockSpec(shape, lambda n, _nd=nd: (0,) * _nd)

    out = pl.pallas_call(
        kernel,
        out_shape=jax.ShapeDtypeStruct((N, out_planes, HW), jnp.float32),
        grid=(N // B,),
        in_specs=[
            pl.BlockSpec((B, C0, HW), lambda n: (n, 0, 0)),
            const_spec((nb_layers, max_cin, 1)),
            const_spec((nb_layers, max_cin, 1)),
            const_spec((nb_layers, growth, K9)),
            const_spec((c_final, 1)),
            const_spec((c_final, 1)),
            const_spec((out_planes, c_final)),
        ],
        out_specs=pl.BlockSpec((B, out_planes, HW), lambda n: (n, 0, 0)),
        scratch_shapes=[
            pltpu.VMEM((c_final, B * HW), jnp.float32),      # dense feat
            pltpu.VMEM((max_cin, B * seg), jnp.bfloat16),    # padded activation
            pltpu.VMEM((K9, B * HW), jnp.bfloat16),          # im2col columns
        ],
        compiler_params=pltpu.CompilerParams(
            dimension_semantics=("parallel",)),
    )(x, scales, shifts, wpack, scale1, shift1, w1t)

    return out.reshape(N, out_planes, H, W)               # free reshape to NCHW


# ----------------------------------------------------------------------------
# Deterministic parameter construction (synthetic, no checkpoint)
# ----------------------------------------------------------------------------
def _fold_bn(gamma, beta, mean, var, eps=1e-5):
    scale = gamma / jnp.sqrt(var + eps)
    shift = beta - mean * scale
    return scale, shift


def make_params(key, nb_layers, in_planes, out_planes, growth_rate):
    params = {"layers": []}
    for i in range(nb_layers):
        cin = in_planes + i * growth_rate
        key, k_w, k_g, k_b, k_m, k_v = jax.random.split(key, 6)
        w = jax.random.normal(k_w, (3, 3, cin, growth_rate), jnp.float32) * 0.1
        gamma = 0.5 + jax.random.uniform(k_g, (cin,), jnp.float32)
        beta = 0.1 * jax.random.normal(k_b, (cin,), jnp.float32)
        mean = 0.1 * jax.random.normal(k_m, (cin,), jnp.float32)
        var = 0.5 + jax.random.uniform(k_v, (cin,), jnp.float32)
        scale, shift = _fold_bn(gamma, beta, mean, var)
        params["layers"].append(
            {"w": w, "scale": scale, "shift": shift, "dilation": i + 1})
    c_final = in_planes + nb_layers * growth_rate
    key, k_w, k_g, k_b, k_m, k_v = jax.random.split(key, 6)
    params["w1"] = jax.random.normal(k_w, (c_final, out_planes), jnp.float32) * 0.1
    gamma = 0.5 + jax.random.uniform(k_g, (c_final,), jnp.float32)
    beta = 0.1 * jax.random.normal(k_b, (c_final,), jnp.float32)
    mean = 0.1 * jax.random.normal(k_m, (c_final,), jnp.float32)
    var = 0.5 + jax.random.uniform(k_v, (c_final,), jnp.float32)
    params["scale1"], params["shift1"] = _fold_bn(gamma, beta, mean, var)
    return params


# ----------------------------------------------------------------------------
# Pure-JAX reference (same bf16-matmul-input policy, f32 accumulation)
# ----------------------------------------------------------------------------
def reference_forward(x_nchw, params):
    x = jnp.transpose(x_nchw, (0, 2, 3, 1))
    for lp in params["layers"]:
        act = jnp.maximum(x * lp["scale"] + lp["shift"], 0.0)
        d = lp["dilation"]
        out = lax.conv_general_dilated(
            act.astype(jnp.bfloat16), lp["w"].astype(jnp.bfloat16),
            window_strides=(1, 1), padding=[(d, d), (d, d)],
            rhs_dilation=(d, d),
            dimension_numbers=("NHWC", "HWIO", "NHWC"),
            preferred_element_type=jnp.float32)
        x = jnp.concatenate([x, out], axis=-1)
    act = jnp.maximum(x * params["scale1"] + params["shift1"], 0.0)
    y = jnp.einsum("nhwc,co->nhwo", act.astype(jnp.bfloat16),
                   params["w1"].astype(jnp.bfloat16),
                   preferred_element_type=jnp.float32)
    y = jnp.maximum(y, 0.0)
    return jnp.transpose(y, (0, 3, 1, 2))


if __name__ == "__main__":
    # DenseDDCB(nb_layers=3, in_planes=4, out_planes=8, growth_rate=4, block=BasicBlock)
    nb_layers, in_planes, out_planes, growth_rate = 3, 4, 8, 4
    N, H, W = 8, 16, 16      # N=8, block_batch=2 -> 4 grid steps (>=2 per v7x TC)

    key = jax.random.PRNGKey(0)
    key, kx = jax.random.split(key)
    x = jax.random.normal(kx, (N, in_planes, H, W), jnp.float32)  # NCHW input

    params = make_params(key, nb_layers, in_planes, out_planes, growth_rate)

    fwd = jax.jit(dense_ddcb_forward)
    y = jax.block_until_ready(fwd(x, params))
    y_ref = jax.block_until_ready(reference_forward(x, params))

    assert y.shape == (N, out_planes, H, W), y.shape
    max_err = float(jnp.max(jnp.abs(y - y_ref)))
    assert jnp.allclose(y, y_ref, atol=2e-3, rtol=2e-3), max_err

    print("KERNEL_OK")
</pallas_src>

<mosaic_0001>
module attributes {stable_mosaic.version = 11 : i64} {
  func.func @kernel(%arg0: i32, %arg1: memref<2x4x256xf32, #tpu.memory_space<vmem>>, %arg2: memref<3x12x1xf32, #tpu.memory_space<vmem>>, %arg3: memref<3x12x1xf32, #tpu.memory_space<vmem>>, %arg4: memref<3x4x108xbf16, #tpu.memory_space<vmem>>, %arg5: memref<16x1xf32, #tpu.memory_space<vmem>>, %arg6: memref<16x1xf32, #tpu.memory_space<vmem>>, %arg7: memref<8x16xbf16, #tpu.memory_space<vmem>>, %arg8: memref<2x8x256xf32, #tpu.memory_space<vmem>>, %arg9: memref<16x512xf32, #tpu.memory_space<vmem>>, %arg10: memref<12x1024xbf16, #tpu.memory_space<vmem>>, %arg11: memref<108x512xbf16, #tpu.memory_space<vmem>>) attributes {dimension_semantics = [#tpu.dimension_semantics<parallel>], iteration_bounds = array<i64: 4>, scalar_prefetch = 0 : i64, scratch_operands = 3 : i64, tpu.core_type = #tpu.core_type<tc>, window_params = [{transform_indices = @transform_0, window_bounds = array<i64: 2, 4, 256>}, {pipeline_mode = #tpu.pipeline_mode<synchronous>, transform_indices = @transform_1, window_bounds = array<i64: 3, 12, 1>}, {pipeline_mode = #tpu.pipeline_mode<synchronous>, transform_indices = @transform_2, window_bounds = array<i64: 3, 12, 1>}, {pipeline_mode = #tpu.pipeline_mode<synchronous>, transform_indices = @transform_3, window_bounds = array<i64: 3, 4, 108>}, {pipeline_mode = #tpu.pipeline_mode<synchronous>, transform_indices = @transform_4, window_bounds = array<i64: 16, 1>}, {pipeline_mode = #tpu.pipeline_mode<synchronous>, transform_indices = @transform_5, window_bounds = array<i64: 16, 1>}, {pipeline_mode = #tpu.pipeline_mode<synchronous>, transform_indices = @transform_6, window_bounds = array<i64: 8, 16>}, {transform_indices = @transform_7, window_bounds = array<i64: 2, 8, 256>}]} {
    %cst = arith.constant 0.000000e+00 : bf16
    %0 = vector.broadcast %cst : bf16 to vector<12x1024xbf16>
    %c0 = arith.constant 0 : index
    %c0_0 = arith.constant 0 : index
    %1 = vector.load %arg10[%c0, %c0_0] : memref<12x1024xbf16, #tpu.memory_space<vmem>>, vector<12x1024xbf16>
    tpu.vector_store %arg10[%c0, %c0_0], %0 {strides = array<i32>} : memref<12x1024xbf16, #tpu.memory_space<vmem>>, vector<12x1024xbf16>,
    %c0_1 = arith.constant 0 : index
    %c0_2 = arith.constant 0 : index
    %c0_3 = arith.constant 0 : index
    %2 = vector.load %arg1[%c0_1, %c0_2, %c0_3] : memref<2x4x256xf32, #tpu.memory_space<vmem>>, vector<1x4x256xf32>
    %3 = vector.shape_cast %2 : vector<1x4x256xf32> to vector<4x256xf32>
    %c0_4 = arith.constant 0 : index
    %c0_5 = arith.constant 0 : index
    %4 = vector.load %arg9[%c0_4, %c0_5] : memref<16x512xf32, #tpu.memory_space<vmem>>, vector<4x256xf32>
    tpu.vector_store %arg9[%c0_4, %c0_5], %3 {strides = array<i32>} : memref<16x512xf32, #tpu.memory_space<vmem>>, vector<4x256xf32>,
    %c1 = arith.constant 1 : index
    %c0_6 = arith.constant 0 : index
    %c0_7 = arith.constant 0 : index
    %5 = vector.load %arg1[%c1, %c0_6, %c0_7] : memref<2x4x256xf32, #tpu.memory_space<vmem>>, vector<1x4x256xf32>
    %6 = vector.shape_cast %5 : vector<1x4x256xf32> to vector<4x256xf32>
    %c0_8 = arith.constant 0 : index
    %c256 = arith.constant 256 : index
    %7 = vector.load %arg9[%c0_8, %c256] : memref<16x512xf32, #tpu.memory_space<vmem>>, vector<4x256xf32>
    tpu.vector_store %arg9[%c0_8, %c256], %6 {strides = array<i32>} : memref<16x512xf32, #tpu.memory_space<vmem>>, vector<4x256xf32>,
    %8 = tpu.iota {dimensions = array<i32: 1>} : vector<1x256xi32>
    %c16_i32 = arith.constant 16 : i32
    %c0_i32 = arith.constant 0 : i32
    %9 = arith.cmpi eq, %c16_i32, %c0_i32 : i32
    %c1_i32 = arith.constant 1 : i32
    %10 = arith.select %9, %c1_i32, %c16_i32 : i32
    %11 = vector.broadcast %10 : i32 to vector<1x256xi32>
    %12 = arith.remsi %8, %11 : vector<1x256xi32>
    %c0_i32_9 = arith.constant 0 : i32
    %13 = vector.broadcast %c0_i32_9 : i32 to vector<1x256xi32>
    %14 = arith.cmpi ne, %12, %13 : vector<1x256xi32>
    %c0_i32_10 = arith.constant 0 : i32
    %15 = vector.broadcast %c0_i32_10 : i32 to vector<1x256xi32>
    %16 = arith.cmpi slt, %12, %15 : vector<1x256xi32>
    %c0_i32_11 = arith.constant 0 : i32
    %17 = arith.cmpi slt, %10, %c0_i32_11 : i32
    %18 = vector.broadcast %17 : i1 to vector<1x256xi1>
    %19 = vector.broadcast %18 : vector<1x256xi1> to vector<1x256xi1>
    %20 = arith.xori %16, %19 : vector<1x256xi1>
    %21 = arith.andi %20, %14 : vector<1x256xi1>
    %22 = vector.broadcast %10 : i32 to vector<1x256xi32>
    %23 = arith.addi %12, %22 : vector<1x256xi32>
    %24 = arith.select %21, %23, %12 : vector<1x256xi1>, vector<1x256xi32>
    %c0_12 = arith.constant 0 : index
    %c0_13 = arith.constant 0 : index
    %c0_14 = arith.constant 0 : index
    %25 = vector.load %arg2[%c0_12, %c0_13, %c0_14] : memref<3x12x1xf32, #tpu.memory_space<vmem>>, vector<1x4x1xf32>
    %26 = vector.shape_cast %25 : vector<1x4x1xf32> to vector<4x1xf32>
    %c0_15 = arith.constant 0 : index
    %c0_16 = arith.constant 0 : index
    %c0_17 = arith.constant 0 : index
    %27 = vector.load %arg3[%c0_15, %c0_16, %c0_17] : memref<3x12x1xf32, #tpu.memory_space<vmem>>, vector<1x4x1xf32>
    %28 = vector.shape_cast %27 : vector<1x4x1xf32> to vector<4x1xf32>
    %c0_18 = arith.constant 0 : index
    %c0_19 = arith.constant 0 : index
    %29 = vector.load %arg9[%c0_18, %c0_19] : memref<16x512xf32, #tpu.memory_space<vmem>>, vector<4x512xf32>
    %30 = vector.broadcast %26 : vector<4x1xf32> to vector<4x512xf32>
    %31 = arith.mulf %29, %30 : vector<4x512xf32>
    %32 = vector.broadcast %28 : vector<4x1xf32> to vector<4x512xf32>
    %33 = arith.addf %31, %32 : vector<4x512xf32>
    %cst_20 = arith.constant 0.000000e+00 : f32
    %34 = vector.broadcast %cst_20 : f32 to vector<4x512xf32>
    %35 = arith.maximumf %33, %34 : vector<4x512xf32>
    %36 = arith.truncf %35 : vector<4x512xf32> to vector<4x512xbf16>
    %c1_i32_21 = arith.constant 1 : i32
    %37 = vector.broadcast %c1_i32_21 : i32 to vector<1x256xi32>
    %38 = arith.cmpi sge, %24, %37 : vector<1x256xi32>
    %c15_i32 = arith.constant 15 : i32
    %39 = vector.broadcast %c15_i32 : i32 to vector<1x256xi32>
    %40 = arith.cmpi slt, %24, %39 : vector<1x256xi32>
    %41 = vector.extract_strided_slice %36 {offsets = [0, 0], sizes = [4, 256], strides = [1, 1]} : vector<4x512xbf16> to vector<4x256xbf16>
    %c0_22 = arith.constant 0 : index
    %c128 = arith.constant 128 : index
    %42 = vector.load %arg10[%c0_22, %c128] : memref<12x1024xbf16, #tpu.memory_space<vmem>>, vector<4x256xbf16>
    tpu.vector_store %arg10[%c0_22, %c128], %41 {strides = array<i32>} : memref<12x1024xbf16, #tpu.memory_space<vmem>>, vector<4x256xbf16>,
    %43 = vector.extract_strided_slice %36 {offsets = [0, 256], sizes = [4, 256], strides = [1, 1]} : vector<4x512xbf16> to vector<4x256xbf16>
    %c0_23 = arith.constant 0 : index
    %c640 = arith.constant 640 : index
    %44 = vector.load %arg10[%c0_23, %c640] : memref<12x1024xbf16, #tpu.memory_space<vmem>>, vector<4x256xbf16>
    tpu.vector_store %arg10[%c0_23, %c640], %43 {strides = array<i32>} : memref<12x1024xbf16, #tpu.memory_space<vmem>>, vector<4x256xbf16>,
    %c0_24 = arith.constant 0 : index
    %c111 = arith.constant 111 : index
    %45 = vector.load %arg10[%c0_24, %c111] : memref<12x1024xbf16, #tpu.memory_space<vmem>>, vector<4x256xbf16>
    %cst_25 = arith.constant 0.000000e+00 : f32
    %46 = arith.truncf %cst_25 : f32 to bf16
    %47 = vector.shape_cast %38 : vector<1x256xi1> to vector<1x256xi1>
    %48 = vector.broadcast %47 : vector<1x256xi1> to vector<4x256xi1>
    %49 = vector.broadcast %46 : bf16 to vector<4x256xbf16>
    %50 = arith.select %48, %45, %49 : vector<4x256xi1>, vector<4x256xbf16>
    %c0_26 = arith.constant 0 : index
    %c0_27 = arith.constant 0 : index
    %51 = vector.load %arg11[%c0_26, %c0_27] : memref<108x512xbf16, #tpu.memory_space<vmem>>, vector<4x256xbf16>
    tpu.vector_store %arg11[%c0_26, %c0_27], %50 {strides = array<i32>} : memref<108x512xbf16, #tpu.memory_space<vmem>>, vector<4x256xbf16>,
    %c0_28 = arith.constant 0 : index
    %c623 = arith.constant 623 : index
    %52 = vector.load %arg10[%c0_28, %c623] : memref<12x1024xbf16, #tpu.memory_space<vmem>>, vector<4x256xbf16>
    %cst_29 = arith.constant 0.000000e+00 : f32
    %53 = arith.truncf %cst_29 : f32 to bf16
    %54 = vector.shape_cast %38 : vector<1x256xi1> to vector<1x256xi1>
    %55 = vector.broadcast %54 : vector<1x256xi1> to vector<4x256xi1>
    %56 = vector.broadcast %53 : bf16 to vector<4x256xbf16>
    %57 = arith.select %55, %52, %56 : vector<4x256xi1>, vector<4x256xbf16>
    %c0_30 = arith.constant 0 : index
    %c256_31 = arith.constant 256 : index
    %58 = vector.load %arg11[%c0_30, %c256_31] : memref<108x512xbf16, #tpu.memory_space<vmem>>, vector<4x256xbf16>
    tpu.vector_store %arg11[%c0_30, %c256_31], %57 {strides = array<i32>} : memref<108x512xbf16, #tpu.memory_space<vmem>>, vector<4x256xbf16>,
    %c0_32 = arith.constant 0 : index
    %c112 = arith.constant 112 : index
    %59 = vector.load %arg10[%c0_32, %c112] : memref<12x1024xbf16, #tpu.memory_space<vmem>>, vector<4x256xbf16>
    %c4 = arith.constant 4 : index
    %c0_33 = arith.constant 0 : index
    %60 = vector.load %arg11[%c4, %c0_33] : memref<108x512xbf16, #tpu.memory_space<vmem>>, vector<4x256xbf16>
    tpu.vector_store %arg11[%c4, %c0_33], %59 {strides = array<i32>} : memref<108x512xbf16, #tpu.memory_space<vmem>>, vector<4x256xbf16>,
    %c0_34 = arith.constant 0 : index
    %c624 = arith.constant 624 : index
    %61 = vector.load %arg10[%c0_34, %c624] : memref<12x1024xbf16, #tpu.memory_space<vmem>>, vector<4x256xbf16>
    %c4_35 = arith.constant 4 : index
    %c256_36 = arith.constant 256 : index
    %62 = vector.load %arg11[%c4_35, %c256_36] : memref<108x512xbf16, #tpu.memory_space<vmem>>, vector<4x256xbf16>
    tpu.vector_store %arg11[%c4_35, %c256_36], %61 {strides = array<i32>} : memref<108x512xbf16, #tpu.memory_space<vmem>>, vector<4x256xbf16>,
    %c0_37 = arith.constant 0 : index
    %c113 = arith.constant 113 : index
    %63 = vector.load %arg10[%c0_37, %c113] : memref<12x1024xbf16, #tpu.memory_space<vmem>>, vector<4x256xbf16>
    %cst_38 = arith.constant 0.000000e+00 : f32
    %64 = arith.truncf %cst_38 : f32 to bf16
    %65 = vector.shape_cast %40 : vector<1x256xi1> to vector<1x256xi1>
    %66 = vector.broadcast %65 : vector<1x256xi1> to vector<4x256xi1>
    %67 = vector.broadcast %64 : bf16 to vector<4x256xbf16>
    %68 = arith.select %66, %63, %67 : vector<4x256xi1>, vector<4x256xbf16>
    %c8 = arith.constant 8 : index
    %c0_39 = arith.constant 0 : index
    %69 = vector.load %arg11[%c8, %c0_39] : memref<108x512xbf16, #tpu.memory_space<vmem>>, vector<4x256xbf16>
    tpu.vector_store %arg11[%c8, %c0_39], %68 {strides = array<i32>} : memref<108x512xbf16, #tpu.memory_space<vmem>>, vector<4x256xbf16>,
    %c0_40 = arith.constant 0 : index
    %c625 = arith.constant 625 : index
    %70 = vector.load %arg10[%c0_40, %c625] : memref<12x1024xbf16, #tpu.memory_space<vmem>>, vector<4x256xbf16>
    %cst_41 = arith.constant 0.000000e+00 : f32
    %71 = arith.truncf %cst_41 : f32 to bf16
    %72 = vector.shape_cast %40 : vector<1x256xi1> to vector<1x256xi1>
    %73 = vector.broadcast %72 : vector<1x256xi1> to vector<4x256xi1>
    %74 = vector.broadcast %71 : bf16 to vector<4x256xbf16>
    %75 = arith.select %73, %70, %74 : vector<4x256xi1>, vector<4x256xbf16>
    %c8_42 = arith.constant 8 : index
    %c256_43 = arith.constant 256 : index
    %76 = vector.load %arg11[%c8_42, %c256_43] : memref<108x512xbf16, #tpu.memory_space<vmem>>, vector<4x256xbf16>
    tpu.vector_store %arg11[%c8_42, %c256_43], %75 {strides = array<i32>} : memref<108x512xbf16, #tpu.memory_space<vmem>>, vector<4x256xbf16>,
    %c0_44 = arith.constant 0 : index
    %c127 = arith.constant 127 : index
    %77 = vector.load %arg10[%c0_44, %c127] : memref<12x1024xbf16, #tpu.memory_space<vmem>>, vector<4x256xbf16>
    %cst_45 = arith.constant 0.000000e+00 : f32
    %78 = arith.truncf %cst_45 : f32 to bf16
    %79 = vector.shape_cast %38 : vector<1x256xi1> to vector<1x256xi1>
    %80 = vector.broadcast %79 : vector<1x256xi1> to vector<4x256xi1>
    %81 = vector.broadcast %78 : bf16 to vector<4x256xbf16>
    %82 = arith.select %80, %77, %81 : vector<4x256xi1>, vector<4x256xbf16>
    %c12 = arith.constant 12 : index
    %c0_46 = arith.constant 0 : index
    %83 = vector.load %arg11[%c12, %c0_46] : memref<108x512xbf16, #tpu.memory_space<vmem>>, vector<4x256xbf16>
    tpu.vector_store %arg11[%c12, %c0_46], %82 {strides = array<i32>} : memref<108x512xbf16, #tpu.memory_space<vmem>>, vector<4x256xbf16>,
    %c0_47 = arith.constant 0 : index
    %c639 = arith.constant 639 : index
    %84 = vector.load %arg10[%c0_47, %c639] : memref<12x1024xbf16, #tpu.memory_space<vmem>>, vector<4x256xbf16>
    %cst_48 = arith.constant 0.000000e+00 : f32
    %85 = arith.truncf %cst_48 : f32 to bf16
    %86 = vector.shape_cast %38 : vector<1x256xi1> to vector<1x256xi1>
    %87 = vector.broadcast %86 : vector<1x256xi1> to vector<4x256xi1>
    %88 = vector.broadcast %85 : bf16 to vector<4x256xbf16>
    %89 = arith.select %87, %84, %88 : vector<4x256xi1>, vector<4x256xbf16>
    %c12_49 = arith.constant 12 : index
    %c256_50 = arith.constant 256 : index
    %90 = vector.load %arg11[%c12_49, %c256_50] : memref<108x512xbf16, #tpu.memory_space<vmem>>, vector<4x256xbf16>
    tpu.vector_store %arg11[%c12_49, %c256_50], %89 {strides = array<i32>} : memref<108x512xbf16, #tpu.memory_space<vmem>>, vector<4x256xbf16>,
    %c0_51 = arith.constant 0 : index
    %c128_52 = arith.constant 128 : index
    %91 = vector.load %arg10[%c0_51, %c128_52] : memref<12x1024xbf16, #tpu.memory_space<vmem>>, vector<4x256xbf16>
    %c16 = arith.constant 16 : index
    %c0_53 = arith.constant 0 : index
    %92 = vector.load %arg11[%c16, %c0_53] : memref<108x512xbf16, #tpu.memory_space<vmem>>, vector<4x256xbf16>
    tpu.vector_store %arg11[%c16, %c0_53], %91 {strides = array<i32>} : memref<108x512xbf16, #tpu.memory_space<vmem>>, vector<4x256xbf16>,
    %c0_54 = arith.constant 0 : index
    %c640_55 = arith.constant 640 : index
    %93 = vector.load %arg10[%c0_54, %c640_55] : memref<12x1024xbf16, #tpu.memory_space<vmem>>, vector<4x256xbf16>
    %c16_56 = arith.constant 16 : index
    %c256_57 = arith.constant 256 : index
    %94 = vector.load %arg11[%c16_56, %c256_57] : memref<108x512xbf16, #tpu.memory_space<vmem>>, vector<4x256xbf16>
    tpu.vector_store %arg11[%c16_56, %c256_57], %93 {strides = array<i32>} : memref<108x512xbf16, #tpu.memory_space<vmem>>, vector<4x256xbf16>,
    %c0_58 = arith.constant 0 : index
    %c129 = arith.constant 129 : index
    %95 = vector.load %arg10[%c0_58, %c129] : memref<12x1024xbf16, #tpu.memory_space<vmem>>, vector<4x256xbf16>
    %cst_59 = arith.constant 0.000000e+00 : f32
    %96 = arith.truncf %cst_59 : f32 to bf16
    %97 = vector.shape_cast %40 : vector<1x256xi1> to vector<1x256xi1>
    %98 = vector.broadcast %97 : vector<1x256xi1> to vector<4x256xi1>
    %99 = vector.broadcast %96 : bf16 to vector<4x256xbf16>
    %100 = arith.select %98, %95, %99 : vector<4x256xi1>, vector<4x256xbf16>
    %c20 = arith.constant 20 : index
    %c0_60 = arith.constant 0 : index
    %101 = vector.load %arg11[%c20, %c0_60] : memref<108x512xbf16, #tpu.memory_space<vmem>>, vector<4x256xbf16>
    tpu.vector_store %arg11[%c20, %c0_60], %100 {strides = array<i32>} : memref<108x512xbf16, #tpu.memory_space<vmem>>, vector<4x256xbf16>,
    %c0_61 = arith.constant 0 : index
    %c641 = arith.constant 641 : index
    %102 = vector.load %arg10[%c0_61, %c641] : memref<12x1024xbf16, #tpu.memory_space<vmem>>, vector<4x256xbf16>
    %cst_62 = arith.constant 0.000000e+00 : f32
    %103 = arith.truncf %cst_62 : f32 to bf16
    %104 = vector.shape_cast %40 : vector<1x256xi1> to vector<1x256xi1>
    %105 = vector.broadcast %104 : vector<1x256xi1> to vector<4x256xi1>
    %106 = vector.broadcast %103 : bf16 to vector<4x256xbf16>
    %107 = arith.select %105, %102, %106 : vector<4x256xi1>, vector<4x256xbf16>
    %c20_63 = arith.constant 20 : index
    %c256_64 = arith.constant 256 : index
    %108 = vector.load %arg11[%c20_63, %c256_64] : memref<108x512xbf16, #tpu.memory_space<vmem>>, vector<4x256xbf16>
    tpu.vector_store %arg11[%c20_63, %c256_64], %107 {strides = array<i32>} : memref<108x512xbf16, #tpu.memory_space<vmem>>, vector<4x256xbf16>,
    %c0_65 = arith.constant 0 : index
    %c143 = arith.constant 143 : index
    %109 = vector.load %arg10[%c0_65, %c143] : memref<12x1024xbf16, #tpu.memory_space<vmem>>, vector<4x256xbf16>
    %cst_66 = arith.constant 0.000000e+00 : f32
    %110 = arith.truncf %cst_66 : f32 to bf16
    %111 = vector.shape_cast %38 : vector<1x256xi1> to vector<1x256xi1>
    %112 = vector.broadcast %111 : vector<1x256xi1> to vector<4x256xi1>
    %113 = vector.broadcast %110 : bf16 to vector<4x256xbf16>
    %114 = arith.select %112, %109, %113 : vector<4x256xi1>, vector<4x256xbf16>
    %c24 = arith.constant 24 : index
    %c0_67 = arith.constant 0 : index
    %115 = vector.load %arg11[%c24, %c0_67] : memref<108x512xbf16, #tpu.memory_space<vmem>>, vector<4x256xbf16>
    tpu.vector_store %arg11[%c24, %c0_67], %114 {strides = array<i32>} : memref<108x512xbf16, #tpu.memory_space<vmem>>, vector<4x256xbf16>,
    %c0_68 = arith.constant 0 : index
    %c655 = arith.constant 655 : index
    %116 = vector.load %arg10[%c0_68, %c655] : memref<12x1024xbf16, #tpu.memory_space<vmem>>, vector<4x256xbf16>
    %cst_69 = arith.constant 0.000000e+00 : f32
    %117 = arith.truncf %cst_69 : f32 to bf16
    %118 = vector.shape_cast %38 : vector<1x256xi1> to vector<1x256xi1>
    %119 = vector.broadcast %118 : vector<1x256xi1> to vector<4x256xi1>
    %120 = vector.broadcast %117 : bf16 to vector<4x256xbf16>
    %121 = arith.select %119, %116, %120 : vector<4x256xi1>, vector<4x256xbf16>
    %c24_70 = arith.constant 24 : index
    %c256_71 = arith.constant 256 : index
    %122 = vector.load %arg11[%c24_70, %c256_71] : memref<108x512xbf16, #tpu.memory_space<vmem>>, vector<4x256xbf16>
    tpu.vector_store %arg11[%c24_70, %c256_71], %121 {strides = array<i32>} : memref<108x512xbf16, #tpu.memory_space<vmem>>, vector<4x256xbf16>,
    %c0_72 = arith.constant 0 : index
    %c144 = arith.constant 144 : index
    %123 = vector.load %arg10[%c0_72, %c144] : memref<12x1024xbf16, #tpu.memory_space<vmem>>, vector<4x256xbf16>
    %c28 = arith.constant 28 : index
    %c0_73 = arith.constant 0 : index
    %124 = vector.load %arg11[%c28, %c0_73] : memref<108x512xbf16, #tpu.memory_space<vmem>>, vector<4x256xbf16>
    tpu.vector_store %arg11[%c28, %c0_73], %123 {strides = array<i32>} : memref<108x512xbf16, #tpu.memory_space<vmem>>, vector<4x256xbf16>,
    %c0_74 = arith.constant 0 : index
    %c656 = arith.constant 656 : index
    %125 = vector.load %arg10[%c0_74, %c656] : memref<12x1024xbf16, #tpu.memory_space<vmem>>, vector<4x256xbf16>
    %c28_75 = arith.constant 28 : index
    %c256_76 = arith.constant 256 : index
    %126 = vector.load %arg11[%c28_75, %c256_76] : memref<108x512xbf16, #tpu.memory_space<vmem>>, vector<4x256xbf16>
    tpu.vector_store %arg11[%c28_75, %c256_76], %125 {strides = array<i32>} : memref<108x512xbf16, #tpu.memory_space<vmem>>, vector<4x256xbf16>,
    %c0_77 = arith.constant 0 : index
    %c145 = arith.constant 145 : index
    %127 = vector.load %arg10[%c0_77, %c145] : memref<12x1024xbf16, #tpu.memory_space<vmem>>, vector<4x256xbf16>
    %cst_78 = arith.constant 0.000000e+00 : f32
    %128 = arith.truncf %cst_78 : f32 to bf16
    %129 = vector.shape_cast %40 : vector<1x256xi1> to vector<1x256xi1>
    %130 = vector.broadcast %129 : vector<1x256xi1> to vector<4x256xi1>
    %131 = vector.broadcast %128 : bf16 to vector<4x256xbf16>
    %132 = arith.select %130, %127, %131 : vector<4x256xi1>, vector<4x256xbf16>
    %c32 = arith.constant 32 : index
    %c0_79 = arith.constant 0 : index
    %133 = vector.load %arg11[%c32, %c0_79] : memref<108x512xbf16, #tpu.memory_space<vmem>>, vector<4x256xbf16>
    tpu.vector_store %arg11[%c32, %c0_79], %132 {strides = array<i32>} : memref<108x512xbf16, #tpu.memory_space<vmem>>, vector<4x256xbf16>,
    %c0_80 = arith.constant 0 : index
    %c657 = arith.constant 657 : index
    %134 = vector.load %arg10[%c0_80, %c657] : memref<12x1024xbf16, #tpu.memory_space<vmem>>, vector<4x256xbf16>
    %cst_81 = arith.constant 0.000000e+00 : f32
    %135 = arith.truncf %cst_81 : f32 to bf16
    %136 = vector.shape_cast %40 : vector<1x256xi1> to vector<1x256xi1>
    %137 = vector.broadcast %136 : vector<1x256xi1> to vector<4x256xi1>
    %138 = vector.broadcast %135 : bf16 to vector<4x256xbf16>
    %139 = arith.select %137, %134, %138 : vector<4x256xi1>, vector<4x256xbf16>
    %c32_82 = arith.constant 32 : index
    %c256_83 = arith.constant 256 : index
    %140 = vector.load %arg11[%c32_82, %c256_83] : memref<108x512xbf16, #tpu.memory_space<vmem>>, vector<4x256xbf16>
    tpu.vector_store %arg11[%c32_82, %c256_83], %139 {strides = array<i32>} : memref<108x512xbf16, #tpu.memory_space<vmem>>, vector<4x256xbf16>,
    %c0_84 = arith.constant 0 : index
    %c0_85 = arith.constant 0 : index
    %c0_86 = arith.constant 0 : index
    %141 = vector.load %arg4[%c0_84, %c0_85, %c0_86] : memref<3x4x108xbf16, #tpu.memory_space<vmem>>, vector<1x4x36xbf16>
    %142 = vector.shape_cast %141 : vector<1x4x36xbf16> to vector<4x36xbf16>
    %c0_87 = arith.constant 0 : index
    %c0_88 = arith.constant 0 : index
    %143 = vector.load %arg11[%c0_87, %c0_88] : memref<108x512xbf16, #tpu.memory_space<vmem>>, vector<36x512xbf16>
    %cst_89 = arith.constant dense<0.000000e+00> : vector<4x512xf32>
    %144 = tpu.matmul %142, %143, %cst_89 {dimension_numbers = #tpu.dot_dimension_numbers<[1], [0], [0], [1], [0, 0, 1, 1], [], []>} : vector<4x36xbf16>, vector<36x512xbf16>, vector<4x512xf32> -> vector<4x512xf32>
    %c4_90 = arith.constant 4 : index
    %c0_91 = arith.constant 0 : index
    %145 = vector.load %arg9[%c4_90, %c0_91] : memref<16x512xf32, #tpu.memory_space<vmem>>, vector<4x512xf32>
    tpu.vector_store %arg9[%c4_90, %c0_91], %144 {strides = array<i32>} : memref<16x512xf32, #tpu.memory_space<vmem>>, vector<4x512xf32>,
    %c1_92 = arith.constant 1 : index
    %c0_93 = arith.constant 0 : index
    %c0_94 = arith.constant 0 : index
    %146 = vector.load %arg2[%c1_92, %c0_93, %c0_94] : memref<3x12x1xf32, #tpu.memory_space<vmem>>, vector<1x8x1xf32>
    %147 = vector.shape_cast %146 : vector<1x8x1xf32> to vector<8x1xf32>
    %c1_95 = arith.constant 1 : index
    %c0_96 = arith.constant 0 : index
    %c0_97 = arith.constant 0 : index
    %148 = vector.load %arg3[%c1_95, %c0_96, %c0_97] : memref<3x12x1xf32, #tpu.memory_space<vmem>>, vector<1x8x1xf32>
    %149 = vector.shape_cast %148 : vector<1x8x1xf32> to vector<8x1xf32>
    %c0_98 = arith.constant 0 : index
    %c0_99 = arith.constant 0 : index
    %150 = vector.load %arg9[%c0_98, %c0_99] : memref<16x512xf32, #tpu.memory_space<vmem>>, vector<8x512xf32>
    %151 = vector.broadcast %147 : vector<8x1xf32> to vector<8x512xf32>
    %152 = arith.mulf %150, %151 : vector<8x512xf32>
    %153 = vector.broadcast %149 : vector<8x1xf32> to vector<8x512xf32>
    %154 = arith.addf %152, %153 : vector<8x512xf32>
    %cst_100 = arith.constant 0.000000e+00 : f32
    %155 = vector.broadcast %cst_100 : f32 to vector<8x512xf32>
    %156 = arith.maximumf %154, %155 : vector<8x512xf32>
    %157 = arith.truncf %156 : vector<8x512xf32> to vector<8x512xbf16>
    %c2_i32 = arith.constant 2 : i32
    %158 = vector.broadcast %c2_i32 : i32 to vector<1x256xi32>
    %159 = arith.cmpi sge, %24, %158 : vector<1x256xi32>
    %c14_i32 = arith.constant 14 : i32
    %160 = vector.broadcast %c14_i32 : i32 to vector<1x256xi32>
    %161 = arith.cmpi slt, %24, %160 : vector<1x256xi32>
    %162 = vector.extract_strided_slice %157 {offsets = [0, 0], sizes = [8, 256], strides = [1, 1]} : vector<8x512xbf16> to vector<8x256xbf16>
    %c0_101 = arith.constant 0 : index
    %c128_102 = arith.constant 128 : index
    %163 = vector.load %arg10[%c0_101, %c128_102] : memref<12x1024xbf16, #tpu.memory_space<vmem>>, vector<8x256xbf16>
    tpu.vector_store %arg10[%c0_101, %c128_102], %162 {strides = array<i32>} : memref<12x1024xbf16, #tpu.memory_space<vmem>>, vector<8x256xbf16>,
    %164 = vector.extract_strided_slice %157 {offsets = [0, 256], sizes = [8, 256], strides = [1, 1]} : vector<8x512xbf16> to vector<8x256xbf16>
    %c0_103 = arith.constant 0 : index
    %c640_104 = arith.constant 640 : index
    %165 = vector.load %arg10[%c0_103, %c640_104] : memref<12x1024xbf16, #tpu.memory_space<vmem>>, vector<8x256xbf16>
    tpu.vector_store %arg10[%c0_103, %c640_104], %164 {strides = array<i32>} : memref<12x1024xbf16, #tpu.memory_space<vmem>>, vector<8x256xbf16>,
    %c0_105 = arith.constant 0 : index
    %c94 = arith.constant 94 : index
    %166 = vector.load %arg10[%c0_105, %c94] : memref<12x1024xbf16, #tpu.memory_space<vmem>>, vector<8x256xbf16>
    %cst_106 = arith.constant 0.000000e+00 : f32
    %167 = arith.truncf %cst_106 : f32 to bf16
    %168 = vector.shape_cast %159 : vector<1x256xi1> to vector<1x256xi1>
    %169 = vector.broadcast %168 : vector<1x256xi1> to vector<8x256xi1>
    %170 = vector.broadcast %167 : bf16 to vector<8x256xbf16>
    %171 = arith.select %169, %166, %170 : vector<8x256xi1>, vector<8x256xbf16>
    %c0_107 = arith.constant 0 : index
    %c0_108 = arith.constant 0 : index
    %172 = vector.load %arg11[%c0_107, %c0_108] : memref<108x512xbf16, #tpu.memory_space<vmem>>, vector<8x256xbf16>
    tpu.vector_store %arg11[%c0_107, %c0_108], %171 {strides = array<i32>} : memref<108x512xbf16, #tpu.memory_space<vmem>>, vector<8x256xbf16>,
    %c0_109 = arith.constant 0 : index
    %c606 = arith.constant 606 : index
    %173 = vector.load %arg10[%c0_109, %c606] : memref<12x1024xbf16, #tpu.memory_space<vmem>>, vector<8x256xbf16>
    %cst_110 = arith.constant 0.000000e+00 : f32
    %174 = arith.truncf %cst_110 : f32 to bf16
    %175 = vector.shape_cast %159 : vector<1x256xi1> to vector<1x256xi1>
    %176 = vector.broadcast %175 : vector<1x256xi1> to vector<8x256xi1>
    %177 = vector.broadcast %174 : bf16 to vector<8x256xbf16>
    %178 = arith.select %176, %173, %177 : vector<8x256xi1>, vector<8x256xbf16>
    %c0_111 = arith.constant 0 : index
    %c256_112 = arith.constant 256 : index
    %179 = vector.load %arg11[%c0_111, %c256_112] : memref<108x512xbf16, #tpu.memory_space<vmem>>, vector<8x256xbf16>
    tpu.vector_store %arg11[%c0_111, %c256_112], %178 {strides = array<i32>} : memref<108x512xbf16, #tpu.memory_space<vmem>>, vector<8x256xbf16>,
    %c0_113 = arith.constant 0 : index
    %c96 = arith.constant 96 : index
    %180 = vector.load %arg10[%c0_113, %c96] : memref<12x1024xbf16, #tpu.memory_space<vmem>>, vector<8x256xbf16>
    %c8_114 = arith.constant 8 : index
    %c0_115 = arith.constant 0 : index
    %181 = vector.load %arg11[%c8_114, %c0_115] : memref<108x512xbf16, #tpu.memory_space<vmem>>, vector<8x256xbf16>
    tpu.vector_store %arg11[%c8_114, %c0_115], %180 {strides = array<i32>} : memref<108x512xbf16, #tpu.memory_space<vmem>>, vector<8x256xbf16>,
    %c0_116 = arith.constant 0 : index
    %c608 = arith.constant 608 : index
    %182 = vector.load %arg10[%c0_116, %c608] : memref<12x1024xbf16, #tpu.memory_space<vmem>>, vector<8x256xbf16>
    %c8_117 = arith.constant 8 : index
    %c256_118 = arith.constant 256 : index
    %183 = vector.load %arg11[%c8_117, %c256_118] : memref<108x512xbf16, #tpu.memory_space<vmem>>, vector<8x256xbf16>
    tpu.vector_store %arg11[%c8_117, %c256_118], %182 {strides = array<i32>} : memref<108x512xbf16, #tpu.memory_space<vmem>>, vector<8x256xbf16>,
    %c0_119 = arith.constant 0 : index
    %c98 = arith.constant 98 : index
    %184 = vector.load %arg10[%c0_119, %c98] : memref<12x1024xbf16, #tpu.memory_space<vmem>>, vector<8x256xbf16>
    %cst_120 = arith.constant 0.000000e+00 : f32
    %185 = arith.truncf %cst_120 : f32 to bf16
    %186 = vector.shape_cast %161 : vector<1x256xi1> to vector<1x256xi1>
    %187 = vector.broadcast %186 : vector<1x256xi1> to vector<8x256xi1>
    %188 = vector.broadcast %185 : bf16 to vector<8x256xbf16>
    %189 = arith.select %187, %184, %188 : vector<8x256xi1>, vector<8x256xbf16>
    %c16_121 = arith.constant 16 : index
    %c0_122 = arith.constant 0 : index
    %190 = vector.load %arg11[%c16_121, %c0_122] : memref<108x512xbf16, #tpu.memory_space<vmem>>, vector<8x256xbf16>
    tpu.vector_store %arg11[%c16_121, %c0_122], %189 {strides = array<i32>} : memref<108x512xbf16, #tpu.memory_space<vmem>>, vector<8x256xbf16>,
    %c0_123 = arith.constant 0 : index
    %c610 = arith.constant 610 : index
    %191 = vector.load %arg10[%c0_123, %c610] : memref<12x1024xbf16, #tpu.memory_space<vmem>>, vector<8x256xbf16>
    %cst_124 = arith.constant 0.000000e+00 : f32
    %192 = arith.truncf %cst_124 : f32 to bf16
    %193 = vector.shape_cast %161 : vector<1x256xi1> to vector<1x256xi1>
    %194 = vector.broadcast %193 : vector<1x256xi1> to vector<8x256xi1>
    %195 = vector.broadcast %192 : bf16 to vector<8x256xbf16>
    %196 = arith.select %194, %191, %195 : vector<8x256xi1>, vector<8x256xbf16>
    %c16_125 = arith.constant 16 : index
    %c256_126 = arith.constant 256 : index
    %197 = vector.load %arg11[%c16_125, %c256_126] : memref<108x512xbf16, #tpu.memory_space<vmem>>, vector<8x256xbf16>
    tpu.vector_store %arg11[%c16_125, %c256_126], %196 {strides = array<i32>} : memref<108x512xbf16, #tpu.memory_space<vmem>>, vector<8x256xbf16>,
    %c0_127 = arith.constant 0 : index
    %c126 = arith.constant 126 : index
    %198 = vector.load %arg10[%c0_127, %c126] : memref<12x1024xbf16, #tpu.memory_space<vmem>>, vector<8x256xbf16>
    %cst_128 = arith.constant 0.000000e+00 : f32
    %199 = arith.truncf %cst_128 : f32 to bf16
    %200 = vector.shape_cast %159 : vector<1x256xi1> to vector<1x256xi1>
    %201 = vector.broadcast %200 : vector<1x256xi1> to vector<8x256xi1>
    %202 = vector.broadcast %199 : bf16 to vector<8x256xbf16>
    %203 = arith.select %201, %198, %202 : vector<8x256xi1>, vector<8x256xbf16>
    %c24_129 = arith.constant 24 : index
    %c0_130 = arith.constant 0 : index
    %204 = vector.load %arg11[%c24_129, %c0_130] : memref<108x512xbf16, #tpu.memory_space<vmem>>, vector<8x256xbf16>
    tpu.vector_store %arg11[%c24_129, %c0_130], %203 {strides = array<i32>} : memref<108x512xbf16, #tpu.memory_space<vmem>>, vector<8x256xbf16>,
    %c0_131 = arith.constant 0 : index
    %c638 = arith.constant 638 : index
    %205 = vector.load %arg10[%c0_131, %c638] : memref<12x1024xbf16, #tpu.memory_space<vmem>>, vector<8x256xbf16>
    %cst_132 = arith.constant 0.000000e+00 : f32
    %206 = arith.truncf %cst_132 : f32 to bf16
    %207 = vector.shape_cast %159 : vector<1x256xi1> to vector<1x256xi1>
    %208 = vector.broadcast %207 : vector<1x256xi1> to vector<8x256xi1>
    %209 = vector.broadcast %206 : bf16 to vector<8x256xbf16>
    %210 = arith.select %208, %205, %209 : vector<8x256xi1>, vector<8x256xbf16>
    %c24_133 = arith.constant 24 : index
    %c256_134 = arith.constant 256 : index
    %211 = vector.load %arg11[%c24_133, %c256_134] : memref<108x512xbf16, #tpu.memory_space<vmem>>, vector<8x256xbf16>
    tpu.vector_store %arg11[%c24_133, %c256_134], %210 {strides = array<i32>} : memref<108x512xbf16, #tpu.memory_space<vmem>>, vector<8x256xbf16>,
    %c0_135 = arith.constant 0 : index
    %c128_136 = arith.constant 128 : index
    %212 = vector.load %arg10[%c0_135, %c128_136] : memref<12x1024xbf16, #tpu.memory_space<vmem>>, vector<8x256xbf16>
    %c32_137 = arith.constant 32 : index
    %c0_138 = arith.constant 0 : index
    %213 = vector.load %arg11[%c32_137, %c0_138] : memref<108x512xbf16, #tpu.memory_space<vmem>>, vector<8x256xbf16>
    tpu.vector_store %arg11[%c32_137, %c0_138], %212 {strides = array<i32>} : memref<108x512xbf16, #tpu.memory_space<vmem>>, vector<8x256xbf16>,
    %c0_139 = arith.constant 0 : index
    %c640_140 = arith.constant 640 : index
    %214 = vector.load %arg10[%c0_139, %c640_140] : memref<12x1024xbf16, #tpu.memory_space<vmem>>, vector<8x256xbf16>
    %c32_141 = arith.constant 32 : index
    %c256_142 = arith.constant 256 : index
    %215 = vector.load %arg11[%c32_141, %c256_142] : memref<108x512xbf16, #tpu.memory_space<vmem>>, vector<8x256xbf16>
    tpu.vector_store %arg11[%c32_141, %c256_142], %214 {strides = array<i32>} : memref<108x512xbf16, #tpu.memory_space<vmem>>, vector<8x256xbf16>,
    %c0_143 = arith.constant 0 : index
    %c130 = arith.constant 130 : index
    %216 = vector.load %arg10[%c0_143, %c130] : memref<12x1024xbf16, #tpu.memory_space<vmem>>, vector<8x256xbf16>
    %cst_144 = arith.constant 0.000000e+00 : f32
    %217 = arith.truncf %cst_144 : f32 to bf16
    %218 = vector.shape_cast %161 : vector<1x256xi1> to vector<1x256xi1>
    %219 = vector.broadcast %218 : vector<1x256xi1> to vector<8x256xi1>
    %220 = vector.broadcast %217 : bf16 to vector<8x256xbf16>
    %221 = arith.select %219, %216, %220 : vector<8x256xi1>, vector<8x256xbf16>
    %c40 = arith.constant 40 : index
    %c0_145 = arith.constant 0 : index
    %222 = vector.load %arg11[%c40, %c0_145] : memref<108x512xbf16, #tpu.memory_space<vmem>>, vector<8x256xbf16>
    tpu.vector_store %arg11[%c40, %c0_145], %221 {strides = array<i32>} : memref<108x512xbf16, #tpu.memory_space<vmem>>, vector<8x256xbf16>,
    %c0_146 = arith.constant 0 : index
    %c642 = arith.constant 642 : index
    %223 = vector.load %arg10[%c0_146, %c642] : memref<12x1024xbf16, #tpu.memory_space<vmem>>, vector<8x256xbf16>
    %cst_147 = arith.constant 0.000000e+00 : f32
    %224 = arith.truncf %cst_147 : f32 to bf16
    %225 = vector.shape_cast %161 : vector<1x256xi1> to vector<1x256xi1>
    %226 = vector.broadcast %225 : vector<1x256xi1> to vector<8x256xi1>
    %227 = vector.broadcast %224 : bf16 to vector<8x256xbf16>
    %228 = arith.select %226, %223, %227 : vector<8x256xi1>, vector<8x256xbf16>
    %c40_148 = arith.constant 40 : index
    %c256_149 = arith.constant 256 : index
    %229 = vector.load %arg11[%c40_148, %c256_149] : memref<108x512xbf16, #tpu.memory_space<vmem>>, vector<8x256xbf16>
    tpu.vector_store %arg11[%c40_148, %c256_149], %228 {strides = array<i32>} : memref<108x512xbf16, #tpu.memory_space<vmem>>, vector<8x256xbf16>,
    %c0_150 = arith.constant 0 : index
    %c158 = arith.constant 158 : index
    %230 = vector.load %arg10[%c0_150, %c158] : memref<12x1024xbf16, #tpu.memory_space<vmem>>, vector<8x256xbf16>
    %cst_151 = arith.constant 0.000000e+00 : f32
    %231 = arith.truncf %cst_151 : f32 to bf16
    %232 = vector.shape_cast %159 : vector<1x256xi1> to vector<1x256xi1>
    %233 = vector.broadcast %232 : vector<1x256xi1> to vector<8x256xi1>
    %234 = vector.broadcast %231 : bf16 to vector<8x256xbf16>
    %235 = arith.select %233, %230, %234 : vector<8x256xi1>, vector<8x256xbf16>
    %c48 = arith.constant 48 : index
    %c0_152 = arith.constant 0 : index
    %236 = vector.load %arg11[%c48, %c0_152] : memref<108x512xbf16, #tpu.memory_space<vmem>>, vector<8x256xbf16>
    tpu.vector_store %arg11[%c48, %c0_152], %235 {strides = array<i32>} : memref<108x512xbf16, #tpu.memory_space<vmem>>, vector<8x256xbf16>,
    %c0_153 = arith.constant 0 : index
    %c670 = arith.constant 670 : index
    %237 = vector.load %arg10[%c0_153, %c670] : memref<12x1024xbf16, #tpu.memory_space<vmem>>, vector<8x256xbf16>
    %cst_154 = arith.constant 0.000000e+00 : f32
    %238 = arith.truncf %cst_154 : f32 to bf16
    %239 = vector.shape_cast %159 : vector<1x256xi1> to vector<1x256xi1>
    %240 = vector.broadcast %239 : vector<1x256xi1> to vector<8x256xi1>
    %241 = vector.broadcast %238 : bf16 to vector<8x256xbf16>
    %242 = arith.select %240, %237, %241 : vector<8x256xi1>, vector<8x256xbf16>
    %c48_155 = arith.constant 48 : index
    %c256_156 = arith.constant 256 : index
    %243 = vector.load %arg11[%c48_155, %c256_156] : memref<108x512xbf16, #tpu.memory_space<vmem>>, vector<8x256xbf16>
    tpu.vector_store %arg11[%c48_155, %c256_156], %242 {strides = array<i32>} : memref<108x512xbf16, #tpu.memory_space<vmem>>, vector<8x256xbf16>,
    %c0_157 = arith.constant 0 : index
    %c160 = arith.constant 160 : index
    %244 = vector.load %arg10[%c0_157, %c160] : memref<12x1024xbf16, #tpu.memory_space<vmem>>, vector<8x256xbf16>
    %c56 = arith.constant 56 : index
    %c0_158 = arith.constant 0 : index
    %245 = vector.load %arg11[%c56, %c0_158] : memref<108x512xbf16, #tpu.memory_space<vmem>>, vector<8x256xbf16>
    tpu.vector_store %arg11[%c56, %c0_158], %244 {strides = array<i32>} : memref<108x512xbf16, #tpu.memory_space<vmem>>, vector<8x256xbf16>,
    %c0_159 = arith.constant 0 : index
    %c672 = arith.constant 672 : index
    %246 = vector.load %arg10[%c0_159, %c672] : memref<12x1024xbf16, #tpu.memory_space<vmem>>, vector<8x256xbf16>
    %c56_160 = arith.constant 56 : index
    %c256_161 = arith.constant 256 : index
    %247 = vector.load %arg11[%c56_160, %c256_161] : memref<108x512xbf16, #tpu.memory_space<vmem>>, vector<8x256xbf16>
    tpu.vector_store %arg11[%c56_160, %c256_161], %246 {strides = array<i32>} : memref<108x512xbf16, #tpu.memory_space<vmem>>, vector<8x256xbf16>,
    %c0_162 = arith.constant 0 : index
    %c162 = arith.constant 162 : index
    %248 = vector.load %arg10[%c0_162, %c162] : memref<12x1024xbf16, #tpu.memory_space<vmem>>, vector<8x256xbf16>
    %cst_163 = arith.constant 0.000000e+00 : f32
    %249 = arith.truncf %cst_163 : f32 to bf16
    %250 = vector.shape_cast %161 : vector<1x256xi1> to vector<1x256xi1>
    %251 = vector.broadcast %250 : vector<1x256xi1> to vector<8x256xi1>
    %252 = vector.broadcast %249 : bf16 to vector<8x256xbf16>
    %253 = arith.select %251, %248, %252 : vector<8x256xi1>, vector<8x256xbf16>
    %c64 = arith.constant 64 : index
    %c0_164 = arith.constant 0 : index
    %254 = vector.load %arg11[%c64, %c0_164] : memref<108x512xbf16, #tpu.memory_space<vmem>>, vector<8x256xbf16>
    tpu.vector_store %arg11[%c64, %c0_164], %253 {strides = array<i32>} : memref<108x512xbf16, #tpu.memory_space<vmem>>, vector<8x256xbf16>,
    %c0_165 = arith.constant 0 : index
    %c674 = arith.constant 674 : index
    %255 = vector.load %arg10[%c0_165, %c674] : memref<12x1024xbf16, #tpu.memory_space<vmem>>, vector<8x256xbf16>
    %cst_166 = arith.constant 0.000000e+00 : f32
    %256 = arith.truncf %cst_166 : f32 to bf16
    %257 = vector.shape_cast %161 : vector<1x256xi1> to vector<1x256xi1>
    %258 = vector.broadcast %257 : vector<1x256xi1> to vector<8x256xi1>
    %259 = vector.broadcast %256 : bf16 to vector<8x256xbf16>
    %260 = arith.select %258, %255, %259 : vector<8x256xi1>, vector<8x256xbf16>
    %c64_167 = arith.constant 64 : index
    %c256_168 = arith.constant 256 : index
    %261 = vector.load %arg11[%c64_167, %c256_168] : memref<108x512xbf16, #tpu.memory_space<vmem>>, vector<8x256xbf16>
    tpu.vector_store %arg11[%c64_167, %c256_168], %260 {strides = array<i32>} : memref<108x512xbf16, #tpu.memory_space<vmem>>, vector<8x256xbf16>,
    %c1_169 = arith.constant 1 : index
    %c0_170 = arith.constant 0 : index
    %c0_171 = arith.constant 0 : index
    %262 = vector.load %arg4[%c1_169, %c0_170, %c0_171] : memref<3x4x108xbf16, #tpu.memory_space<vmem>>, vector<1x4x72xbf16>
    %263 = vector.shape_cast %262 : vector<1x4x72xbf16> to vector<4x72xbf16>
    %c0_172 = arith.constant 0 : index
    %c0_173 = arith.constant 0 : index
    %264 = vector.load %arg11[%c0_172, %c0_173] : memref<108x512xbf16, #tpu.memory_space<vmem>>, vector<72x512xbf16>
    %cst_174 = arith.constant dense<0.000000e+00> : vector<4x512xf32>
    %265 = tpu.matmul %263, %264, %cst_174 {dimension_numbers = #tpu.dot_dimension_numbers<[1], [0], [0], [1], [0, 0, 1, 1], [], []>} : vector<4x72xbf16>, vector<72x512xbf16>, vector<4x512xf32> -> vector<4x512xf32>
    %c8_175 = arith.constant 8 : index
    %c0_176 = arith.constant 0 : index
    %266 = vector.load %arg9[%c8_175, %c0_176] : memref<16x512xf32, #tpu.memory_space<vmem>>, vector<4x512xf32>
    tpu.vector_store %arg9[%c8_175, %c0_176], %265 {strides = array<i32>} : memref<16x512xf32, #tpu.memory_space<vmem>>, vector<4x512xf32>,
    %c2 = arith.constant 2 : index
    %c0_177 = arith.constant 0 : index
    %c0_178 = arith.constant 0 : index
    %267 = vector.load %arg2[%c2, %c0_177, %c0_178] : memref<3x12x1xf32, #tpu.memory_space<vmem>>, vector<1x12x1xf32>
    %268 = vector.shape_cast %267 : vector<1x12x1xf32> to vector<12x1xf32>
    %c2_179 = arith.constant 2 : index
    %c0_180 = arith.constant 0 : index
    %c0_181 = arith.constant 0 : index
    %269 = vector.load %arg3[%c2_179, %c0_180, %c0_181] : memref<3x12x1xf32, #tpu.memory_space<vmem>>, vector<1x12x1xf32>
    %270 = vector.shape_cast %269 : vector<1x12x1xf32> to vector<12x1xf32>
    %c0_182 = arith.constant 0 : index
    %c0_183 = arith.constant 0 : index
    %271 = vector.load %arg9[%c0_182, %c0_183] : memref<16x512xf32, #tpu.memory_space<vmem>>, vector<12x512xf32>
    %272 = vector.broadcast %268 : vector<12x1xf32> to vector<12x512xf32>
    %273 = arith.mulf %271, %272 : vector<12x512xf32>
    %274 = vector.broadcast %270 : vector<12x1xf32> to vector<12x512xf32>
    %275 = arith.addf %273, %274 : vector<12x512xf32>
    %cst_184 = arith.constant 0.000000e+00 : f32
    %276 = vector.broadcast %cst_184 : f32 to vector<12x512xf32>
    %277 = arith.maximumf %275, %276 : vector<12x512xf32>
    %278 = arith.truncf %277 : vector<12x512xf32> to vector<12x512xbf16>
    %c3_i32 = arith.constant 3 : i32
    %279 = vector.broadcast %c3_i32 : i32 to vector<1x256xi32>
    %280 = arith.cmpi sge, %24, %279 : vector<1x256xi32>
    %c13_i32 = arith.constant 13 : i32
    %281 = vector.broadcast %c13_i32 : i32 to vector<1x256xi32>
    %282 = arith.cmpi slt, %24, %281 : vector<1x256xi32>
    %283 = vector.extract_strided_slice %278 {offsets = [0, 0], sizes = [12, 256], strides = [1, 1]} : vector<12x512xbf16> to vector<12x256xbf16>
    %c0_185 = arith.constant 0 : index
    %c128_186 = arith.constant 128 : index
    %284 = vector.load %arg10[%c0_185, %c128_186] : memref<12x1024xbf16, #tpu.memory_space<vmem>>, vector<12x256xbf16>
    tpu.vector_store %arg10[%c0_185, %c128_186], %283 {strides = array<i32>} : memref<12x1024xbf16, #tpu.memory_space<vmem>>, vector<12x256xbf16>,
    %285 = vector.extract_strided_slice %278 {offsets = [0, 256], sizes = [12, 256], strides = [1, 1]} : vector<12x512xbf16> to vector<12x256xbf16>
    %c0_187 = arith.constant 0 : index
    %c640_188 = arith.constant 640 : index
    %286 = vector.load %arg10[%c0_187, %c640_188] : memref<12x1024xbf16, #tpu.memory_space<vmem>>, vector<12x256xbf16>
    tpu.vector_store %arg10[%c0_187, %c640_188], %285 {strides = array<i32>} : memref<12x1024xbf16, #tpu.memory_space<vmem>>, vector<12x256xbf16>,
    %c0_189 = arith.constant 0 : index
    %c77 = arith.constant 77 : index
    %287 = vector.load %arg10[%c0_189, %c77] : memref<12x1024xbf16, #tpu.memory_space<vmem>>, vector<12x256xbf16>
    %cst_190 = arith.constant 0.000000e+00 : f32
    %288 = arith.truncf %cst_190 : f32 to bf16
    %289 = vector.shape_cast %280 : vector<1x256xi1> to vector<1x256xi1>
    %290 = vector.broadcast %289 : vector<1x256xi1> to vector<12x256xi1>
    %291 = vector.broadcast %288 : bf16 to vector<12x256xbf16>
    %292 = arith.select %290, %287, %291 : vector<12x256xi1>, vector<12x256xbf16>
    %c0_191 = arith.constant 0 : index
    %c0_192 = arith.constant 0 : index
    %293 = vector.load %arg11[%c0_191, %c0_192] : memref<108x512xbf16, #tpu.memory_space<vmem>>, vector<12x256xbf16>
    tpu.vector_store %arg11[%c0_191, %c0_192], %292 {strides = array<i32>} : memref<108x512xbf16, #tpu.memory_space<vmem>>, vector<12x256xbf16>,
    %c0_193 = arith.constant 0 : index
    %c589 = arith.constant 589 : index
    %294 = vector.load %arg10[%c0_193, %c589] : memref<12x1024xbf16, #tpu.memory_space<vmem>>, vector<12x256xbf16>
    %cst_194 = arith.constant 0.000000e+00 : f32
    %295 = arith.truncf %cst_194 : f32 to bf16
    %296 = vector.shape_cast %280 : vector<1x256xi1> to vector<1x256xi1>
    %297 = vector.broadcast %296 : vector<1x256xi1> to vector<12x256xi1>
    %298 = vector.broadcast %295 : bf16 to vector<12x256xbf16>
    %299 = arith.select %297, %294, %298 : vector<12x256xi1>, vector<12x256xbf16>
    %c0_195 = arith.constant 0 : index
    %c256_196 = arith.constant 256 : index
    %300 = vector.load %arg11[%c0_195, %c256_196] : memref<108x512xbf16, #tpu.memory_space<vmem>>, vector<12x256xbf16>
    tpu.vector_store %arg11[%c0_195, %c256_196], %299 {strides = array<i32>} : memref<108x512xbf16, #tpu.memory_space<vmem>>, vector<12x256xbf16>,
    %c0_197 = arith.constant 0 : index
    %c80 = arith.constant 80 : index
    %301 = vector.load %arg10[%c0_197, %c80] : memref<12x1024xbf16, #tpu.memory_space<vmem>>, vector<12x256xbf16>
    %c12_198 = arith.constant 12 : index
    %c0_199 = arith.constant 0 : index
    %302 = vector.load %arg11[%c12_198, %c0_199] : memref<108x512xbf16, #tpu.memory_space<vmem>>, vector<12x256xbf16>
    tpu.vector_store %arg11[%c12_198, %c0_199], %301 {strides = array<i32>} : memref<108x512xbf16, #tpu.memory_space<vmem>>, vector<12x256xbf16>,
    %c0_200 = arith.constant 0 : index
    %c592 = arith.constant 592 : index
    %303 = vector.load %arg10[%c0_200, %c592] : memref<12x1024xbf16, #tpu.memory_space<vmem>>, vector<12x256xbf16>
    %c12_201 = arith.constant 12 : index
    %c256_202 = arith.constant 256 : index
    %304 = vector.load %arg11[%c12_201, %c256_202] : memref<108x512xbf16, #tpu.memory_space<vmem>>, vector<12x256xbf16>
    tpu.vector_store %arg11[%c12_201, %c256_202], %303 {strides = array<i32>} : memref<108x512xbf16, #tpu.memory_space<vmem>>, vector<12x256xbf16>,
    %c0_203 = arith.constant 0 : index
    %c83 = arith.constant 83 : index
    %305 = vector.load %arg10[%c0_203, %c83] : memref<12x1024xbf16, #tpu.memory_space<vmem>>, vector<12x256xbf16>
    %cst_204 = arith.constant 0.000000e+00 : f32
    %306 = arith.truncf %cst_204 : f32 to bf16
    %307 = vector.shape_cast %282 : vector<1x256xi1> to vector<1x256xi1>
    %308 = vector.broadcast %307 : vector<1x256xi1> to vector<12x256xi1>
    %309 = vector.broadcast %306 : bf16 to vector<12x256xbf16>
    %310 = arith.select %308, %305, %309 : vector<12x256xi1>, vector<12x256xbf16>
    %c24_205 = arith.constant 24 : index
    %c0_206 = arith.constant 0 : index
    %311 = vector.load %arg11[%c24_205, %c0_206] : memref<108x512xbf16, #tpu.memory_space<vmem>>, vector<12x256xbf16>
    tpu.vector_store %arg11[%c24_205, %c0_206], %310 {strides = array<i32>} : memref<108x512xbf16, #tpu.memory_space<vmem>>, vector<12x256xbf16>,
    %c0_207 = arith.constant 0 : index
    %c595 = arith.constant 595 : index
    %312 = vector.load %arg10[%c0_207, %c595] : memref<12x1024xbf16, #tpu.memory_space<vmem>>, vector<12x256xbf16>
    %cst_208 = arith.constant 0.000000e+00 : f32
    %313 = arith.truncf %cst_208 : f32 to bf16
    %314 = vector.shape_cast %282 : vector<1x256xi1> to vector<1x256xi1>
    %315 = vector.broadcast %314 : vector<1x256xi1> to vector<12x256xi1>
    %316 = vector.broadcast %313 : bf16 to vector<12x256xbf16>
    %317 = arith.select %315, %312, %316 : vector<12x256xi1>, vector<12x256xbf16>
    %c24_209 = arith.constant 24 : index
    %c256_210 = arith.constant 256 : index
    %318 = vector.load %arg11[%c24_209, %c256_210] : memref<108x512xbf16, #tpu.memory_space<vmem>>, vector<12x256xbf16>
    tpu.vector_store %arg11[%c24_209, %c256_210], %317 {strides = array<i32>} : memref<108x512xbf16, #tpu.memory_space<vmem>>, vector<12x256xbf16>,
    %c0_211 = arith.constant 0 : index
    %c125 = arith.constant 125 : index
    %319 = vector.load %arg10[%c0_211, %c125] : memref<12x1024xbf16, #tpu.memory_space<vmem>>, vector<12x256xbf16>
    %cst_212 = arith.constant 0.000000e+00 : f32
    %320 = arith.truncf %cst_212 : f32 to bf16
    %321 = vector.shape_cast %280 : vector<1x256xi1> to vector<1x256xi1>
    %322 = vector.broadcast %321 : vector<1x256xi1> to vector<12x256xi1>
    %323 = vector.broadcast %320 : bf16 to vector<12x256xbf16>
    %324 = arith.select %322, %319, %323 : vector<12x256xi1>, vector<12x256xbf16>
    %c36 = arith.constant 36 : index
    %c0_213 = arith.constant 0 : index
    %325 = vector.load %arg11[%c36, %c0_213] : memref<108x512xbf16, #tpu.memory_space<vmem>>, vector<12x256xbf16>
    tpu.vector_store %arg11[%c36, %c0_213], %324 {strides = array<i32>} : memref<108x512xbf16, #tpu.memory_space<vmem>>, vector<12x256xbf16>,
    %c0_214 = arith.constant 0 : index
    %c637 = arith.constant 637 : index
    %326 = vector.load %arg10[%c0_214, %c637] : memref<12x1024xbf16, #tpu.memory_space<vmem>>, vector<12x256xbf16>
    %cst_215 = arith.constant 0.000000e+00 : f32
    %327 = arith.truncf %cst_215 : f32 to bf16
    %328 = vector.shape_cast %280 : vector<1x256xi1> to vector<1x256xi1>
    %329 = vector.broadcast %328 : vector<1x256xi1> to vector<12x256xi1>
    %330 = vector.broadcast %327 : bf16 to vector<12x256xbf16>
    %331 = arith.select %329, %326, %330 : vector<12x256xi1>, vector<12x256xbf16>
    %c36_216 = arith.constant 36 : index
    %c256_217 = arith.constant 256 : index
    %332 = vector.load %arg11[%c36_216, %c256_217] : memref<108x512xbf16, #tpu.memory_space<vmem>>, vector<12x256xbf16>
    tpu.vector_store %arg11[%c36_216, %c256_217], %331 {strides = array<i32>} : memref<108x512xbf16, #tpu.memory_space<vmem>>, vector<12x256xbf16>,
    %c0_218 = arith.constant 0 : index
    %c128_219 = arith.constant 128 : index
    %333 = vector.load %arg10[%c0_218, %c128_219] : memref<12x1024xbf16, #tpu.memory_space<vmem>>, vector<12x256xbf16>
    %c48_220 = arith.constant 48 : index
    %c0_221 = arith.constant 0 : index
    %334 = vector.load %arg11[%c48_220, %c0_221] : memref<108x512xbf16, #tpu.memory_space<vmem>>, vector<12x256xbf16>
    tpu.vector_store %arg11[%c48_220, %c0_221], %333 {strides = array<i32>} : memref<108x512xbf16, #tpu.memory_space<vmem>>, vector<12x256xbf16>,
    %c0_222 = arith.constant 0 : index
    %c640_223 = arith.constant 640 : index
    %335 = vector.load %arg10[%c0_222, %c640_223] : memref<12x1024xbf16, #tpu.memory_space<vmem>>, vector<12x256xbf16>
    %c48_224 = arith.constant 48 : index
    %c256_225 = arith.constant 256 : index
    %336 = vector.load %arg11[%c48_224, %c256_225] : memref<108x512xbf16, #tpu.memory_space<vmem>>, vector<12x256xbf16>
    tpu.vector_store %arg11[%c48_224, %c256_225], %335 {strides = array<i32>} : memref<108x512xbf16, #tpu.memory_space<vmem>>, vector<12x256xbf16>,
    %c0_226 = arith.constant 0 : index
    %c131 = arith.constant 131 : index
    %337 = vector.load %arg10[%c0_226, %c131] : memref<12x1024xbf16, #tpu.memory_space<vmem>>, vector<12x256xbf16>
    %cst_227 = arith.constant 0.000000e+00 : f32
    %338 = arith.truncf %cst_227 : f32 to bf16
    %339 = vector.shape_cast %282 : vector<1x256xi1> to vector<1x256xi1>
    %340 = vector.broadcast %339 : vector<1x256xi1> to vector<12x256xi1>
    %341 = vector.broadcast %338 : bf16 to vector<12x256xbf16>
    %342 = arith.select %340, %337, %341 : vector<12x256xi1>, vector<12x256xbf16>
    %c60 = arith.constant 60 : index
    %c0_228 = arith.constant 0 : index
    %343 = vector.load %arg11[%c60, %c0_228] : memref<108x512xbf16, #tpu.memory_space<vmem>>, vector<12x256xbf16>
    tpu.vector_store %arg11[%c60, %c0_228], %342 {strides = array<i32>} : memref<108x512xbf16, #tpu.memory_space<vmem>>, vector<12x256xbf16>,
    %c0_229 = arith.constant 0 : index
    %c643 = arith.constant 643 : index
    %344 = vector.load %arg10[%c0_229, %c643] : memref<12x1024xbf16, #tpu.memory_space<vmem>>, vector<12x256xbf16>
    %cst_230 = arith.constant 0.000000e+00 : f32
    %345 = arith.truncf %cst_230 : f32 to bf16
    %346 = vector.shape_cast %282 : vector<1x256xi1> to vector<1x256xi1>
    %347 = vector.broadcast %346 : vector<1x256xi1> to vector<12x256xi1>
    %348 = vector.broadcast %345 : bf16 to vector<12x256xbf16>
    %349 = arith.select %347, %344, %348 : vector<12x256xi1>, vector<12x256xbf16>
    %c60_231 = arith.constant 60 : index
    %c256_232 = arith.constant 256 : index
    %350 = vector.load %arg11[%c60_231, %c256_232] : memref<108x512xbf16, #tpu.memory_space<vmem>>, vector<12x256xbf16>
    tpu.vector_store %arg11[%c60_231, %c256_232], %349 {strides = array<i32>} : memref<108x512xbf16, #tpu.memory_space<vmem>>, vector<12x256xbf16>,
    %c0_233 = arith.constant 0 : index
    %c173 = arith.constant 173 : index
    %351 = vector.load %arg10[%c0_233, %c173] : memref<12x1024xbf16, #tpu.memory_space<vmem>>, vector<12x256xbf16>
    %cst_234 = arith.constant 0.000000e+00 : f32
    %352 = arith.truncf %cst_234 : f32 to bf16
    %353 = vector.shape_cast %280 : vector<1x256xi1> to vector<1x256xi1>
    %354 = vector.broadcast %353 : vector<1x256xi1> to vector<12x256xi1>
    %355 = vector.broadcast %352 : bf16 to vector<12x256xbf16>
    %356 = arith.select %354, %351, %355 : vector<12x256xi1>, vector<12x256xbf16>
    %c72 = arith.constant 72 : index
    %c0_235 = arith.constant 0 : index
    %357 = vector.load %arg11[%c72, %c0_235] : memref<108x512xbf16, #tpu.memory_space<vmem>>, vector<12x256xbf16>
    tpu.vector_store %arg11[%c72, %c0_235], %356 {strides = array<i32>} : memref<108x512xbf16, #tpu.memory_space<vmem>>, vector<12x256xbf16>,
    %c0_236 = arith.constant 0 : index
    %c685 = arith.constant 685 : index
    %358 = vector.load %arg10[%c0_236, %c685] : memref<12x1024xbf16, #tpu.memory_space<vmem>>, vector<12x256xbf16>
    %cst_237 = arith.constant 0.000000e+00 : f32
    %359 = arith.truncf %cst_237 : f32 to bf16
    %360 = vector.shape_cast %280 : vector<1x256xi1> to vector<1x256xi1>
    %361 = vector.broadcast %360 : vector<1x256xi1> to vector<12x256xi1>
    %362 = vector.broadcast %359 : bf16 to vector<12x256xbf16>
    %363 = arith.select %361, %358, %362 : vector<12x256xi1>, vector<12x256xbf16>
    %c72_238 = arith.constant 72 : index
    %c256_239 = arith.constant 256 : index
    %364 = vector.load %arg11[%c72_238, %c256_239] : memref<108x512xbf16, #tpu.memory_space<vmem>>, vector<12x256xbf16>
    tpu.vector_store %arg11[%c72_238, %c256_239], %363 {strides = array<i32>} : memref<108x512xbf16, #tpu.memory_space<vmem>>, vector<12x256xbf16>,
    %c0_240 = arith.constant 0 : index
    %c176 = arith.constant 176 : index
    %365 = vector.load %arg10[%c0_240, %c176] : memref<12x1024xbf16, #tpu.memory_space<vmem>>, vector<12x256xbf16>
    %c84 = arith.constant 84 : index
    %c0_241 = arith.constant 0 : index
    %366 = vector.load %arg11[%c84, %c0_241] : memref<108x512xbf16, #tpu.memory_space<vmem>>, vector<12x256xbf16>
    tpu.vector_store %arg11[%c84, %c0_241], %365 {strides = array<i32>} : memref<108x512xbf16, #tpu.memory_space<vmem>>, vector<12x256xbf16>,
    %c0_242 = arith.constant 0 : index
    %c688 = arith.constant 688 : index
    %367 = vector.load %arg10[%c0_242, %c688] : memref<12x1024xbf16, #tpu.memory_space<vmem>>, vector<12x256xbf16>
    %c84_243 = arith.constant 84 : index
    %c256_244 = arith.constant 256 : index
    %368 = vector.load %arg11[%c84_243, %c256_244] : memref<108x512xbf16, #tpu.memory_space<vmem>>, vector<12x256xbf16>
    tpu.vector_store %arg11[%c84_243, %c256_244], %367 {strides = array<i32>} : memref<108x512xbf16, #tpu.memory_space<vmem>>, vector<12x256xbf16>,
    %c0_245 = arith.constant 0 : index
    %c179 = arith.constant 179 : index
    %369 = vector.load %arg10[%c0_245, %c179] : memref<12x1024xbf16, #tpu.memory_space<vmem>>, vector<12x256xbf16>
    %cst_246 = arith.constant 0.000000e+00 : f32
    %370 = arith.truncf %cst_246 : f32 to bf16
    %371 = vector.shape_cast %282 : vector<1x256xi1> to vector<1x256xi1>
    %372 = vector.broadcast %371 : vector<1x256xi1> to vector<12x256xi1>
    %373 = vector.broadcast %370 : bf16 to vector<12x256xbf16>
    %374 = arith.select %372, %369, %373 : vector<12x256xi1>, vector<12x256xbf16>
    %c96_247 = arith.constant 96 : index
    %c0_248 = arith.constant 0 : index
    %375 = vector.load %arg11[%c96_247, %c0_248] : memref<108x512xbf16, #tpu.memory_space<vmem>>, vector<12x256xbf16>
    tpu.vector_store %arg11[%c96_247, %c0_248], %374 {strides = array<i32>} : memref<108x512xbf16, #tpu.memory_space<vmem>>, vector<12x256xbf16>,
    %c0_249 = arith.constant 0 : index
    %c691 = arith.constant 691 : index
    %376 = vector.load %arg10[%c0_249, %c691] : memref<12x1024xbf16, #tpu.memory_space<vmem>>, vector<12x256xbf16>
    %cst_250 = arith.constant 0.000000e+00 : f32
    %377 = arith.truncf %cst_250 : f32 to bf16
    %378 = vector.shape_cast %282 : vector<1x256xi1> to vector<1x256xi1>
    %379 = vector.broadcast %378 : vector<1x256xi1> to vector<12x256xi1>
    %380 = vector.broadcast %377 : bf16 to vector<12x256xbf16>
    %381 = arith.select %379, %376, %380 : vector<12x256xi1>, vector<12x256xbf16>
    %c96_251 = arith.constant 96 : index
    %c256_252 = arith.constant 256 : index
    %382 = vector.load %arg11[%c96_251, %c256_252] : memref<108x512xbf16, #tpu.memory_space<vmem>>, vector<12x256xbf16>
    tpu.vector_store %arg11[%c96_251, %c256_252], %381 {strides = array<i32>} : memref<108x512xbf16, #tpu.memory_space<vmem>>, vector<12x256xbf16>,
    %c2_253 = arith.constant 2 : index
    %c0_254 = arith.constant 0 : index
    %c0_255 = arith.constant 0 : index
    %383 = vector.load %arg4[%c2_253, %c0_254, %c0_255] : memref<3x4x108xbf16, #tpu.memory_space<vmem>>, vector<1x4x108xbf16>
    %384 = vector.shape_cast %383 : vector<1x4x108xbf16> to vector<4x108xbf16>
    %c0_256 = arith.constant 0 : index
    %c0_257 = arith.constant 0 : index
    %385 = vector.load %arg11[%c0_256, %c0_257] : memref<108x512xbf16, #tpu.memory_space<vmem>>, vector<108x512xbf16>
    %cst_258 = arith.constant dense<0.000000e+00> : vector<4x512xf32>
    %386 = tpu.matmul %384, %385, %cst_258 {dimension_numbers = #tpu.dot_dimension_numbers<[1], [0], [0], [1], [0, 0, 1, 1], [], []>} : vector<4x108xbf16>, vector<108x512xbf16>, vector<4x512xf32> -> vector<4x512xf32>
    %c12_259 = arith.constant 12 : index
    %c0_260 = arith.constant 0 : index
    %387 = vector.load %arg9[%c12_259, %c0_260] : memref<16x512xf32, #tpu.memory_space<vmem>>, vector<4x512xf32>
    tpu.vector_store %arg9[%c12_259, %c0_260], %386 {strides = array<i32>} : memref<16x512xf32, #tpu.memory_space<vmem>>, vector<4x512xf32>,
    %c0_261 = arith.constant 0 : index
    %c0_262 = arith.constant 0 : index
    %388 = vector.load %arg9[%c0_261, %c0_262] : memref<16x512xf32, #tpu.memory_space<vmem>>, vector<16x512xf32>
    %c0_263 = arith.constant 0 : index
    %c0_264 = arith.constant 0 : index
    %389 = vector.load %arg5[%c0_263, %c0_264] : memref<16x1xf32, #tpu.memory_space<vmem>>, vector<16x1xf32>
    %390 = vector.broadcast %389 : vector<16x1xf32> to vector<16x512xf32>
    %391 = arith.mulf %388, %390 : vector<16x512xf32>
    %c0_265 = arith.constant 0 : index
    %c0_266 = arith.constant 0 : index
    %392 = vector.load %arg6[%c0_265, %c0_266] : memref<16x1xf32, #tpu.memory_space<vmem>>, vector<16x1xf32>
    %393 = vector.broadcast %392 : vector<16x1xf32> to vector<16x512xf32>
    %394 = arith.addf %391, %393 : vector<16x512xf32>
    %cst_267 = arith.constant 0.000000e+00 : f32
    %395 = vector.broadcast %cst_267 : f32 to vector<16x512xf32>
    %396 = arith.maximumf %394, %395 : vector<16x512xf32>
    %c0_268 = arith.constant 0 : index
    %c0_269 = arith.constant 0 : index
    %397 = vector.load %arg7[%c0_268, %c0_269] : memref<8x16xbf16, #tpu.memory_space<vmem>>, vector<8x16xbf16>
    %398 = arith.truncf %396 : vector<16x512xf32> to vector<16x512xbf16>
    %cst_270 = arith.constant dense<0.000000e+00> : vector<8x512xf32>
    %399 = tpu.matmul %397, %398, %cst_270 {dimension_numbers = #tpu.dot_dimension_numbers<[1], [0], [0], [1], [0, 0, 1, 1], [], []>} : vector<8x16xbf16>, vector<16x512xbf16>, vector<8x512xf32> -> vector<8x512xf32>
    %cst_271 = arith.constant 0.000000e+00 : f32
    %400 = vector.broadcast %cst_271 : f32 to vector<8x512xf32>
    %401 = arith.maximumf %399, %400 : vector<8x512xf32>
    %402 = vector.extract_strided_slice %401 {offsets = [0, 0], sizes = [8, 256], strides = [1, 1]} : vector<8x512xf32> to vector<8x256xf32>
    %c0_272 = arith.constant 0 : index
    %c0_273 = arith.constant 0 : index
    %c0_274 = arith.constant 0 : index
    %403 = vector.load %arg8[%c0_272, %c0_273, %c0_274] : memref<2x8x256xf32, #tpu.memory_space<vmem>>, vector<1x8x256xf32>
    %404 = vector.shape_cast %403 : vector<1x8x256xf32> to vector<8x256xf32>
    %405 = vector.shape_cast %402 : vector<8x256xf32> to vector<1x8x256xf32>
    tpu.vector_store %arg8[%c0_272, %c0_273, %c0_274], %405 {strides = array<i32>} : memref<2x8x256xf32, #tpu.memory_space<vmem>>, vector<1x8x256xf32>,
    %406 = vector.extract_strided_slice %401 {offsets = [0, 256], sizes = [8, 256], strides = [1, 1]} : vector<8x512xf32> to vector<8x256xf32>
    %c1_275 = arith.constant 1 : index
    %c0_276 = arith.constant 0 : index
    %c0_277 = arith.constant 0 : index
    %407 = vector.load %arg8[%c1_275, %c0_276, %c0_277] : memref<2x8x256xf32, #tpu.memory_space<vmem>>, vector<1x8x256xf32>
    %408 = vector.shape_cast %407 : vector<1x8x256xf32> to vector<8x256xf32>
    %409 = vector.shape_cast %406 : vector<8x256xf32> to vector<1x8x256xf32>
    tpu.vector_store %arg8[%c1_275, %c0_276, %c0_277], %409 {strides = array<i32>} : memref<2x8x256xf32, #tpu.memory_space<vmem>>, vector<1x8x256xf32>,
    return
  }
  func.func @transform_0(%arg0: i32) -> (i32, i32, i32) {
    %c0_i32 = arith.constant 0 : i32
    %c0_i32_0 = arith.constant 0 : i32
    %c0_i32_1 = arith.constant 0 : i32
    return %arg0, %c0_i32, %c0_i32_0 : i32, i32, i32
  }
  func.func @transform_1(%arg0: i32) -> (i32, i32, i32) {
    %c0_i32 = arith.constant 0 : i32
    %c0_i32_0 = arith.constant 0 : i32
    %c0_i32_1 = arith.constant 0 : i32
    %c0_i32_2 = arith.constant 0 : i32
    return %c0_i32, %c0_i32_0, %c0_i32_1 : i32, i32, i32
  }
  func.func @transform_2(%arg0: i32) -> (i32, i32, i32) {
    %c0_i32 = arith.constant 0 : i32
    %c0_i32_0 = arith.constant 0 : i32
    %c0_i32_1 = arith.constant 0 : i32
    %c0_i32_2 = arith.constant 0 : i32
    return %c0_i32, %c0_i32_0, %c0_i32_1 : i32, i32, i32
  }
  func.func @transform_3(%arg0: i32) -> (i32, i32, i32) {
    %c0_i32 = arith.constant 0 : i32
    %c0_i32_0 = arith.constant 0 : i32
    %c0_i32_1 = arith.constant 0 : i32
    %c0_i32_2 = arith.constant 0 : i32
    return %c0_i32, %c0_i32_0, %c0_i32_1 : i32, i32, i32
  }
  func.func @transform_4(%arg0: i32) -> (i32, i32) {
    %c0_i32 = arith.constant 0 : i32
    %c0_i32_0 = arith.constant 0 : i32
    %c0_i32_1 = arith.constant 0 : i32
    return %c0_i32, %c0_i32_0 : i32, i32
  }
  func.func @transform_5(%arg0: i32) -> (i32, i32) {
    %c0_i32 = arith.constant 0 : i32
    %c0_i32_0 = arith.constant 0 : i32
    %c0_i32_1 = arith.constant 0 : i32
    return %c0_i32, %c0_i32_0 : i32, i32
  }
  func.func @transform_6(%arg0: i32) -> (i32, i32) {
    %c0_i32 = arith.constant 0 : i32
    %c0_i32_0 = arith.constant 0 : i32
    %c0_i32_1 = arith.constant 0 : i32
    return %c0_i32, %c0_i32_0 : i32, i32
  }
  func.func @transform_7(%arg0: i32) -> (i32, i32, i32) {
    %c0_i32 = arith.constant 0 : i32
    %c0_i32_0 = arith.constant 0 : i32
    %c0_i32_1 = arith.constant 0 : i32
    return %arg0, %c0_i32, %c0_i32_0 : i32, i32, i32
  }
}

</mosaic_0001>

<llo_original>
// kernel: dense_ddcb_forward.1
$region0: #{dense_ddcb_forward.1}
  #allocation0 [shape = 'u32[]', space=smem, size = 0x4, offset = 0x4, fixed_abs, tag = 'smem constant byte address 0x4 - core index']
  #allocation1 [shape = 'u32[72,128]{1,0:T(1,128)}', space=vmem, size = 0x9000, scoped, tag = 'internal scratch']
  #allocation2 [shape = 'f32[16,512]{1,0:T(8,128)}', space=vmem, size = 0x8000, scoped, tag = 'scratch operand']
  #allocation3 [shape = 'bf16[12,1024]{1,0:T(8,128)(2,1)}', space=vmem, size = 0x8000, scoped, tag = 'scratch operand']
  #allocation4 [shape = 'bf16[108,512]{1,0:T(8,128)(2,1)}', space=vmem, size = 0x1c000, scoped, tag = 'scratch operand']
  %s0 = inlined_call_operand.vmem [shape: f32[8,4,256], index: 0, kind: input, shape index: {}]
  %s1 = inlined_call_operand.vmem [shape: f32[3,12,1], index: 1, kind: input, shape index: {}]
  %s2 = inlined_call_operand.vmem [shape: f32[3,12,1], index: 2, kind: input, shape index: {}]
  %s3 = inlined_call_operand.vmem [shape: bf16[3,4,108], index: 3, kind: input, shape index: {}]
  %s4 = inlined_call_operand.vmem [shape: f32[16,1], index: 4, kind: input, shape index: {}]
  %s5 = inlined_call_operand.vmem [shape: f32[16,1], index: 5, kind: input, shape index: {}]
  %s6 = inlined_call_operand.vmem [shape: bf16[8,16], index: 6, kind: input, shape index: {}]
  %s7 = inlined_call_operand.vmem [shape: f32[8,8,256], index: 7, kind: output, shape index: {}]
  %s8 = sld [smem:[#allocation0]]
  $region61: #{dense_ddcb_forward.1} parent=0
    _
  %s10 = ssub.s32 1, %s8
  %s11 = scalar_select 0, %s10, %s8
  loop: start=0, step=1, limit=6
  $region2: #{dense_ddcb_forward.1} parent=0 // loop_pre_header
    _
  $region3: #{dense_ddcb_forward.1} parent=0 // loop_header
    %s13 = sphi 0, %s17
    %p14 = scmp.ge.s32.totalorder %s13, 6
    %s23 = sphi 0, %s25
    %s26 = sphi 0, %s23
    %s27 = sphi 0, %s26
    %s43 = sphi 0, %s27
    %s47 = sphi 0, %s47
    %s49 = sphi 0, %s47
    %s50 = sphi 0, %s49
    %s64 = sphi 0, %s50
    %s68 = sphi 0, %s68
    %s70 = sphi 0, %s68
    %s71 = sphi 0, %s70
    %s85 = sphi 0, %s71
    %s89 = sphi 0, %s89
    %s91 = sphi 0, %s89
    %s92 = sphi 0, %s91
    %s106 = sphi 0, %s92
    %s110 = sphi 0, %s110
    %s112 = sphi 0, %s110
    %s113 = sphi 0, %s112
    %s127 = sphi 0, %s113
    %s131 = sphi 0, %s131
    %s133 = sphi 0, %s131
    %s134 = sphi 0, %s133
    %s148 = sphi 0, %s134
    %s152 = sphi 0, %s152
    %s154 = sphi 0, %s152
    %s155 = sphi 0, %s154
    %s169 = sphi 0, %s155
    %s175 = sphi 0, %s177
    %s178 = sphi 0, %s175
    %s179 = sphi 0, %s178
    %s195 = sphi 0, %s179
  $region4: #{dense_ddcb_forward.1} parent=0 // loop_header_branch
    %16 = sbr.rel (%p14) target = $region8
  $region5: #{dense_ddcb_forward.1} parent=0 // loop_body
    %s18 = ssub.s32 %s13, 1
    %s19 = ssub.s32 %s13, 2
    %s20 = sadd.s32 %s13, 1
    %s21 = ssub.s32 %s13, %s20
    %p22 = scmp.eq.s32.totalorder %s21, 0
    %s24 = sadd.s32 %s23, 1
    %s25 = scalar_select %p22, %s23, %s24
    %p28 = pneg %p22
    %p29 = scmp.eq.s32.totalorder %s13, 3
    %p30 = por %p28, %p29
    %p31 = scmp.ne.s32.totalorder %s23, %s26
    %p32 = scmp.eq.s32.totalorder %s13, 0
    %p33 = por %p31, %p32
    %p34 = scmp.ne.s32.totalorder %s23, %s26
    %p35 = scmp.eq.s32.totalorder %s18, 3
    %p36 = por %p34, %p35
    %p37 = scmp.ne.s32.totalorder %s26, %s27
    %p38 = scmp.eq.s32.totalorder %s18, 0
    %p39 = por %p37, %p38
    %p40 = scmp.ne.s32.totalorder %s26, %s27
    %p41 = scmp.eq.s32.totalorder %s19, 3
    %p42 = por %p40, %p41
    %p44 = scmp.ne.s32.totalorder %s27, %s43
    %p45 = scmp.eq.s32.totalorder %s19, 0
    %p46 = por %p44, %p45
    %s48 = sadd.s32 %s47, 1
    %p51 = scmp.eq.s32.totalorder %s13, 3
    %p52 = scmp.ne.s32.totalorder %s47, %s49
    %p53 = scmp.eq.s32.totalorder %s13, 0
    %p54 = por %p52, %p53
    %p55 = scmp.ne.s32.totalorder %s47, %s49
    %p56 = scmp.eq.s32.totalorder %s18, 3
    %p57 = por %p55, %p56
    %p58 = scmp.ne.s32.totalorder %s49, %s50
    %p59 = scmp.eq.s32.totalorder %s18, 0
    %p60 = por %p58, %p59
    %p61 = scmp.ne.s32.totalorder %s49, %s50
    %p62 = scmp.eq.s32.totalorder %s19, 3
    %p63 = por %p61, %p62
    %p65 = scmp.ne.s32.totalorder %s50, %s64
    %p66 = scmp.eq.s32.totalorder %s19, 0
    %p67 = por %p65, %p66
    %s69 = sadd.s32 %s68, 1
    %p72 = scmp.eq.s32.totalorder %s13, 3
    %p73 = scmp.ne.s32.totalorder %s68, %s70
    %p74 = scmp.eq.s32.totalorder %s13, 0
    %p75 = por %p73, %p74
    %p76 = scmp.ne.s32.totalorder %s68, %s70
    %p77 = scmp.eq.s32.totalorder %s18, 3
    %p78 = por %p76, %p77
    %p79 = scmp.ne.s32.totalorder %s70, %s71
    %p80 = scmp.eq.s32.totalorder %s18, 0
    %p81 = por %p79, %p80
    %p82 = scmp.ne.s32.totalorder %s70, %s71
    %p83 = scmp.eq.s32.totalorder %s19, 3
    %p84 = por %p82, %p83
    %p86 = scmp.ne.s32.totalorder %s71, %s85
    %p87 = scmp.eq.s32.totalorder %s19, 0
    %p88 = por %p86, %p87
    %s90 = sadd.s32 %s89, 1
    %p93 = scmp.eq.s32.totalorder %s13, 3
    %p94 = scmp.ne.s32.totalorder %s89, %s91
    %p95 = scmp.eq.s32.totalorder %s13, 0
    %p96 = por %p94, %p95
    %p97 = scmp.ne.s32.totalorder %s89, %s91
    %p98 = scmp.eq.s32.totalorder %s18, 3
    %p99 = por %p97, %p98
    %p100 = scmp.ne.s32.totalorder %s91, %s92
    %p101 = scmp.eq.s32.totalorder %s18, 0
    %p102 = por %p100, %p101
    %p103 = scmp.ne.s32.totalorder %s91, %s92
    %p104 = scmp.eq.s32.totalorder %s19, 3
    %p105 = por %p103, %p104
    %p107 = scmp.ne.s32.totalorder %s92, %s106
    %p108 = scmp.eq.s32.totalorder %s19, 0
    %p109 = por %p107, %p108
    %s111 = sadd.s32 %s110, 1
    %p114 = scmp.eq.s32.totalorder %s13, 3
    %p115 = scmp.ne.s32.totalorder %s110, %s112
    %p116 = scmp.eq.s32.totalorder %s13, 0
    %p117 = por %p115, %p116
    %p118 = scmp.ne.s32.totalorder %s110, %s112
    %p119 = scmp.eq.s32.totalorder %s18, 3
    %p120 = por %p118, %p119
    %p121 = scmp.ne.s32.totalorder %s112, %s113
    %p122 = scmp.eq.s32.totalorder %s18, 0
    %p123 = por %p121, %p122
    %p124 = scmp.ne.s32.totalorder %s112, %s113
    %p125 = scmp.eq.s32.totalorder %s19, 3
    %p126 = por %p124, %p125
    %p128 = scmp.ne.s32.totalorder %s113, %s127
    %p129 = scmp.eq.s32.totalorder %s19, 0
    %p130 = por %p128, %p129
    %s132 = sadd.s32 %s131, 1
    %p135 = scmp.eq.s32.totalorder %s13, 3
    %p136 = scmp.ne.s32.totalorder %s131, %s133
    %p137 = scmp.eq.s32.totalorder %s13, 0
    %p138 = por %p136, %p137
    %p139 = scmp.ne.s32.totalorder %s131, %s133
    %p140 = scmp.eq.s32.totalorder %s18, 3
    %p141 = por %p139, %p140
    %p142 = scmp.ne.s32.totalorder %s133, %s134
    %p143 = scmp.eq.s32.totalorder %s18, 0
    %p144 = por %p142, %p143
    %p145 = scmp.ne.s32.totalorder %s133, %s134
    %p146 = scmp.eq.s32.totalorder %s19, 3
    %p147 = por %p145, %p146
    %p149 = scmp.ne.s32.totalorder %s134, %s148
    %p150 = scmp.eq.s32.totalorder %s19, 0
    %p151 = por %p149, %p150
    %s153 = sadd.s32 %s152, 1
    %p156 = scmp.eq.s32.totalorder %s13, 3
    %p157 = scmp.ne.s32.totalorder %s152, %s154
    %p158 = scmp.eq.s32.totalorder %s13, 0
    %p159 = por %p157, %p158
    %p160 = scmp.ne.s32.totalorder %s152, %s154
    %p161 = scmp.eq.s32.totalorder %s18, 3
    %p162 = por %p160, %p161
    %p163 = scmp.ne.s32.totalorder %s154, %s155
    %p164 = scmp.eq.s32.totalorder %s18, 0
    %p165 = por %p163, %p164
    %p166 = scmp.ne.s32.totalorder %s154, %s155
    %p167 = scmp.eq.s32.totalorder %s19, 3
    %p168 = por %p166, %p167
    %p170 = scmp.ne.s32.totalorder %s155, %s169
    %p171 = scmp.eq.s32.totalorder %s19, 0
    %p172 = por %p170, %p171
    %s173 = ssub.s32 %s13, %s20
    %p174 = scmp.eq.s32.totalorder %s173, 0
    %s176 = sadd.s32 %s175, 1
    %s177 = scalar_select %p174, %s175, %s176
    %p180 = pneg %p174
    %p181 = scmp.eq.s32.totalorder %s13, 3
    %p182 = por %p180, %p181
    %p183 = scmp.ne.s32.totalorder %s175, %s178
    %p184 = scmp.eq.s32.totalorder %s13, 0
    %p185 = por %p183, %p184
    %p186 = scmp.ne.s32.totalorder %s175, %s178
    %p187 = scmp.eq.s32.totalorder %s18, 3
    %p188 = por %p186, %p187
    %p189 = scmp.ne.s32.totalorder %s178, %s179
    %p190 = scmp.eq.s32.totalorder %s18, 0
    %p191 = por %p189, %p190
    %p192 = scmp.ne.s32.totalorder %s178, %s179
    %p193 = scmp.eq.s32.totalorder %s19, 3
    %p194 = por %p192, %p193
    %p196 = scmp.ne.s32.totalorder %s179, %s195
    %p197 = scmp.eq.s32.totalorder %s19, 0
    %p198 = por %p196, %p197
    %p199 = scmp.le.s32.totalorder 1, %s13
    %p200 = scmp.lt.s32.totalorder %s13, 5
    %p201 = pnand %p199, %p200
    %p202 = pneg %p201
    // Predicated region
    $region9: #{dense_ddcb_forward.1} parent=5 // pred_check
      _
    $region10: #{dense_ddcb_forward.1} parent=5 // pred_check_branch
      %204 = sbr.rel (%p201) target = $region12
    $region11: #{dense_ddcb_forward.1} parent=5 // pred_region
      %s205 = ssub.s32 %s13, 1
      // Predicated region
      $region13: #{dense_ddcb_forward.1} parent=11 // pred_check
        %p206 = pneg %p60
      $region14: #{dense_ddcb_forward.1} parent=11 // pred_check_branch
        %208 = sbr.rel (%p206) target = $region16
      $region15: #{dense_ddcb_forward.1} parent=11 // pred_region
        _
      $region16: #{dense_ddcb_forward.1} parent=11 // pred_fallthru
        _
      // Predicated region
      $region17: #{dense_ddcb_forward.1} parent=11 // pred_check
        %p209 = pneg %p81
      $region18: #{dense_ddcb_forward.1} parent=11 // pred_check_branch
        %211 = sbr.rel (%p209) target = $region20
      $region19: #{dense_ddcb_forward.1} parent=11 // pred_region
        _
      $region20: #{dense_ddcb_forward.1} parent=11 // pred_fallthru
        _
      // Predicated region
      $region21: #{dense_ddcb_forward.1} parent=11 // pred_check
        %p212 = pneg %p102
      $region22: #{dense_ddcb_forward.1} parent=11 // pred_check_branch
        %214 = sbr.rel (%p212) target = $region24
      $region23: #{dense_ddcb_forward.1} parent=11 // pred_region
        _
      $region24: #{dense_ddcb_forward.1} parent=11 // pred_fallthru
        _
      // Predicated region
      $region25: #{dense_ddcb_forward.1} parent=11 // pred_check
        %p215 = pneg %p123
      $region26: #{dense_ddcb_forward.1} parent=11 // pred_check_branch
        %217 = sbr.rel (%p215) target = $region28
      $region27: #{dense_ddcb_forward.1} parent=11 // pred_region
        _
      $region28: #{dense_ddcb_forward.1} parent=11 // pred_fallthru
        _
      // Predicated region
      $region29: #{dense_ddcb_forward.1} parent=11 // pred_check
        %p218 = pneg %p144
      $region30: #{dense_ddcb_forward.1} parent=11 // pred_check_branch
        %220 = sbr.rel (%p218) target = $region32
      $region31: #{dense_ddcb_forward.1} parent=11 // pred_region
        _
      $region32: #{dense_ddcb_forward.1} parent=11 // pred_fallthru
        _
      // Predicated region
      $region33: #{dense_ddcb_forward.1} parent=11 // pred_check
        %p221 = pneg %p165
      $region34: #{dense_ddcb_forward.1} parent=11 // pred_check_branch
        %223 = sbr.rel (%p221) target = $region36
      $region35: #{dense_ddcb_forward.1} parent=11 // pred_region
        _
      $region36: #{dense_ddcb_forward.1} parent=11 // pred_fallthru
        _
    $region12: #{dense_ddcb_forward.1} parent=5 // pred_fallthru
      _
    %p224 = scmp.lt.s32.totalorder %s13, 4
    // Predicated region
    $region37: #{dense_ddcb_forward.1} parent=5 // pred_check
      %p225 = pneg %p224
    $region38: #{dense_ddcb_forward.1} parent=5 // pred_check_branch
      %227 = sbr.rel (%p225) target = $region40
    $region39: #{dense_ddcb_forward.1} parent=5 // pred_region
      // Predicated region
      $region41: #{dense_ddcb_forward.1} parent=39 // pred_check
        %p228 = pneg %p33
      $region42: #{dense_ddcb_forward.1} parent=39 // pred_check_branch
        %230 = sbr.rel (%p228) target = $region44
      $region43: #{dense_ddcb_forward.1} parent=39 // pred_region
        %s231 = smul.u32 2, %s13
        %p232 = scmp.lt.s32.totalorder %s231, 7
        %s233 = scalar_select %p232, %s231, 7
        %s234 = smul.addr %s233, 2
        %s235 = smul.addr %s234, 4
        %s236 = scalar_lea.vmem %s0, %s235
        %s237 = smul.u32 2, %s13
      $region44: #{dense_ddcb_forward.1} parent=39 // pred_fallthru
        _
    $region40: #{dense_ddcb_forward.1} parent=5 // pred_fallthru
      _
    %p238 = scmp.le.s32.totalorder 1, %s13
    %p239 = scmp.lt.s32.totalorder %s13, 5
    %p240 = pnand %p238, %p239
    %p241 = pneg %p240
    // Predicated region
    $region45: #{dense_ddcb_forward.1} parent=5 // pred_check
      _
    $region46: #{dense_ddcb_forward.1} parent=5 // pred_check_branch
      %243 = sbr.rel (%p240) target = $region48
    $region47: #{dense_ddcb_forward.1} parent=5 // pred_region
      %s244 = ssub.s32 %s13, 1
      %s245 = smul.u32 2, %s18
      %p246 = scmp.lt.s32.totalorder %s245, 7
      %s247 = scalar_select %p246, %s245, 7
      %s248 = smul.addr %s247, 2
      %s249 = smul.addr %s248, 4
      %s250 = scalar_lea.vmem %s0, %s249
      %p251 = pneg %p39
      %p252 = pneg %p36
      %p253 = pneg %p60
      %p254 = pneg %p57
      %p255 = pneg %p81
      %p256 = pneg %p78
      %p257 = pneg %p102
      %p258 = pneg %p99
      %p259 = pneg %p123
      %p260 = pneg %p120
      %p261 = pneg %p144
      %p262 = pneg %p141
      %p263 = pneg %p165
      %p264 = pneg %p162
      %p265 = pneg %p191
      %p266 = pneg %p188
      %s267 = smul.u32 2, %s18
      %p268 = scmp.lt.s32.totalorder %s267, 7
      %s269 = scalar_select %p268, %s267, 7
      %s270 = smul.addr %s269, 2
      %s271 = smul.addr %s270, 8
      %s272 = scalar_lea.vmem %s7, %s271
      %s273 = smul.u32 2, %s18
      %p274 = scmp.lt.s32.totalorder %s273, 7
      %s275 = scalar_select %p274, %s273, 7
      %s276 = smul.addr %s275, 2
      %s277 = smul.addr %s276, 4
      %s278 = scalar_lea.vmem %s0, %s277
      %s279 = smul.u32 2, %s18
      %s280 = smul.u32 2, %s18
      %p281 = scmp.lt.s32.totalorder %s280, 7
      %s282 = scalar_select %p281, %s280, 7
      %s283 = smul.addr %s282, 2
      %s284 = smul.addr %s283, 8
      %s285 = scalar_lea.vmem %s7, %s284
      %s286 = smul.u32 2, %s18
      %290 = vst [vmem:[#allocation3] sm:$0xff] 0
      %291 = vst [vmem:[#allocation3 + $0x8] sm:$0xff] 0
      %292 = vst [vmem:[#allocation3 + $0x10] sm:$0xff] 0
      %293 = vst [vmem:[#allocation3 + $0x18] sm:$0xff] 0
      %294 = vst [vmem:[#allocation3 + $0x20] sm:$0x33] 0
      %295 = vst [vmem:[#allocation3 + $0x28] sm:$0x33] 0
      %296 = vst [vmem:[#allocation3 + $0x30] sm:$0x33] 0
      %297 = vst [vmem:[#allocation3 + $0x38] sm:$0x33] 0
      %v298 = vld [vmem:[%s278] sm:$0xff]
      %300 = vst [vmem:[#allocation1] ss:$2 sm:$0xff] %v298
      %v301 = vld.sshfl [vmem:[#allocation1] sm:$0xff pattern:$0x75316420]
      %v302 = vld.sshfl [vmem:[#allocation1 + $0x8] sm:$0xff pattern:$0x75316420]
      %305 = vst [vmem:[#allocation2] sm:$0xf] %v301
      %306 = vst [vmem:[#allocation2 + $0x8] sm:$0xf] %v302
      %s307 = scalar_lea.vmem %s278, 8
      %v308 = vld [vmem:[%s307] sm:$0xff]
      %310 = vst [vmem:[#allocation1] ss:$2 sm:$0xff] %v308
      %v311 = vld.sshfl [vmem:[#allocation1] sm:$0xff pattern:$0x75316420]
      %v312 = vld.sshfl [vmem:[#allocation1 + $0x8] sm:$0xff pattern:$0x75316420]
      %315 = vst [vmem:[#allocation2 + $0x10] sm:$0xf] %v311
      %316 = vst [vmem:[#allocation2 + $0x18] sm:$0xf] %v312
      %v317 = vlaneseq
      %v318 = vand.u32 %v317, 127
      %v319 = vadd.s32 %v318, 128
      %vm320 = vcmp.lt.s32.totalorder %v318, 0
      %v321 = vsub.s32 0, %v318
      %v322 = vsel %vm320, %v321, %v318
      %v323 = vshrl.u32 %v322, 4
      %v324 = vand.u32 %v322, 15
      %v325 = vsub.s32 0, %v324
      %v326 = vsel %vm320, %v325, %v324
      %vm327 = vcmp.lt.s32.totalorder %v319, 0
      %v328 = vsub.s32 0, %v319
      %v329 = vsel %vm327, %v328, %v319
      %v330 = vshrl.u32 %v329, 4
      %v331 = vand.u32 %v329, 15
      %v332 = vsub.s32 0, %v331
      %v333 = vsel %vm327, %v332, %v331
      %vm334 = vcmp.ne.s32.totalorder %v326, 0
      %vm335 = vcmp.ne.s32.totalorder %v333, 0
      %vm336 = vcmp.lt.s32.totalorder %v326, 0
      %vm337 = vcmp.lt.s32.totalorder %v333, 0
      %vm338 = vmand %vm336, %vm334
      %vm339 = vmand %vm337, %vm335
      %v340 = vadd.s32 %v326, 16
      %v341 = vadd.s32 %v333, 16
      %v342 = vsel %vm338, %v340, %v326
      %v343 = vsel %vm339, %v341, %v333
      %v344 = vld [vmem:[%s1] sm:$0xf]
      %v345 = vld [vmem:[%s2] sm:$0xf]
      %v346 = vld [vmem:[#allocation2] sm:$0xf]
      %v347 = vld [vmem:[#allocation2 + $0x8] sm:$0xf]
      %v348 = vld [vmem:[#allocation2 + $0x10] sm:$0xf]
      %v349 = vld [vmem:[#allocation2 + $0x18] sm:$0xf]
      %351 = vset.pattern.permute.xlu0 0
      %352 = vperm.xlu0 %351, %v344
      %v353 = vpop.permute.xlu0 %352
      %v355 = vmul.f32 %v346, %v353
      %v356 = vmul.f32 %v347, %v353
      %v357 = vmul.f32 %v348, %v353
      %v358 = vmul.f32 %v349, %v353
      %360 = vset.pattern.permute.xlu0 0
      %361 = vperm.xlu0 %360, %v345
      %v362 = vpop.permute.xlu0 %361
      %v364 = vadd.f32 %v355, %v362
      %v365 = vadd.f32 %v356, %v362
      %v366 = vadd.f32 %v357, %v362
      %v367 = vadd.f32 %v358, %v362
      %v368 = vmax.f32 %v364, 0.0
      %v369 = vmax.f32 %v365, 0.0
      %v370 = vmax.f32 %v366, 0.0
      %v371 = vmax.f32 %v367, 0.0
      %v372 = vpack.c.bf16 %v369, %v368
      %v373 = vpack.c.bf16 %v371, %v370
      %vm374 = vcmp.ge.s32.totalorder %v342, 1
      %vm375 = vcmp.ge.s32.totalorder %v343, 1
      %vm376 = vcmp.lt.s32.totalorder %v342, 15
      %vm377 = vcmp.lt.s32.totalorder %v343, 15
      %378 = vst [vmem:[#allocation3 + $0x4] sm:$0x33] %v372
      %379 = vst [vmem:[#allocation3 + $0x14] sm:$0x33] %v373
      %v380 = vld [vmem:[#allocation3] sm:$0x33]
      %v381 = vld [vmem:[#allocation3 + $0x8] sm:$0x3]
      %v382 = vsel %vm374, 1, 0
      %v383 = vsel %vm375, 1, 0
      %vm384 = vcmp.eq.s32.totalorder %v382, 1
      %vm385 = vcmp.eq.s32.totalorder %v383, 1
      %vm386 = vmpackc.low %vm385, %vm384
      %v387 = vsel %vm386, 65537, 0
      %388 = vrot.lane.b32.xlu0 %v387, 111
      %v389 = vpop.permute.xlu0 %388
      %v390 = vrot.slane %v389, 4
      %vm391 = vcmask 908288
      %v392 = vsel %vm391, %v390, %v389
      %v393 = vunpack.c.l.b16 %v392
      %v394 = vunpack.c.h.b16 %v392
      %v395 = vunpack.c.l.b16 0
      %v396 = vunpack.c.h.b16 0
      %vm397 = vcmp.ne.s32.totalorder %v393, %v395
      %vm398 = vcmp.ne.s32.totalorder %v394, %v396
      %vm399 = vmpackc.low %vm398, %vm397
      %v400 = vunpack.c.l.b16 %v390
      %v401 = vunpack.c.h.b16 %v390
      %v402 = vunpack.c.l.b16 0
      %v403 = vunpack.c.h.b16 0
      %vm404 = vcmp.ne.s32.totalorder %v400, %v402
      %vm405 = vcmp.ne.s32.totalorder %v401, %v403
      %vm406 = vmpackc.low %vm405, %vm404
      %v407 = vsel %vm399, %v380, 0
      %v408 = vsel %vm406, %v381, 0
      %411 = vrot.lane.b32.xlu0 %v407, 17
      %v412 = vpop.permute.xlu0 %411
      %413 = vrot.lane.b32.xlu0 %v408, 17
      %v414 = vpop.permute.xlu0 %413
      %v415 = vrot.slane %v412, 4
      %v416 = vrot.slane %v414, 4
      %vm417 = vcmask 1043456
      %v418 = vsel %vm417, %v415, %v416
      %vm419 = vcmask 138240
      %v420 = vsel %vm419, %v412, %v418
      %422 = vst [vmem:[#allocation4] sm:$0x33] %v420
      %v423 = vld [vmem:[#allocation3 + $0x10] sm:$0x33]
      %v424 = vld [vmem:[#allocation3 + $0x18] sm:$0x3]
      %v425 = vsel %vm399, %v423, 0
      %v426 = vsel %vm406, %v424, 0
      %429 = vrot.lane.b32.xlu0 %v425, 17
      %v430 = vpop.permute.xlu0 %429
      %431 = vrot.lane.b32.xlu0 %v426, 17
      %v432 = vpop.permute.xlu0 %431
      %v433 = vrot.slane %v430, 4
      %v434 = vrot.slane %v432, 4
      %v435 = vsel %vm417, %v433, %v434
      %v436 = vsel %vm419, %v430, %v435
      %438 = vst [vmem:[#allocation4 + $0x8] sm:$0x33] %v436
      %v439 = vld [vmem:[#allocation3] sm:$0x33]
      %v440 = vld [vmem:[#allocation3 + $0x8] sm:$0x3]
      %v443 = vrot.slane %v439, 6
      %v444 = vrot.slane %v440, 6
      %445 = vrot.lane.b32.xlu0 %v443, 16
      %v446 = vpop.permute.xlu0 %445
      %447 = vrot.lane.b32.xlu0 %v444, 16
      %v448 = vpop.permute.xlu0 %447
      %v449 = vrot.slane %v446, 4
      %v450 = vrot.slane %v448, 4
      %v451 = vsel %vm417, %v449, %v450
      %vm452 = vcmask 130048
      %v453 = vsel %vm452, %v446, %v451
      %455 = vst [vmem:[#allocation4] sm:$0xcc] %v453
      %v456 = vld [vmem:[#allocation3 + $0x10] sm:$0x33]
      %v457 = vld [vmem:[#allocation3 + $0x18] sm:$0x3]
      %v460 = vrot.slane %v456, 6
      %v461 = vrot.slane %v457, 6
      %462 = vrot.lane.b32.xlu0 %v460, 16
      %v463 = vpop.permute.xlu0 %462
      %464 = vrot.lane.b32.xlu0 %v461, 16
      %v465 = vpop.permute.xlu0 %464
      %v466 = vrot.slane %v463, 4
      %v467 = vrot.slane %v465, 4
      %v468 = vsel %vm417, %v466, %v467
      %v469 = vsel %vm452, %v463, %v468
      %471 = vst [vmem:[#allocation4 + $0x8] sm:$0xcc] %v469
      %v472 = vld [vmem:[#allocation3] sm:$0x33]
      %v473 = vld [vmem:[#allocation3 + $0x8] sm:$0x3]
      %v474 = vsel %vm376, 1, 0
      %v475 = vsel %vm377, 1, 0
      %vm476 = vcmp.eq.s32.totalorder %v474, 1
      %vm477 = vcmp.eq.s32.totalorder %v475, 1
      %vm478 = vmpackc.low %vm477, %vm476
      %v479 = vsel %vm478, 65537, 0
      %480 = vrot.lane.b32.xlu0 %v479, 113
      %v481 = vpop.permute.xlu0 %480
      %v482 = vrot.slane %v481, 4
      %vm483 = vcmask 924672
      %v484 = vsel %vm483, %v482, %v481
      %v485 = vunpack.c.l.b16 %v484
      %v486 = vunpack.c.h.b16 %v484
      %v487 = vunpack.c.l.b16 0
      %v488 = vunpack.c.h.b16 0
      %vm489 = vcmp.ne.s32.totalorder %v485, %v487
      %vm490 = vcmp.ne.s32.totalorder %v486, %v488
      %vm491 = vmpackc.low %vm490, %vm489
      %v492 = vunpack.c.l.b16 %v482
      %v493 = vunpack.c.h.b16 %v482
      %v494 = vunpack.c.l.b16 0
      %v495 = vunpack.c.h.b16 0
      %vm496 = vcmp.ne.s32.totalorder %v492, %v494
      %vm497 = vcmp.ne.s32.totalorder %v493, %v495
      %vm498 = vmpackc.low %vm497, %vm496
      %v499 = vsel %vm491, %v472, 0
      %v500 = vsel %vm498, %v473, 0
      %503 = vrot.lane.b32.xlu0 %v499, 15
      %v504 = vpop.permute.xlu0 %503
      %505 = vrot.lane.b32.xlu0 %v500, 15
      %v506 = vpop.permute.xlu0 %505
      %v507 = vrot.slane %v504, 4
      %v508 = vrot.slane %v506, 4
      %v509 = vsel %vm417, %v507, %v508
      %vm510 = vcmask 121856
      %v511 = vsel %vm510, %v504, %v509
      %513 = vst [vmem:[#allocation4 + $0x10] sm:$0x33] %v511
      %v514 = vld [vmem:[#allocation3 + $0x10] sm:$0x33]
      %v515 = vld [vmem:[#allocation3 + $0x18] sm:$0x3]
      %v516 = vsel %vm491, %v514, 0
      %v517 = vsel %vm498, %v515, 0
      %520 = vrot.lane.b32.xlu0 %v516, 15
      %v521 = vpop.permute.xlu0 %520
      %522 = vrot.lane.b32.xlu0 %v517, 15
      %v523 = vpop.permute.xlu0 %522
      %v524 = vrot.slane %v521, 4
      %v525 = vrot.slane %v523, 4
      %v526 = vsel %vm417, %v524, %v525
      %v527 = vsel %vm510, %v521, %v526
      %529 = vst [vmem:[#allocation4 + $0x18] sm:$0x33] %v527
      %v530 = vld [vmem:[#allocation3] sm:$0x33]
      %v531 = vld [vmem:[#allocation3 + $0x8] sm:$0x3]
      %532 = vrot.lane.b32.xlu0 %v387, 127
      %v533 = vpop.permute.xlu0 %532
      %v534 = vrot.slane %v533, 4
      %vm535 = vcmask 1039360
      %v536 = vsel %vm535, %v534, %v533
      %v537 = vunpack.c.l.b16 %v536
      %v538 = vunpack.c.h.b16 %v536
      %v539 = vunpack.c.l.b16 0
      %v540 = vunpack.c.h.b16 0
      %vm541 = vcmp.ne.s32.totalorder %v537, %v539
      %vm542 = vcmp.ne.s32.totalorder %v538, %v540
      %vm543 = vmpackc.low %vm542, %vm541
      %v544 = vunpack.c.l.b16 %v534
      %v545 = vunpack.c.h.b16 %v534
      %v546 = vunpack.c.l.b16 0
      %v547 = vunpack.c.h.b16 0
      %vm548 = vcmp.ne.s32.totalorder %v544, %v546
      %vm549 = vcmp.ne.s32.totalorder %v545, %v547
      %vm550 = vmpackc.low %vm549, %vm548
      %v551 = vsel %vm543, %v530, 0
      %v552 = vsel %vm550, %v531, 0
      %v555 = vrot.slane %v551, 6
      %v556 = vrot.slane %v552, 6
      %557 = vrot.lane.b32.xlu0 %v555, 1
      %v558 = vpop.permute.xlu0 %557
      %559 = vrot.lane.b32.xlu0 %v556, 1
      %v560 = vpop.permute.xlu0 %559
      %v561 = vrot.slane %v558, 4
      %v562 = vrot.slane %v560, 4
      %v563 = vsel %vm417, %v561, %v562
      %vm564 = vcmask 7168
      %v565 = vsel %vm564, %v558, %v563
      %567 = vst [vmem:[#allocation4 + $0x10] sm:$0xcc] %v565
      %v568 = vld [vmem:[#allocation3 + $0x10] sm:$0x33]
      %v569 = vld [vmem:[#allocation3 + $0x18] sm:$0x3]
      %v570 = vsel %vm543, %v568, 0
      %v571 = vsel %vm550, %v569, 0
      %v574 = vrot.slane %v570, 6
      %v575 = vrot.slane %v571, 6
      %576 = vrot.lane.b32.xlu0 %v574, 1
      %v577 = vpop.permute.xlu0 %576
      %578 = vrot.lane.b32.xlu0 %v575, 1
      %v579 = vpop.permute.xlu0 %578
      %v580 = vrot.slane %v577, 4
      %v581 = vrot.slane %v579, 4
      %v582 = vsel %vm417, %v580, %v581
      %v583 = vsel %vm564, %v577, %v582
      %585 = vst [vmem:[#allocation4 + $0x18] sm:$0xcc] %v583
      %v586 = vld [vmem:[#allocation3 + $0x4] sm:$0x33]
      %587 = vst [vmem:[#allocation4 + $0x20] sm:$0x33] %v586
      %v588 = vld [vmem:[#allocation3 + $0x14] sm:$0x33]
      %589 = vst [vmem:[#allocation4 + $0x28] sm:$0x33] %v588
      %v590 = vld [vmem:[#allocation3 + $0x4] sm:$0x33]
      %v591 = vld [vmem:[#allocation3 + $0xc] sm:$0x3]
      %592 = vrot.lane.b32.xlu0 %v479, 1
      %v593 = vpop.permute.xlu0 %592
      %v594 = vrot.slane %v593, 4
      %v595 = vsel %vm564, %v594, %v593
      %v596 = vunpack.c.l.b16 %v595
      %v597 = vunpack.c.h.b16 %v595
      %v598 = vunpack.c.l.b16 0
      %v599 = vunpack.c.h.b16 0
      %vm600 = vcmp.ne.s32.totalorder %v596, %v598
      %vm601 = vcmp.ne.s32.totalorder %v597, %v599
      %vm602 = vmpackc.low %vm601, %vm600
      %v603 = vunpack.c.l.b16 %v594
      %v604 = vunpack.c.h.b16 %v594
      %v605 = vunpack.c.l.b16 0
      %v606 = vunpack.c.h.b16 0
      %vm607 = vcmp.ne.s32.totalorder %v603, %v605
      %vm608 = vcmp.ne.s32.totalorder %v604, %v606
      %vm609 = vmpackc.low %vm608, %vm607
      %v610 = vsel %vm602, %v590, 0
      %v611 = vsel %vm609, %v591, 0
      %v614 = vrot.slane %v610, 6
      %v615 = vrot.slane %v611, 6
      %616 = vrot.lane.b32.xlu0 %v614, 127
      %v617 = vpop.permute.xlu0 %616
      %618 = vrot.lane.b32.xlu0 %v615, 127
      %v619 = vpop.permute.xlu0 %618
      %v620 = vrot.slane %v617, 4
      %v621 = vrot.slane %v619, 4
      %v622 = vsel %vm417, %v620, %v621
      %v623 = vsel %vm535, %v617, %v622
      %625 = vst [vmem:[#allocation4 + $0x20] sm:$0xcc] %v623
      %v626 = vld [vmem:[#allocation3 + $0x14] sm:$0x33]
      %v627 = vld [vmem:[#allocation3 + $0x1c] sm:$0x3]
      %v628 = vsel %vm602, %v626, 0
      %v629 = vsel %vm609, %v627, 0
      %v632 = vrot.slane %v628, 6
      %v633 = vrot.slane %v629, 6
      %634 = vrot.lane.b32.xlu0 %v632, 127
      %v635 = vpop.permute.xlu0 %634
      %636 = vrot.lane.b32.xlu0 %v633, 127
      %v637 = vpop.permute.xlu0 %636
      %v638 = vrot.slane %v635, 4
      %v639 = vrot.slane %v637, 4
      %v640 = vsel %vm417, %v638, %v639
      %v641 = vsel %vm535, %v635, %v640
      %643 = vst [vmem:[#allocation4 + $0x28] sm:$0xcc] %v641
      %v644 = vld [vmem:[#allocation3 + $0x4] sm:$0x33]
      %v645 = vld [vmem:[#allocation3 + $0xc] sm:$0x3]
      %646 = vrot.lane.b32.xlu0 %v387, 15
      %v647 = vpop.permute.xlu0 %646
      %v648 = vrot.slane %v647, 4
      %v649 = vsel %vm510, %v648, %v647
      %v650 = vunpack.c.l.b16 %v649
      %v651 = vunpack.c.h.b16 %v649
      %v652 = vunpack.c.l.b16 0
      %v653 = vunpack.c.h.b16 0
      %vm654 = vcmp.ne.s32.totalorder %v650, %v652
      %vm655 = vcmp.ne.s32.totalorder %v651, %v653
      %vm656 = vmpackc.low %vm655, %vm654
      %v657 = vunpack.c.l.b16 %v648
      %v658 = vunpack.c.h.b16 %v648
      %v659 = vunpack.c.l.b16 0
      %v660 = vunpack.c.h.b16 0
      %vm661 = vcmp.ne.s32.totalorder %v657, %v659
      %vm662 = vcmp.ne.s32.totalorder %v658, %v660
      %vm663 = vmpackc.low %vm662, %vm661
      %v664 = vsel %vm656, %v644, 0
      %v665 = vsel %vm663, %v645, 0
      %668 = vrot.lane.b32.xlu0 %v664, 113
      %v669 = vpop.permute.xlu0 %668
      %670 = vrot.lane.b32.xlu0 %v665, 113
      %v671 = vpop.permute.xlu0 %670
      %v672 = vrot.slane %v669, 4
      %v673 = vrot.slane %v671, 4
      %v674 = vsel %vm417, %v672, %v673
      %v675 = vsel %vm483, %v669, %v674
      %677 = vst [vmem:[#allocation4 + $0x30] sm:$0x33] %v675
      %v678 = vld [vmem:[#allocation3 + $0x14] sm:$0x33]
      %v679 = vld [vmem:[#allocation3 + $0x1c] sm:$0x3]
      %v680 = vsel %vm656, %v678, 0
      %v681 = vsel %vm663, %v679, 0
      %684 = vrot.lane.b32.xlu0 %v680, 113
      %v685 = vpop.permute.xlu0 %684
      %686 = vrot.lane.b32.xlu0 %v681, 113
      %v687 = vpop.permute.xlu0 %686
      %v688 = vrot.slane %v685, 4
      %v689 = vrot.slane %v687, 4
      %v690 = vsel %vm417, %v688, %v689
      %v691 = vsel %vm483, %v685, %v690
      %693 = vst [vmem:[#allocation4 + $0x38] sm:$0x33] %v691
      %v694 = vld [vmem:[#allocation3 + $0x4] sm:$0x33]
      %v695 = vld [vmem:[#allocation3 + $0xc] sm:$0x3]
      %v698 = vrot.slane %v694, 6
      %v699 = vrot.slane %v695, 6
      %700 = vrot.lane.b32.xlu0 %v698, 112
      %v701 = vpop.permute.xlu0 %700
      %702 = vrot.lane.b32.xlu0 %v699, 112
      %v703 = vpop.permute.xlu0 %702
      %v704 = vrot.slane %v701, 4
      %v705 = vrot.slane %v703, 4
      %v706 = vsel %vm417, %v704, %v705
      %vm707 = vcmask 916480
      %v708 = vsel %vm707, %v701, %v706
      %710 = vst [vmem:[#allocation4 + $0x30] sm:$0xcc] %v708
      %v711 = vld [vmem:[#allocation3 + $0x14] sm:$0x33]
      %v712 = vld [vmem:[#allocation3 + $0x1c] sm:$0x3]
      %v715 = vrot.slane %v711, 6
      %v716 = vrot.slane %v712, 6
      %717 = vrot.lane.b32.xlu0 %v715, 112
      %v718 = vpop.permute.xlu0 %717
      %719 = vrot.lane.b32.xlu0 %v716, 112
      %v720 = vpop.permute.xlu0 %719
      %v721 = vrot.slane %v718, 4
      %v722 = vrot.slane %v720, 4
      %v723 = vsel %vm417, %v721, %v722
      %v724 = vsel %vm707, %v718, %v723
      %726 = vst [vmem:[#allocation4 + $0x38] sm:$0xcc] %v724
      %v727 = vld [vmem:[#allocation3 + $0x4] sm:$0x33]
      %v728 = vld [vmem:[#allocation3 + $0xc] sm:$0x3]
      %729 = vrot.lane.b32.xlu0 %v479, 17
      %v730 = vpop.permute.xlu0 %729
      %v731 = vrot.slane %v730, 4
      %v732 = vsel %vm419, %v731, %v730
      %v733 = vunpack.c.l.b16 %v732
      %v734 = vunpack.c.h.b16 %v732
      %v735 = vunpack.c.l.b16 0
      %v736 = vunpack.c.h.b16 0
      %vm737 = vcmp.ne.s32.totalorder %v733, %v735
      %vm738 = vcmp.ne.s32.totalorder %v734, %v736
      %vm739 = vmpackc.low %vm738, %vm737
      %v740 = vunpack.c.l.b16 %v731
      %v741 = vunpack.c.h.b16 %v731
      %v742 = vunpack.c.l.b16 0
      %v743 = vunpack.c.h.b16 0
      %vm744 = vcmp.ne.s32.totalorder %v740, %v742
      %vm745 = vcmp.ne.s32.totalorder %v741, %v743
      %vm746 = vmpackc.low %vm745, %vm744
      %v747 = vsel %vm739, %v727, 0
      %v748 = vsel %vm746, %v728, 0
      %751 = vrot.lane.b32.xlu0 %v747, 111
      %v752 = vpop.permute.xlu0 %751
      %753 = vrot.lane.b32.xlu0 %v748, 111
      %v754 = vpop.permute.xlu0 %753
      %v755 = vrot.slane %v752, 4
      %v756 = vrot.slane %v754, 4
      %v757 = vsel %vm417, %v755, %v756
      %v758 = vsel %vm391, %v752, %v757
      %760 = vst [vmem:[#allocation4 + $0x40] sm:$0x33] %v758
      %v761 = vld [vmem:[#allocation3 + $0x14] sm:$0x33]
      %v762 = vld [vmem:[#allocation3 + $0x1c] sm:$0x3]
      %v763 = vsel %vm739, %v761, 0
      %v764 = vsel %vm746, %v762, 0
      %767 = vrot.lane.b32.xlu0 %v763, 111
      %v768 = vpop.permute.xlu0 %767
      %769 = vrot.lane.b32.xlu0 %v764, 111
      %v770 = vpop.permute.xlu0 %769
      %v771 = vrot.slane %v768, 4
      %v772 = vrot.slane %v770, 4
      %v773 = vsel %vm417, %v771, %v772
      %v774 = vsel %vm391, %v768, %v773
      %776 = vst [vmem:[#allocation4 + $0x48] sm:$0x33] %v774
      %v777 = vld [vmem:[%s3] sm:$0x3]
      %v778 = vld [vmem:[#allocation4] sm:$0xff]
      %v779 = vld [vmem:[#allocation4 + $0x8] sm:$0xff]
      %v780 = vld [vmem:[#allocation4 + $0x10] sm:$0xff]
      %v781 = vld [vmem:[#allocation4 + $0x18] sm:$0xff]
      %v782 = vld [vmem:[#allocation4 + $0x20] sm:$0xff]
      %v783 = vld [vmem:[#allocation4 + $0x28] sm:$0xff]
      %v784 = vld [vmem:[#allocation4 + $0x30] sm:$0xff]
      %v785 = vld [vmem:[#allocation4 + $0x38] sm:$0xff]
      %v786 = vld [vmem:[#allocation4 + $0x40] sm:$0x33]
      %v787 = vld [vmem:[#allocation4 + $0x48] sm:$0x33]
      %v798 = vunpack.c.l.b16 %v778
      %v799 = vunpack.c.h.b16 %v778
      %v800 = vunpack.c.l.b16 %v779
      %v801 = vunpack.c.h.b16 %v779
      %v802 = vunpack.c.l.b16 %v780
      %v803 = vunpack.c.h.b16 %v780
      %v804 = vunpack.c.l.b16 %v781
      %v805 = vunpack.c.h.b16 %v781
      %v806 = vunpack.c.l.b16 %v782
      %v807 = vunpack.c.h.b16 %v782
      %v808 = vunpack.c.l.b16 %v783
      %v809 = vunpack.c.h.b16 %v783
      %v810 = vunpack.c.l.b16 %v784
      %v811 = vunpack.c.h.b16 %v784
      %v812 = vunpack.c.l.b16 %v785
      %v813 = vunpack.c.h.b16 %v785
      %v814 = vunpack.c.l.b16 %v786
      %v815 = vunpack.c.h.b16 %v786
      %v816 = vunpack.c.l.b16 %v787
      %v817 = vunpack.c.h.b16 %v787
      %v818 = vpack.c.b16 %v802, %v798
      %v819 = vpack.c.b16 %v803, %v799
      %v820 = vpack.c.b16 %v804, %v800
      %v821 = vpack.c.b16 %v805, %v801
      %v822 = vpack.c.b16 %v810, %v806
      %v823 = vpack.c.b16 %v811, %v807
      %v824 = vpack.c.b16 %v812, %v808
      %v825 = vpack.c.b16 %v813, %v809
      %v826 = vpack.c.b16 %v814, %v814
      %v827 = vpack.c.b16 %v815, %v815
      %v828 = vpack.c.b16 %v816, %v816
      %v829 = vpack.c.b16 %v817, %v817
      %vm838 = vcmask 293888
      %v840 = vsel %vm838, %v777, 0
      %vm842 = vcmask 1041408
      %v844 = vsel %vm842, %v826, 0
      %v847 = vsel %vm842, %v827, 0
      %v850 = vsel %vm842, %v828, 0
      %v853 = vsel %vm842, %v829, 0
      %855 = vmatpush.bf16.msra.mxu0 0
      %856 = vmatpush.bf16.msra.mxu0 0
      %857 = vmatpush.bf16.msra.mxu0 0
      %858 = vmatpush.bf16.msra.mxu0 0
      %859 = vmatpush.bf16.msra.mxu0 0
      %860 = vmatpush.bf16.msra.mxu0 %v844
      %861 = vmatpush.bf16.msra.mxu0 %v822
      %862 = vmatpush.bf16.msra.mxu0 %v818
      %863 = vmatmul.bf16.gmra.mxu0 %v840
      %v864 = vpop.f32.mrf.mxu0
      %v865 = vadd.f32 0.0, %v864
      %v866 = vpop.f32.mrf.mxu0
      %867 = vdwg.mxu0
      %868 = vmatpush.bf16.msra.mxu0 0
      %869 = vmatpush.bf16.msra.mxu0 0
      %870 = vmatpush.bf16.msra.mxu0 0
      %871 = vmatpush.bf16.msra.mxu0 0
      %872 = vmatpush.bf16.msra.mxu0 0
      %873 = vmatpush.bf16.msra.mxu0 %v847
      %874 = vmatpush.bf16.msra.mxu0 %v823
      %875 = vmatpush.bf16.msra.mxu0 %v819
      %876 = vmatmul.bf16.gmra.mxu0 %v840
      %v877 = vpop.f32.mrf.mxu0
      %v878 = vadd.f32 0.0, %v877
      %v879 = vpop.f32.mrf.mxu0
      %880 = vdwg.mxu0
      %881 = vmatpush.bf16.msra.mxu0 0
      %882 = vmatpush.bf16.msra.mxu0 0
      %883 = vmatpush.bf16.msra.mxu0 0
      %884 = vmatpush.bf16.msra.mxu0 0
      %885 = vmatpush.bf16.msra.mxu0 0
      %886 = vmatpush.bf16.msra.mxu0 %v850
      %887 = vmatpush.bf16.msra.mxu0 %v824
      %888 = vmatpush.bf16.msra.mxu0 %v820
      %889 = vmatmul.bf16.gmra.mxu0 %v840
      %v890 = vpop.f32.mrf.mxu0
      %v891 = vadd.f32 0.0, %v890
      %v892 = vpop.f32.mrf.mxu0
      %893 = vdwg.mxu0
      %894 = vmatpush.bf16.msra.mxu0 0
      %895 = vmatpush.bf16.msra.mxu0 0
      %896 = vmatpush.bf16.msra.mxu0 0
      %897 = vmatpush.bf16.msra.mxu0 0
      %898 = vmatpush.bf16.msra.mxu0 0
      %899 = vmatpush.bf16.msra.mxu0 %v853
      %900 = vmatpush.bf16.msra.mxu0 %v825
      %901 = vmatpush.bf16.msra.mxu0 %v821
      %902 = vmatmul.bf16.gmra.mxu0 %v840
      %v903 = vpop.f32.mrf.mxu0
      %v904 = vadd.f32 0.0, %v903
      %v905 = vpop.f32.mrf.mxu0
      %906 = vdwg.mxu0
      %v911 = vrot.slane %v865, 4
      %v912 = vrot.slane %v878, 4
      %v913 = vrot.slane %v891, 4
      %v914 = vrot.slane %v904, 4
      %919 = vst [vmem:[#allocation2] sm:$0xf0] %v911
      %920 = vst [vmem:[#allocation2 + $0x8] sm:$0xf0] %v912
      %921 = vst [vmem:[#allocation2 + $0x10] sm:$0xf0] %v913
      %922 = vst [vmem:[#allocation2 + $0x18] sm:$0xf0] %v914
      %s923 = scalar_lea.vmem %s1, 16
      %v924 = vld [vmem:[%s923] sm:$0xff]
      %s925 = scalar_lea.vmem %s2, 16
      %v926 = vld [vmem:[%s925] sm:$0xff]
      %v927 = vld [vmem:[#allocation2] sm:$0xff]
      %v928 = vld [vmem:[#allocation2 + $0x8] sm:$0xff]
      %v929 = vld [vmem:[#allocation2 + $0x10] sm:$0xff]
      %v930 = vld [vmem:[#allocation2 + $0x18] sm:$0xff]
      %932 = vset.pattern.permute.xlu0 0
      %933 = vperm.xlu0 %932, %v924
      %v934 = vpop.permute.xlu0 %933
      %v936 = vmul.f32 %v927, %v934
      %v937 = vmul.f32 %v928, %v934
      %v938 = vmul.f32 %v929, %v934
      %v939 = vmul.f32 %v930, %v934
      %941 = vset.pattern.permute.xlu0 0
      %942 = vperm.xlu0 %941, %v926
      %v943 = vpop.permute.xlu0 %942
      %v945 = vadd.f32 %v936, %v943
      %v946 = vadd.f32 %v937, %v943
      %v947 = vadd.f32 %v938, %v943
      %v948 = vadd.f32 %v939, %v943
      %v949 = vmax.f32 %v945, 0.0
      %v950 = vmax.f32 %v946, 0.0
      %v951 = vmax.f32 %v947, 0.0
      %v952 = vmax.f32 %v948, 0.0
      %v953 = vpack.c.bf16 %v950, %v949
      %v954 = vpack.c.bf16 %v952, %v951
      %vm955 = vcmp.ge.s32.totalorder %v342, 2
      %vm956 = vcmp.ge.s32.totalorder %v343, 2
      %vm957 = vcmp.lt.s32.totalorder %v342, 14
      %vm958 = vcmp.lt.s32.totalorder %v343, 14
      %959 = vst [vmem:[#allocation3 + $0x4] sm:$0xff] %v953
      %960 = vst [vmem:[#allocation3 + $0x14] sm:$0xff] %v954
      %v961 = vld [vmem:[#allocation3] sm:$0xff]
      %v962 = vld [vmem:[#allocation3 + $0x8] sm:$0xf]
      %v963 = vsel %vm955, 1, 0
      %v964 = vsel %vm956, 1, 0
      %vm965 = vcmp.eq.s32.totalorder %v963, 1
      %vm966 = vcmp.eq.s32.totalorder %v964, 1
      %vm967 = vmpackc.low %vm966, %vm965
      %v968 = vsel %vm967, 65537, 0
      %969 = vrot.lane.b32.xlu0 %v968, 94
      %v970 = vpop.permute.xlu0 %969
      %v971 = vrot.slane %v970, 4
      %vm972 = vcmask 769024
      %v973 = vsel %vm972, %v971, %v970
      %v974 = vunpack.c.l.b16 %v973
      %v975 = vunpack.c.h.b16 %v973
      %v976 = vunpack.c.l.b16 0
      %v977 = vunpack.c.h.b16 0
      %vm978 = vcmp.ne.s32.totalorder %v974, %v976
      %vm979 = vcmp.ne.s32.totalorder %v975, %v977
      %vm980 = vmpackc.low %vm979, %vm978
      %v981 = vunpack.c.l.b16 %v971
      %v982 = vunpack.c.h.b16 %v971
      %v983 = vunpack.c.l.b16 0
      %v984 = vunpack.c.h.b16 0
      %vm985 = vcmp.ne.s32.totalorder %v981, %v983
      %vm986 = vcmp.ne.s32.totalorder %v982, %v984
      %vm987 = vmpackc.low %vm986, %vm985
      %v988 = vsel %vm980, %v961, 0
      %v989 = vsel %vm987, %v962, 0
      %992 = vrot.lane.b32.xlu0 %v988, 34
      %v993 = vpop.permute.xlu0 %992
      %994 = vrot.lane.b32.xlu0 %v989, 34
      %v995 = vpop.permute.xlu0 %994
      %v996 = vrot.slane %v993, 4
      %v997 = vrot.slane %v995, 4
      %v998 = vsel %vm417, %v996, %v997
      %vm999 = vcmask 277504
      %v1000 = vsel %vm999, %v993, %v998
      %1002 = vst [vmem:[#allocation4] sm:$0xff] %v1000
      %v1003 = vld [vmem:[#allocation3 + $0x10] sm:$0xff]
      %v1004 = vld [vmem:[#allocation3 + $0x18] sm:$0xf]
      %v1005 = vsel %vm980, %v1003, 0
      %v1006 = vsel %vm987, %v1004, 0
      %1009 = vrot.lane.b32.xlu0 %v1005, 34
      %v1010 = vpop.permute.xlu0 %1009
      %1011 = vrot.lane.b32.xlu0 %v1006, 34
      %v1012 = vpop.permute.xlu0 %1011
      %v1013 = vrot.slane %v1010, 4
      %v1014 = vrot.slane %v1012, 4
      %v1015 = vsel %vm417, %v1013, %v1014
      %v1016 = vsel %vm999, %v1010, %v1015
      %1018 = vst [vmem:[#allocation4 + $0x8] sm:$0xff] %v1016
      %v1019 = vld [vmem:[#allocation3] sm:$0xff]
      %v1020 = vld [vmem:[#allocation3 + $0x8] sm:$0xf]
      %1023 = vrot.lane.b32.xlu0 %v1019, 32
      %v1024 = vpop.permute.xlu0 %1023
      %1025 = vrot.lane.b32.xlu0 %v1020, 32
      %v1026 = vpop.permute.xlu0 %1025
      %v1027 = vrot.slane %v1024, 4
      %v1028 = vrot.slane %v1026, 4
      %v1029 = vsel %vm417, %v1027, %v1028
      %vm1030 = vcmask 261120
      %v1031 = vsel %vm1030, %v1024, %v1029
      %1033 = vst [vmem:[#allocation4 + $0x10] sm:$0xff] %v1031
      %v1034 = vld [vmem:[#allocation3 + $0x10] sm:$0xff]
      %v1035 = vld [vmem:[#allocation3 + $0x18] sm:$0xf]
      %1038 = vrot.lane.b32.xlu0 %v1034, 32
      %v1039 = vpop.permute.xlu0 %1038
      %1040 = vrot.lane.b32.xlu0 %v1035, 32
      %v1041 = vpop.permute.xlu0 %1040
      %v1042 = vrot.slane %v1039, 4
      %v1043 = vrot.slane %v1041, 4
      %v1044 = vsel %vm417, %v1042, %v1043
      %v1045 = vsel %vm1030, %v1039, %v1044
      %1047 = vst [vmem:[#allocation4 + $0x18] sm:$0xff] %v1045
      %v1048 = vld [vmem:[#allocation3] sm:$0xff]
      %v1049 = vld [vmem:[#allocation3 + $0x8] sm:$0xf]
      %v1050 = vsel %vm957, 1, 0
      %v1051 = vsel %vm958, 1, 0
      %vm1052 = vcmp.eq.s32.totalorder %v1050, 1
      %vm1053 = vcmp.eq.s32.totalorder %v1051, 1
      %vm1054 = vmpackc.low %vm1053, %vm1052
      %v1055 = vsel %vm1054, 65537, 0
      %1056 = vrot.lane.b32.xlu0 %v1055, 98
      %v1057 = vpop.permute.xlu0 %1056
      %v1058 = vrot.slane %v1057, 4
      %vm1059 = vcmask 801792
      %v1060 = vsel %vm1059, %v1058, %v1057
      %v1061 = vunpack.c.l.b16 %v1060
      %v1062 = vunpack.c.h.b16 %v1060
      %v1063 = vunpack.c.l.b16 0
      %v1064 = vunpack.c.h.b16 0
      %vm1065 = vcmp.ne.s32.totalorder %v1061, %v1063
      %vm1066 = vcmp.ne.s32.totalorder %v1062, %v1064
      %vm1067 = vmpackc.low %vm1066, %vm1065
      %v1068 = vunpack.c.l.b16 %v1058
      %v1069 = vunpack.c.h.b16 %v1058
      %v1070 = vunpack.c.l.b16 0
      %v1071 = vunpack.c.h.b16 0
      %vm1072 = vcmp.ne.s32.totalorder %v1068, %v1070
      %vm1073 = vcmp.ne.s32.totalorder %v1069, %v1071
      %vm1074 = vmpackc.low %vm1073, %vm1072
      %v1075 = vsel %vm1067, %v1048, 0
      %v1076 = vsel %vm1074, %v1049, 0
      %1079 = vrot.lane.b32.xlu0 %v1075, 30
      %v1080 = vpop.permute.xlu0 %1079
      %1081 = vrot.lane.b32.xlu0 %v1076, 30
      %v1082 = vpop.permute.xlu0 %1081
      %v1083 = vrot.slane %v1080, 4
      %v1084 = vrot.slane %v1082, 4
      %v1085 = vsel %vm417, %v1083, %v1084
      %vm1086 = vcmask 244736
      %v1087 = vsel %vm1086, %v1080, %v1085
      %1089 = vst [vmem:[#allocation4 + $0x20] sm:$0xff] %v1087
      %v1090 = vld [vmem:[#allocation3 + $0x10] sm:$0xff]
      %v1091 = vld [vmem:[#allocation3 + $0x18] sm:$0xf]
      %v1092 = vsel %vm1067, %v1090, 0
      %v1093 = vsel %vm1074, %v1091, 0
      %1096 = vrot.lane.b32.xlu0 %v1092, 30
      %v1097 = vpop.permute.xlu0 %1096
      %1098 = vrot.lane.b32.xlu0 %v1093, 30
      %v1099 = vpop.permute.xlu0 %1098
      %v1100 = vrot.slane %v1097, 4
      %v1101 = vrot.slane %v1099, 4
      %v1102 = vsel %vm417, %v1100, %v1101
      %v1103 = vsel %vm1086, %v1097, %v1102
      %1105 = vst [vmem:[#allocation4 + $0x28] sm:$0xff] %v1103
      %v1106 = vld [vmem:[#allocation3] sm:$0xff]
      %v1107 = vld [vmem:[#allocation3 + $0x8] sm:$0xf]
      %1108 = vrot.lane.b32.xlu0 %v968, 126
      %v1109 = vpop.permute.xlu0 %1108
      %v1110 = vrot.slane %v1109, 4
      %vm1111 = vcmask 1031168
      %v1112 = vsel %vm1111, %v1110, %v1109
      %v1113 = vunpack.c.l.b16 %v1112
      %v1114 = vunpack.c.h.b16 %v1112
      %v1115 = vunpack.c.l.b16 0
      %v1116 = vunpack.c.h.b16 0
      %vm1117 = vcmp.ne.s32.totalorder %v1113, %v1115
      %vm1118 = vcmp.ne.s32.totalorder %v1114, %v1116
      %vm1119 = vmpackc.low %vm1118, %vm1117
      %v1120 = vunpack.c.l.b16 %v1110
      %v1121 = vunpack.c.h.b16 %v1110
      %v1122 = vunpack.c.l.b16 0
      %v1123 = vunpack.c.h.b16 0
      %vm1124 = vcmp.ne.s32.totalorder %v1120, %v1122
      %vm1125 = vcmp.ne.s32.totalorder %v1121, %v1123
      %vm1126 = vmpackc.low %vm1125, %vm1124
      %v1127 = vsel %vm1119, %v1106, 0
      %v1128 = vsel %vm1126, %v1107, 0
      %1131 = vrot.lane.b32.xlu0 %v1127, 2
      %v1132 = vpop.permute.xlu0 %1131
      %1133 = vrot.lane.b32.xlu0 %v1128, 2
      %v1134 = vpop.permute.xlu0 %1133
      %v1135 = vrot.slane %v1132, 4
      %v1136 = vrot.slane %v1134, 4
      %v1137 = vsel %vm417, %v1135, %v1136
      %vm1138 = vcmask 15360
      %v1139 = vsel %vm1138, %v1132, %v1137
      %1141 = vst [vmem:[#allocation4 + $0x30] sm:$0xff] %v1139
      %v1142 = vld [vmem:[#allocation3 + $0x10] sm:$0xff]
      %v1143 = vld [vmem:[#allocation3 + $0x18] sm:$0xf]
      %v1144 = vsel %vm1119, %v1142, 0
      %v1145 = vsel %vm1126, %v1143, 0
      %1148 = vrot.lane.b32.xlu0 %v1144, 2
      %v1149 = vpop.permute.xlu0 %1148
      %1150 = vrot.lane.b32.xlu0 %v1145, 2
      %v1151 = vpop.permute.xlu0 %1150
      %v1152 = vrot.slane %v1149, 4
      %v1153 = vrot.slane %v1151, 4
      %v1154 = vsel %vm417, %v1152, %v1153
      %v1155 = vsel %vm1138, %v1149, %v1154
      %1157 = vst [vmem:[#allocation4 + $0x38] sm:$0xff] %v1155
      %v1158 = vld [vmem:[#allocation3 + $0x4] sm:$0xff]
      %1159 = vst [vmem:[#allocation4 + $0x40] sm:$0xff] %v1158
      %v1160 = vld [vmem:[#allocation3 + $0x14] sm:$0xff]
      %1161 = vst [vmem:[#allocation4 + $0x48] sm:$0xff] %v1160
      %v1162 = vld [vmem:[#allocation3 + $0x4] sm:$0xff]
      %v1163 = vld [vmem:[#allocation3 + $0xc] sm:$0xf]
      %1164 = vrot.lane.b32.xlu0 %v1055, 2
      %v1165 = vpop.permute.xlu0 %1164
      %v1166 = vrot.slane %v1165, 4
      %v1167 = vsel %vm1138, %v1166, %v1165
      %v1168 = vunpack.c.l.b16 %v1167
      %v1169 = vunpack.c.h.b16 %v1167
      %v1170 = vunpack.c.l.b16 0
      %v1171 = vunpack.c.h.b16 0
      %vm1172 = vcmp.ne.s32.totalorder %v1168, %v1170
      %vm1173 = vcmp.ne.s32.totalorder %v1169, %v1171
      %vm1174 = vmpackc.low %vm1173, %vm1172
      %v1175 = vunpack.c.l.b16 %v1166
      %v1176 = vunpack.c.h.b16 %v1166
      %v1177 = vunpack.c.l.b16 0
      %v1178 = vunpack.c.h.b16 0
      %vm1179 = vcmp.ne.s32.totalorder %v1175, %v1177
      %vm1180 = vcmp.ne.s32.totalorder %v1176, %v1178
      %vm1181 = vmpackc.low %vm1180, %vm1179
      %v1182 = vsel %vm1174, %v1162, 0
      %v1183 = vsel %vm1181, %v1163, 0
      %1186 = vrot.lane.b32.xlu0 %v1182, 126
      %v1187 = vpop.permute.xlu0 %1186
      %1188 = vrot.lane.b32.xlu0 %v1183, 126
      %v1189 = vpop.permute.xlu0 %1188
      %v1190 = vrot.slane %v1187, 4
      %v1191 = vrot.slane %v1189, 4
      %v1192 = vsel %vm417, %v1190, %v1191
      %v1193 = vsel %vm1111, %v1187, %v1192
      %1195 = vst [vmem:[#allocation4 + $0x50] sm:$0xff] %v1193
      %v1196 = vld [vmem:[#allocation3 + $0x14] sm:$0xff]
      %v1197 = vld [vmem:[#allocation3 + $0x1c] sm:$0xf]
      %v1198 = vsel %vm1174, %v1196, 0
      %v1199 = vsel %vm1181, %v1197, 0
      %1202 = vrot.lane.b32.xlu0 %v1198, 126
      %v1203 = vpop.permute.xlu0 %1202
      %1204 = vrot.lane.b32.xlu0 %v1199, 126
      %v1205 = vpop.permute.xlu0 %1204
      %v1206 = vrot.slane %v1203, 4
      %v1207 = vrot.slane %v1205, 4
      %v1208 = vsel %vm417, %v1206, %v1207
      %v1209 = vsel %vm1111, %v1203, %v1208
      %1211 = vst [vmem:[#allocation4 + $0x58] sm:$0xff] %v1209
      %v1212 = vld [vmem:[#allocation3 + $0x4] sm:$0xff]
      %v1213 = vld [vmem:[#allocation3 + $0xc] sm:$0xf]
      %1214 = vrot.lane.b32.xlu0 %v968, 30
      %v1215 = vpop.permute.xlu0 %1214
      %v1216 = vrot.slane %v1215, 4
      %v1217 = vsel %vm1086, %v1216, %v1215
      %v1218 = vunpack.c.l.b16 %v1217
      %v1219 = vunpack.c.h.b16 %v1217
      %v1220 = vunpack.c.l.b16 0
      %v1221 = vunpack.c.h.b16 0
      %vm1222 = vcmp.ne.s32.totalorder %v1218, %v1220
      %vm1223 = vcmp.ne.s32.totalorder %v1219, %v1221
      %vm1224 = vmpackc.low %vm1223, %vm1222
      %v1225 = vunpack.c.l.b16 %v1216
      %v1226 = vunpack.c.h.b16 %v1216
      %v1227 = vunpack.c.l.b16 0
      %v1228 = vunpack.c.h.b16 0
      %vm1229 = vcmp.ne.s32.totalorder %v1225, %v1227
      %vm1230 = vcmp.ne.s32.totalorder %v1226, %v1228
      %vm1231 = vmpackc.low %vm1230, %vm1229
      %v1232 = vsel %vm1224, %v1212, 0
      %v1233 = vsel %vm1231, %v1213, 0
      %1236 = vrot.lane.b32.xlu0 %v1232, 98
      %v1237 = vpop.permute.xlu0 %1236
      %1238 = vrot.lane.b32.xlu0 %v1233, 98
      %v1239 = vpop.permute.xlu0 %1238
      %v1240 = vrot.slane %v1237, 4
      %v1241 = vrot.slane %v1239, 4
      %v1242 = vsel %vm417, %v1240, %v1241
      %v1243 = vsel %vm1059, %v1237, %v1242
      %1245 = vst [vmem:[#allocation4 + $0x60] sm:$0xff] %v1243
      %v1246 = vld [vmem:[#allocation3 + $0x14] sm:$0xff]
      %v1247 = vld [vmem:[#allocation3 + $0x1c] sm:$0xf]
      %v1248 = vsel %vm1224, %v1246, 0
      %v1249 = vsel %vm1231, %v1247, 0
      %1252 = vrot.lane.b32.xlu0 %v1248, 98
      %v1253 = vpop.permute.xlu0 %1252
      %1254 = vrot.lane.b32.xlu0 %v1249, 98
      %v1255 = vpop.permute.xlu0 %1254
      %v1256 = vrot.slane %v1253, 4
      %v1257 = vrot.slane %v1255, 4
      %v1258 = vsel %vm417, %v1256, %v1257
      %v1259 = vsel %vm1059, %v1253, %v1258
      %1261 = vst [vmem:[#allocation4 + $0x68] sm:$0xff] %v1259
      %v1262 = vld [vmem:[#allocation3 + $0x4] sm:$0xff]
      %v1263 = vld [vmem:[#allocation3 + $0xc] sm:$0xf]
      %1266 = vrot.lane.b32.xlu0 %v1262, 96
      %v1267 = vpop.permute.xlu0 %1266
      %1268 = vrot.lane.b32.xlu0 %v1263, 96
      %v1269 = vpop.permute.xlu0 %1268
      %v1270 = vrot.slane %v1267, 4
      %v1271 = vrot.slane %v1269, 4
      %v1272 = vsel %vm417, %v1270, %v1271
      %vm1273 = vcmask 785408
      %v1274 = vsel %vm1273, %v1267, %v1272
      %1276 = vst [vmem:[#allocation4 + $0x70] sm:$0xff] %v1274
      %v1277 = vld [vmem:[#allocation3 + $0x14] sm:$0xff]
      %v1278 = vld [vmem:[#allocation3 + $0x1c] sm:$0xf]
      %1281 = vrot.lane.b32.xlu0 %v1277, 96
      %v1282 = vpop.permute.xlu0 %1281
      %1283 = vrot.lane.b32.xlu0 %v1278, 96
      %v1284 = vpop.permute.xlu0 %1283
      %v1285 = vrot.slane %v1282, 4
      %v1286 = vrot.slane %v1284, 4
      %v1287 = vsel %vm417, %v1285, %v1286
      %v1288 = vsel %vm1273, %v1282, %v1287
      %1290 = vst [vmem:[#allocation4 + $0x78] sm:$0xff] %v1288
      %v1291 = vld [vmem:[#allocation3 + $0x4] sm:$0xff]
      %v1292 = vld [vmem:[#allocation3 + $0xc] sm:$0xf]
      %1293 = vrot.lane.b32.xlu0 %v1055, 34
      %v1294 = vpop.permute.xlu0 %1293
      %v1295 = vrot.slane %v1294, 4
      %v1296 = vsel %vm999, %v1295, %v1294
      %v1297 = vunpack.c.l.b16 %v1296
      %v1298 = vunpack.c.h.b16 %v1296
      %v1299 = vunpack.c.l.b16 0
      %v1300 = vunpack.c.h.b16 0
      %vm1301 = vcmp.ne.s32.totalorder %v1297, %v1299
      %vm1302 = vcmp.ne.s32.totalorder %v1298, %v1300
      %vm1303 = vmpackc.low %vm1302, %vm1301
      %v1304 = vunpack.c.l.b16 %v1295
      %v1305 = vunpack.c.h.b16 %v1295
      %v1306 = vunpack.c.l.b16 0
      %v1307 = vunpack.c.h.b16 0
      %vm1308 = vcmp.ne.s32.totalorder %v1304, %v1306
      %vm1309 = vcmp.ne.s32.totalorder %v1305, %v1307
      %vm1310 = vmpackc.low %vm1309, %vm1308
      %v1311 = vsel %vm1303, %v1291, 0
      %v1312 = vsel %vm1310, %v1292, 0
      %1315 = vrot.lane.b32.xlu0 %v1311, 94
      %v1316 = vpop.permute.xlu0 %1315
      %1317 = vrot.lane.b32.xlu0 %v1312, 94
      %v1318 = vpop.permute.xlu0 %1317
      %v1319 = vrot.slane %v1316, 4
      %v1320 = vrot.slane %v1318, 4
      %v1321 = vsel %vm417, %v1319, %v1320
      %v1322 = vsel %vm972, %v1316, %v1321
      %1324 = vst [vmem:[#allocation4 + $0x80] sm:$0xff] %v1322
      %v1325 = vld [vmem:[#allocation3 + $0x14] sm:$0xff]
      %v1326 = vld [vmem:[#allocation3 + $0x1c] sm:$0xf]
      %v1327 = vsel %vm1303, %v1325, 0
      %v1328 = vsel %vm1310, %v1326, 0
      %1331 = vrot.lane.b32.xlu0 %v1327, 94
      %v1332 = vpop.permute.xlu0 %1331
      %1333 = vrot.lane.b32.xlu0 %v1328, 94
      %v1334 = vpop.permute.xlu0 %1333
      %v1335 = vrot.slane %v1332, 4
      %v1336 = vrot.slane %v1334, 4
      %v1337 = vsel %vm417, %v1335, %v1336
      %v1338 = vsel %vm972, %v1332, %v1337
      %1340 = vst [vmem:[#allocation4 + $0x88] sm:$0xff] %v1338
      %s1341 = scalar_lea.vmem %s3, 2
      %v1342 = vld [vmem:[%s1341] sm:$0x3]
      %v1343 = vld [vmem:[#allocation4] sm:$0xff]
      %v1344 = vld [vmem:[#allocation4 + $0x8] sm:$0xff]
      %v1345 = vld [vmem:[#allocation4 + $0x10] sm:$0xff]
      %v1346 = vld [vmem:[#allocation4 + $0x18] sm:$0xff]
      %v1347 = vld [vmem:[#allocation4 + $0x20] sm:$0xff]
      %v1348 = vld [vmem:[#allocation4 + $0x28] sm:$0xff]
      %v1349 = vld [vmem:[#allocation4 + $0x30] sm:$0xff]
      %v1350 = vld [vmem:[#allocation4 + $0x38] sm:$0xff]
      %v1351 = vld [vmem:[#allocation4 + $0x40] sm:$0xff]
      %v1352 = vld [vmem:[#allocation4 + $0x48] sm:$0xff]
      %v1353 = vld [vmem:[#allocation4 + $0x50] sm:$0xff]
      %v1354 = vld [vmem:[#allocation4 + $0x58] sm:$0xff]
      %v1355 = vld [vmem:[#allocation4 + $0x60] sm:$0xff]
      %v1356 = vld [vmem:[#allocation4 + $0x68] sm:$0xff]
      %v1357 = vld [vmem:[#allocation4 + $0x70] sm:$0xff]
      %v1358 = vld [vmem:[#allocation4 + $0x78] sm:$0xff]
      %v1359 = vld [vmem:[#allocation4 + $0x80] sm:$0xff]
      %v1360 = vld [vmem:[#allocation4 + $0x88] sm:$0xff]
      %v1379 = vunpack.c.l.b16 %v1343
      %v1380 = vunpack.c.h.b16 %v1343
      %v1381 = vunpack.c.l.b16 %v1344
      %v1382 = vunpack.c.h.b16 %v1344
      %v1383 = vunpack.c.l.b16 %v1345
      %v1384 = vunpack.c.h.b16 %v1345
      %v1385 = vunpack.c.l.b16 %v1346
      %v1386 = vunpack.c.h.b16 %v1346
      %v1387 = vunpack.c.l.b16 %v1347
      %v1388 = vunpack.c.h.b16 %v1347
      %v1389 = vunpack.c.l.b16 %v1348
      %v1390 = vunpack.c.h.b16 %v1348
      %v1391 = vunpack.c.l.b16 %v1349
      %v1392 = vunpack.c.h.b16 %v1349
      %v1393 = vunpack.c.l.b16 %v1350
      %v1394 = vunpack.c.h.b16 %v1350
      %v1395 = vunpack.c.l.b16 %v1351
      %v1396 = vunpack.c.h.b16 %v1351
      %v1397 = vunpack.c.l.b16 %v1352
      %v1398 = vunpack.c.h.b16 %v1352
      %v1399 = vunpack.c.l.b16 %v1353
      %v1400 = vunpack.c.h.b16 %v1353
      %v1401 = vunpack.c.l.b16 %v1354
      %v1402 = vunpack.c.h.b16 %v1354
      %v1403 = vunpack.c.l.b16 %v1355
      %v1404 = vunpack.c.h.b16 %v1355
      %v1405 = vunpack.c.l.b16 %v1356
      %v1406 = vunpack.c.h.b16 %v1356
      %v1407 = vunpack.c.l.b16 %v1357
      %v1408 = vunpack.c.h.b16 %v1357
      %v1409 = vunpack.c.l.b16 %v1358
      %v1410 = vunpack.c.h.b16 %v1358
      %v1411 = vunpack.c.l.b16 %v1359
      %v1412 = vunpack.c.h.b16 %v1359
      %v1413 = vunpack.c.l.b16 %v1360
      %v1414 = vunpack.c.h.b16 %v1360
      %v1415 = vpack.c.b16 %v1383, %v1379
      %v1416 = vpack.c.b16 %v1384, %v1380
      %v1417 = vpack.c.b16 %v1385, %v1381
      %v1418 = vpack.c.b16 %v1386, %v1382
      %v1419 = vpack.c.b16 %v1391, %v1387
      %v1420 = vpack.c.b16 %v1392, %v1388
      %v1421 = vpack.c.b16 %v1393, %v1389
      %v1422 = vpack.c.b16 %v1394, %v1390
      %v1423 = vpack.c.b16 %v1399, %v1395
      %v1424 = vpack.c.b16 %v1400, %v1396
      %v1425 = vpack.c.b16 %v1401, %v1397
      %v1426 = vpack.c.b16 %v1402, %v1398
      %v1427 = vpack.c.b16 %v1407, %v1403
      %v1428 = vpack.c.b16 %v1408, %v1404
      %v1429 = vpack.c.b16 %v1409, %v1405
      %v1430 = vpack.c.b16 %v1410, %v1406
      %v1431 = vpack.c.b16 %v1411, %v1411
      %v1432 = vpack.c.b16 %v1412, %v1412
      %v1433 = vpack.c.b16 %v1413, %v1413
      %v1434 = vpack.c.b16 %v1414, %v1414
      %vm1451 = vcmask 588800
      %v1453 = vsel %vm1451, %v1342, 0
      %vm1455 = vcmask 1043456
      %v1457 = vsel %vm1455, %v1431, 0
      %v1460 = vsel %vm1455, %v1432, 0
      %v1463 = vsel %vm1455, %v1433, 0
      %v1466 = vsel %vm1455, %v1434, 0
      %1468 = vmatpush.bf16.msra.mxu0 0
      %1469 = vmatpush.bf16.msra.mxu0 0
      %1470 = vmatpush.bf16.msra.mxu0 0
      %1471 = vmatpush.bf16.msra.mxu0 %v1457
      %1472 = vmatpush.bf16.msra.mxu0 %v1427
      %1473 = vmatpush.bf16.msra.mxu0 %v1423
      %1474 = vmatpush.bf16.msra.mxu0 %v1419
      %1475 = vmatpush.bf16.msra.mxu0 %v1415
      %1476 = vmatmul.bf16.gmra.mxu0 %v1453
      %v1477 = vpop.f32.mrf.mxu0
      %v1478 = vadd.f32 0.0, %v1477
      %v1479 = vpop.f32.mrf.mxu0
      %1480 = vdwg.mxu0
      %1481 = vmatpush.bf16.msra.mxu0 0
      %1482 = vmatpush.bf16.msra.mxu0 0
      %1483 = vmatpush.bf16.msra.mxu0 0
      %1484 = vmatpush.bf16.msra.mxu0 %v1460
      %1485 = vmatpush.bf16.msra.mxu0 %v1428
      %1486 = vmatpush.bf16.msra.mxu0 %v1424
      %1487 = vmatpush.bf16.msra.mxu0 %v1420
      %1488 = vmatpush.bf16.msra.mxu0 %v1416
      %1489 = vmatmul.bf16.gmra.mxu0 %v1453
      %v1490 = vpop.f32.mrf.mxu0
      %v1491 = vadd.f32 0.0, %v1490
      %v1492 = vpop.f32.mrf.mxu0
      %1493 = vdwg.mxu0
      %1494 = vmatpush.bf16.msra.mxu0 0
      %1495 = vmatpush.bf16.msra.mxu0 0
      %1496 = vmatpush.bf16.msra.mxu0 0
      %1497 = vmatpush.bf16.msra.mxu0 %v1463
      %1498 = vmatpush.bf16.msra.mxu0 %v1429
      %1499 = vmatpush.bf16.msra.mxu0 %v1425
      %1500 = vmatpush.bf16.msra.mxu0 %v1421
      %1501 = vmatpush.bf16.msra.mxu0 %v1417
      %1502 = vmatmul.bf16.gmra.mxu0 %v1453
      %v1503 = vpop.f32.mrf.mxu0
      %v1504 = vadd.f32 0.0, %v1503
      %v1505 = vpop.f32.mrf.mxu0
      %1506 = vdwg.mxu0
      %1507 = vmatpush.bf16.msra.mxu0 0
      %1508 = vmatpush.bf16.msra.mxu0 0
      %1509 = vmatpush.bf16.msra.mxu0 0
      %1510 = vmatpush.bf16.msra.mxu0 %v1466
      %1511 = vmatpush.bf16.msra.mxu0 %v1430
      %1512 = vmatpush.bf16.msra.mxu0 %v1426
      %1513 = vmatpush.bf16.msra.mxu0 %v1422
      %1514 = vmatpush.bf16.msra.mxu0 %v1418
      %1515 = vmatmul.bf16.gmra.mxu0 %v1453
      %v1516 = vpop.f32.mrf.mxu0
      %v1517 = vadd.f32 0.0, %v1516
      %v1518 = vpop.f32.mrf.mxu0
      %1519 = vdwg.mxu0
      %1520 = vst [vmem:[#allocation2 + $0x20] sm:$0xf] %v1478
      %1521 = vst [vmem:[#allocation2 + $0x28] sm:$0xf] %v1491
      %1522 = vst [vmem:[#allocation2 + $0x30] sm:$0xf] %v1504
      %1523 = vst [vmem:[#allocation2 + $0x38] sm:$0xf] %v1517
      %s1524 = scalar_lea.vmem %s1, 32
      %v1525 = vld [vmem:[%s1524] sm:$0xff]
      %v1526 = vld [vmem:[%s1524 + $0x8] sm:$0xf]
      %s1527 = scalar_lea.vmem %s2, 32
      %v1528 = vld [vmem:[%s1527] sm:$0xff]
      %v1529 = vld [vmem:[%s1527 + $0x8] sm:$0xf]
      %v1530 = vld [vmem:[#allocation2] sm:$0xff]
      %v1531 = vld [vmem:[#allocation2 + $0x8] sm:$0xff]
      %v1532 = vld [vmem:[#allocation2 + $0x10] sm:$0xff]
      %v1533 = vld [vmem:[#allocation2 + $0x18] sm:$0xff]
      %v1534 = vld [vmem:[#allocation2 + $0x20] sm:$0xf]
      %v1535 = vld [vmem:[#allocation2 + $0x28] sm:$0xf]
      %v1536 = vld [vmem:[#allocation2 + $0x30] sm:$0xf]
      %v1537 = vld [vmem:[#allocation2 + $0x38] sm:$0xf]
      %1539 = vset.pattern.permute.xlu0 0
      %1540 = vperm.xlu0 %1539, %v1525
      %v1541 = vpop.permute.xlu0 %1540
      %1544 = vset.pattern.permute.xlu0 0
      %1545 = vperm.xlu0 %1544, %v1526
      %v1546 = vpop.permute.xlu0 %1545
      %v1548 = vmul.f32 %v1530, %v1541
      %v1549 = vmul.f32 %v1531, %v1541
      %v1550 = vmul.f32 %v1532, %v1541
      %v1551 = vmul.f32 %v1533, %v1541
      %v1552 = vmul.f32 %v1534, %v1546
      %v1553 = vmul.f32 %v1535, %v1546
      %v1554 = vmul.f32 %v1536, %v1546
      %v1555 = vmul.f32 %v1537, %v1546
      %1557 = vset.pattern.permute.xlu0 0
      %1558 = vperm.xlu0 %1557, %v1528
      %v1559 = vpop.permute.xlu0 %1558
      %1562 = vset.pattern.permute.xlu0 0
      %1563 = vperm.xlu0 %1562, %v1529
      %v1564 = vpop.permute.xlu0 %1563
      %v1566 = vadd.f32 %v1548, %v1559
      %v1567 = vadd.f32 %v1549, %v1559
      %v1568 = vadd.f32 %v1550, %v1559
      %v1569 = vadd.f32 %v1551, %v1559
      %v1570 = vadd.f32 %v1552, %v1564
      %v1571 = vadd.f32 %v1553, %v1564
      %v1572 = vadd.f32 %v1554, %v1564
      %v1573 = vadd.f32 %v1555, %v1564
      %v1574 = vmax.f32 %v1566, 0.0
      %v1575 = vmax.f32 %v1567, 0.0
      %v1576 = vmax.f32 %v1568, 0.0
      %v1577 = vmax.f32 %v1569, 0.0
      %v1578 = vmax.f32 %v1570, 0.0
      %v1579 = vmax.f32 %v1571, 0.0
      %v1580 = vmax.f32 %v1572, 0.0
      %v1581 = vmax.f32 %v1573, 0.0
      %v1582 = vpack.c.bf16 %v1575, %v1574
      %v1583 = vpack.c.bf16 %v1577, %v1576
      %v1584 = vpack.c.bf16 %v1579, %v1578
      %v1585 = vpack.c.bf16 %v1581, %v1580
      %vm1586 = vcmp.ge.s32.totalorder %v342, 3
      %vm1587 = vcmp.ge.s32.totalorder %v343, 3
      %vm1588 = vcmp.lt.s32.totalorder %v342, 13
      %vm1589 = vcmp.lt.s32.totalorder %v343, 13
      %1590 = vst [vmem:[#allocation3 + $0x4] sm:$0xff] %v1582
      %1591 = vst [vmem:[#allocation3 + $0x24] sm:$0x33] %v1584
      %1592 = vst [vmem:[#allocation3 + $0x14] sm:$0xff] %v1583
      %1593 = vst [vmem:[#allocation3 + $0x34] sm:$0x33] %v1585
      %v1594 = vld [vmem:[#allocation3] sm:$0xff]
      %v1595 = vld [vmem:[#allocation3 + $0x8] sm:$0xf]
      %v1596 = vld [vmem:[#allocation3 + $0x20] sm:$0x33]
      %v1597 = vld [vmem:[#allocation3 + $0x28] sm:$0x3]
      %v1598 = vsel %vm1586, 1, 0
      %v1599 = vsel %vm1587, 1, 0
      %vm1600 = vcmp.eq.s32.totalorder %v1598, 1
      %vm1601 = vcmp.eq.s32.totalorder %v1599, 1
      %vm1602 = vmpackc.low %vm1601, %vm1600
      %v1603 = vsel %vm1602, 65537, 0
      %1604 = vrot.lane.b32.xlu0 %v1603, 77
      %v1605 = vpop.permute.xlu0 %1604
      %v1606 = vrot.slane %v1605, 4
      %vm1607 = vcmask 629760
      %v1608 = vsel %vm1607, %v1606, %v1605
      %v1609 = vunpack.c.l.b16 %v1608
      %v1610 = vunpack.c.h.b16 %v1608
      %v1611 = vunpack.c.l.b16 0
      %v1612 = vunpack.c.h.b16 0
      %vm1613 = vcmp.ne.s32.totalorder %v1609, %v1611
      %vm1614 = vcmp.ne.s32.totalorder %v1610, %v1612
      %vm1615 = vmpackc.low %vm1614, %vm1613
      %v1616 = vunpack.c.l.b16 %v1606
      %v1617 = vunpack.c.h.b16 %v1606
      %v1618 = vunpack.c.l.b16 0
      %v1619 = vunpack.c.h.b16 0
      %vm1620 = vcmp.ne.s32.totalorder %v1616, %v1618
      %vm1621 = vcmp.ne.s32.totalorder %v1617, %v1619
      %vm1622 = vmpackc.low %vm1621, %vm1620
      %v1623 = vsel %vm1615, %v1594, 0
      %v1624 = vsel %vm1622, %v1595, 0
      %v1625 = vsel %vm1615, %v1596, 0
      %v1626 = vsel %vm1622, %v1597, 0
      %1631 = vrot.lane.b32.xlu0 %v1623, 51
      %v1632 = vpop.permute.xlu0 %1631
      %1633 = vrot.lane.b32.xlu0 %v1624, 51
      %v1634 = vpop.permute.xlu0 %1633
      %1635 = vrot.lane.b32.xlu0 %v1625, 51
      %v1636 = vpop.permute.xlu0 %1635
      %1637 = vrot.lane.b32.xlu0 %v1626, 51
      %v1638 = vpop.permute.xlu0 %1637
      %v1639 = vrot.slane %v1632, 4
      %v1640 = vrot.slane %v1634, 4
      %v1641 = vrot.slane %v1636, 4
      %v1642 = vrot.slane %v1638, 4
      %v1643 = vsel %vm417, %v1639, %v1640
      %vm1644 = vcmask 416768
      %v1645 = vsel %vm1644, %v1632, %v1643
      %v1646 = vsel %vm417, %v1641, %v1642
      %v1647 = vsel %vm1644, %v1636, %v1646
      %1650 = vst [vmem:[#allocation4] sm:$0xff] %v1645
      %1651 = vst [vmem:[#allocation4 + $0x10] sm:$0x33] %v1647
      %v1652 = vld [vmem:[#allocation3 + $0x10] sm:$0xff]
      %v1653 = vld [vmem:[#allocation3 + $0x18] sm:$0xf]
      %v1654 = vld [vmem:[#allocation3 + $0x30] sm:$0x33]
      %v1655 = vld [vmem:[#allocation3 + $0x38] sm:$0x3]
      %v1656 = vsel %vm1615, %v1652, 0
      %v1657 = vsel %vm1622, %v1653, 0
      %v1658 = vsel %vm1615, %v1654, 0
      %v1659 = vsel %vm1622, %v1655, 0
      %1664 = vrot.lane.b32.xlu0 %v1656, 51
      %v1665 = vpop.permute.xlu0 %1664
      %1666 = vrot.lane.b32.xlu0 %v1657, 51
      %v1667 = vpop.permute.xlu0 %1666
      %1668 = vrot.lane.b32.xlu0 %v1658, 51
      %v1669 = vpop.permute.xlu0 %1668
      %1670 = vrot.lane.b32.xlu0 %v1659, 51
      %v1671 = vpop.permute.xlu0 %1670
      %v1672 = vrot.slane %v1665, 4
      %v1673 = vrot.slane %v1667, 4
      %v1674 = vrot.slane %v1669, 4
      %v1675 = vrot.slane %v1671, 4
      %v1676 = vsel %vm417, %v1672, %v1673
      %v1677 = vsel %vm1644, %v1665, %v1676
      %v1678 = vsel %vm417, %v1674, %v1675
      %v1679 = vsel %vm1644, %v1669, %v1678
      %1682 = vst [vmem:[#allocation4 + $0x8] sm:$0xff] %v1677
      %1683 = vst [vmem:[#allocation4 + $0x18] sm:$0x33] %v1679
      %v1684 = vld [vmem:[#allocation3] sm:$0xff]
      %v1685 = vld [vmem:[#allocation3 + $0x8] sm:$0xf]
      %v1686 = vld [vmem:[#allocation3 + $0x20] sm:$0x33]
      %v1687 = vld [vmem:[#allocation3 + $0x28] sm:$0x3]
      %vm1692 = vcmask 1041408
      %vm1693 = vcmask 1045508
      %vm1694 = vmor %vm1692, %vm1693
      %v1695 = vrot.slane %v1684, 6
      %v1696 = vrot.slane %v1685, 6
      %v1697 = vrot.slane %v1695, 4
      %v1698 = vrot.slane %v1686, 6
      %v1699 = vsel %vm1694, %v1697, %v1698
      %v1700 = vrot.slane %v1696, 4
      %v1701 = vrot.slane %v1687, 6
      %v1702 = vsel %vm1694, %v1700, %v1701
      %1703 = vrot.lane.b32.xlu0 %v1695, 48
      %v1704 = vpop.permute.xlu0 %1703
      %1705 = vrot.lane.b32.xlu0 %v1696, 48
      %v1706 = vpop.permute.xlu0 %1705
      %1707 = vrot.lane.b32.xlu0 %v1699, 48
      %v1708 = vpop.permute.xlu0 %1707
      %1709 = vrot.lane.b32.xlu0 %v1702, 48
      %v1710 = vpop.permute.xlu0 %1709
      %v1711 = vrot.slane %v1704, 4
      %v1712 = vrot.slane %v1706, 4
      %v1713 = vrot.slane %v1708, 4
      %v1714 = vrot.slane %v1710, 4
      %v1715 = vsel %vm417, %v1711, %v1712
      %vm1716 = vcmask 392192
      %v1717 = vsel %vm1716, %v1704, %v1715
      %v1718 = vsel %vm417, %v1713, %v1714
      %v1719 = vsel %vm1716, %v1708, %v1718
      %1722 = vst [vmem:[#allocation4 + $0x10] sm:$0xcc] %v1717
      %1723 = vst [vmem:[#allocation4 + $0x20] sm:$0xff] %v1719
      %v1724 = vld [vmem:[#allocation3 + $0x10] sm:$0xff]
      %v1725 = vld [vmem:[#allocation3 + $0x18] sm:$0xf]
      %v1726 = vld [vmem:[#allocation3 + $0x30] sm:$0x33]
      %v1727 = vld [vmem:[#allocation3 + $0x38] sm:$0x3]
      %v1732 = vrot.slane %v1724, 6
      %v1733 = vrot.slane %v1725, 6
      %v1734 = vrot.slane %v1732, 4
      %v1735 = vrot.slane %v1726, 6
      %v1736 = vsel %vm1694, %v1734, %v1735
      %v1737 = vrot.slane %v1733, 4
      %v1738 = vrot.slane %v1727, 6
      %v1739 = vsel %vm1694, %v1737, %v1738
      %1740 = vrot.lane.b32.xlu0 %v1732, 48
      %v1741 = vpop.permute.xlu0 %1740
      %1742 = vrot.lane.b32.xlu0 %v1733, 48
      %v1743 = vpop.permute.xlu0 %1742
      %1744 = vrot.lane.b32.xlu0 %v1736, 48
      %v1745 = vpop.permute.xlu0 %1744
      %1746 = vrot.lane.b32.xlu0 %v1739, 48
      %v1747 = vpop.permute.xlu0 %1746
      %v1748 = vrot.slane %v1741, 4
      %v1749 = vrot.slane %v1743, 4
      %v1750 = vrot.slane %v1745, 4
      %v1751 = vrot.slane %v1747, 4
      %v1752 = vsel %vm417, %v1748, %v1749
      %v1753 = vsel %vm1716, %v1741, %v1752
      %v1754 = vsel %vm417, %v1750, %v1751
      %v1755 = vsel %vm1716, %v1745, %v1754
      %1758 = vst [vmem:[#allocation4 + $0x18] sm:$0xcc] %v1753
      %1759 = vst [vmem:[#allocation4 + $0x28] sm:$0xff] %v1755
      %v1760 = vld [vmem:[#allocation3] sm:$0xff]
      %v1761 = vld [vmem:[#allocation3 + $0x8] sm:$0xf]
      %v1762 = vld [vmem:[#allocation3 + $0x20] sm:$0x33]
      %v1763 = vld [vmem:[#allocation3 + $0x28] sm:$0x3]
      %v1764 = vsel %vm1588, 1, 0
      %v1765 = vsel %vm1589, 1, 0
      %vm1766 = vcmp.eq.s32.totalorder %v1764, 1
      %vm1767 = vcmp.eq.s32.totalorder %v1765, 1
      %vm1768 = vmpackc.low %vm1767, %vm1766
      %v1769 = vsel %vm1768, 65537, 0
      %1770 = vrot.lane.b32.xlu0 %v1769, 83
      %v1771 = vpop.permute.xlu0 %1770
      %v1772 = vrot.slane %v1771, 4
      %vm1773 = vcmask 678912
      %v1774 = vsel %vm1773, %v1772, %v1771
      %v1775 = vunpack.c.l.b16 %v1774
      %v1776 = vunpack.c.h.b16 %v1774
      %v1777 = vunpack.c.l.b16 0
      %v1778 = vunpack.c.h.b16 0
      %vm1779 = vcmp.ne.s32.totalorder %v1775, %v1777
      %vm1780 = vcmp.ne.s32.totalorder %v1776, %v1778
      %vm1781 = vmpackc.low %vm1780, %vm1779
      %v1782 = vunpack.c.l.b16 %v1772
      %v1783 = vunpack.c.h.b16 %v1772
      %v1784 = vunpack.c.l.b16 0
      %v1785 = vunpack.c.h.b16 0
      %vm1786 = vcmp.ne.s32.totalorder %v1782, %v1784
      %vm1787 = vcmp.ne.s32.totalorder %v1783, %v1785
      %vm1788 = vmpackc.low %vm1787, %vm1786
      %v1789 = vsel %vm1781, %v1760, 0
      %v1790 = vsel %vm1788, %v1761, 0
      %v1791 = vsel %vm1781, %v1762, 0
      %v1792 = vsel %vm1788, %v1763, 0
      %1797 = vrot.lane.b32.xlu0 %v1789, 45
      %v1798 = vpop.permute.xlu0 %1797
      %1799 = vrot.lane.b32.xlu0 %v1790, 45
      %v1800 = vpop.permute.xlu0 %1799
      %1801 = vrot.lane.b32.xlu0 %v1791, 45
      %v1802 = vpop.permute.xlu0 %1801
      %1803 = vrot.lane.b32.xlu0 %v1792, 45
      %v1804 = vpop.permute.xlu0 %1803
      %v1805 = vrot.slane %v1798, 4
      %v1806 = vrot.slane %v1800, 4
      %v1807 = vrot.slane %v1802, 4
      %v1808 = vrot.slane %v1804, 4
      %v1809 = vsel %vm417, %v1805, %v1806
      %vm1810 = vcmask 367616
      %v1811 = vsel %vm1810, %v1798, %v1809
      %v1812 = vsel %vm417, %v1807, %v1808
      %v1813 = vsel %vm1810, %v1802, %v1812
      %1816 = vst [vmem:[#allocation4 + $0x30] sm:$0xff] %v1811
      %1817 = vst [vmem:[#allocation4 + $0x40] sm:$0x33] %v1813
      %v1818 = vld [vmem:[#allocation3 + $0x10] sm:$0xff]
      %v1819 = vld [vmem:[#allocation3 + $0x18] sm:$0xf]
      %v1820 = vld [vmem:[#allocation3 + $0x30] sm:$0x33]
      %v1821 = vld [vmem:[#allocation3 + $0x38] sm:$0x3]
      %v1822 = vsel %vm1781, %v1818, 0
      %v1823 = vsel %vm1788, %v1819, 0
      %v1824 = vsel %vm1781, %v1820, 0
      %v1825 = vsel %vm1788, %v1821, 0
      %1830 = vrot.lane.b32.xlu0 %v1822, 45
      %v1831 = vpop.permute.xlu0 %1830
      %1832 = vrot.lane.b32.xlu0 %v1823, 45
      %v1833 = vpop.permute.xlu0 %1832
      %1834 = vrot.lane.b32.xlu0 %v1824, 45
      %v1835 = vpop.permute.xlu0 %1834
      %1836 = vrot.lane.b32.xlu0 %v1825, 45
      %v1837 = vpop.permute.xlu0 %1836
      %v1838 = vrot.slane %v1831, 4
      %v1839 = vrot.slane %v1833, 4
      %v1840 = vrot.slane %v1835, 4
      %v1841 = vrot.slane %v1837, 4
      %v1842 = vsel %vm417, %v1838, %v1839
      %v1843 = vsel %vm1810, %v1831, %v1842
      %v1844 = vsel %vm417, %v1840, %v1841
      %v1845 = vsel %vm1810, %v1835, %v1844
      %1848 = vst [vmem:[#allocation4 + $0x38] sm:$0xff] %v1843
      %1849 = vst [vmem:[#allocation4 + $0x48] sm:$0x33] %v1845
      %v1850 = vld [vmem:[#allocation3] sm:$0xff]
      %v1851 = vld [vmem:[#allocation3 + $0x8] sm:$0xf]
      %v1852 = vld [vmem:[#allocation3 + $0x20] sm:$0x33]
      %v1853 = vld [vmem:[#allocation3 + $0x28] sm:$0x3]
      %1854 = vrot.lane.b32.xlu0 %v1603, 125
      %v1855 = vpop.permute.xlu0 %1854
      %v1856 = vrot.slane %v1855, 4
      %vm1857 = vcmask 1022976
      %v1858 = vsel %vm1857, %v1856, %v1855
      %v1859 = vunpack.c.l.b16 %v1858
      %v1860 = vunpack.c.h.b16 %v1858
      %v1861 = vunpack.c.l.b16 0
      %v1862 = vunpack.c.h.b16 0
      %vm1863 = vcmp.ne.s32.totalorder %v1859, %v1861
      %vm1864 = vcmp.ne.s32.totalorder %v1860, %v1862
      %vm1865 = vmpackc.low %vm1864, %vm1863
      %v1866 = vunpack.c.l.b16 %v1856
      %v1867 = vunpack.c.h.b16 %v1856
      %v1868 = vunpack.c.l.b16 0
      %v1869 = vunpack.c.h.b16 0
      %vm1870 = vcmp.ne.s32.totalorder %v1866, %v1868
      %vm1871 = vcmp.ne.s32.totalorder %v1867, %v1869
      %vm1872 = vmpackc.low %vm1871, %vm1870
      %v1873 = vsel %vm1865, %v1850, 0
      %v1874 = vsel %vm1872, %v1851, 0
      %v1875 = vsel %vm1865, %v1852, 0
      %v1876 = vsel %vm1872, %v1853, 0
      %v1881 = vrot.slane %v1873, 6
      %v1882 = vrot.slane %v1874, 6
      %v1883 = vrot.slane %v1881, 4
      %v1884 = vrot.slane %v1875, 6
      %v1885 = vsel %vm1694, %v1883, %v1884
      %v1886 = vrot.slane %v1882, 4
      %v1887 = vrot.slane %v1876, 6
      %v1888 = vsel %vm1694, %v1886, %v1887
      %1889 = vrot.lane.b32.xlu0 %v1881, 3
      %v1890 = vpop.permute.xlu0 %1889
      %1891 = vrot.lane.b32.xlu0 %v1882, 3
      %v1892 = vpop.permute.xlu0 %1891
      %1893 = vrot.lane.b32.xlu0 %v1885, 3
      %v1894 = vpop.permute.xlu0 %1893
      %1895 = vrot.lane.b32.xlu0 %v1888, 3
      %v1896 = vpop.permute.xlu0 %1895
      %v1897 = vrot.slane %v1890, 4
      %v1898 = vrot.slane %v1892, 4
      %v1899 = vrot.slane %v1894, 4
      %v1900 = vrot.slane %v1896, 4
      %v1901 = vsel %vm417, %v1897, %v1898
      %vm1902 = vcmask 23552
      %v1903 = vsel %vm1902, %v1890, %v1901
      %v1904 = vsel %vm417, %v1899, %v1900
      %v1905 = vsel %vm1902, %v1894, %v1904
      %1908 = vst [vmem:[#allocation4 + $0x40] sm:$0xcc] %v1903
      %1909 = vst [vmem:[#allocation4 + $0x50] sm:$0xff] %v1905
      %v1910 = vld [vmem:[#allocation3 + $0x10] sm:$0xff]
      %v1911 = vld [vmem:[#allocation3 + $0x18] sm:$0xf]
      %v1912 = vld [vmem:[#allocation3 + $0x30] sm:$0x33]
      %v1913 = vld [vmem:[#allocation3 + $0x38] sm:$0x3]
      %v1914 = vsel %vm1865, %v1910, 0
      %v1915 = vsel %vm1872, %v1911, 0
      %v1916 = vsel %vm1865, %v1912, 0
      %v1917 = vsel %vm1872, %v1913, 0
      %v1922 = vrot.slane %v1914, 6
      %v1923 = vrot.slane %v1915, 6
      %v1924 = vrot.slane %v1922, 4
      %v1925 = vrot.slane %v1916, 6
      %v1926 = vsel %vm1694, %v1924, %v1925
      %v1927 = vrot.slane %v1923, 4
      %v1928 = vrot.slane %v1917, 6
      %v1929 = vsel %vm1694, %v1927, %v1928
      %1930 = vrot.lane.b32.xlu0 %v1922, 3
      %v1931 = vpop.permute.xlu0 %1930
      %1932 = vrot.lane.b32.xlu0 %v1923, 3
      %v1933 = vpop.permute.xlu0 %1932
      %1934 = vrot.lane.b32.xlu0 %v1926, 3
      %v1935 = vpop.permute.xlu0 %1934
      %1936 = vrot.lane.b32.xlu0 %v1929, 3
      %v1937 = vpop.permute.xlu0 %1936
      %v1938 = vrot.slane %v1931, 4
      %v1939 = vrot.slane %v1933, 4
      %v1940 = vrot.slane %v1935, 4
      %v1941 = vrot.slane %v1937, 4
      %v1942 = vsel %vm417, %v1938, %v1939
      %v1943 = vsel %vm1902, %v1931, %v1942
      %v1944 = vsel %vm417, %v1940, %v1941
      %v1945 = vsel %vm1902, %v1935, %v1944
      %1948 = vst [vmem:[#allocation4 + $0x48] sm:$0xcc] %v1943
      %1949 = vst [vmem:[#allocation4 + $0x58] sm:$0xff] %v1945
      %v1950 = vld [vmem:[#allocation3 + $0x4] sm:$0xff]
      %v1951 = vld [vmem:[#allocation3 + $0x24] sm:$0x33]
      %1952 = vst [vmem:[#allocation4 + $0x60] sm:$0xff] %v1950
      %1953 = vst [vmem:[#allocation4 + $0x70] sm:$0x33] %v1951
      %v1954 = vld [vmem:[#allocation3 + $0x14] sm:$0xff]
      %v1955 = vld [vmem:[#allocation3 + $0x34] sm:$0x33]
      %1956 = vst [vmem:[#allocation4 + $0x68] sm:$0xff] %v1954
      %1957 = vst [vmem:[#allocation4 + $0x78] sm:$0x33] %v1955
      %v1958 = vld [vmem:[#allocation3 + $0x4] sm:$0xff]
      %v1959 = vld [vmem:[#allocation3 + $0xc] sm:$0xf]
      %v1960 = vld [vmem:[#allocation3 + $0x24] sm:$0x33]
      %v1961 = vld [vmem:[#allocation3 + $0x2c] sm:$0x3]
      %1962 = vrot.lane.b32.xlu0 %v1769, 3
      %v1963 = vpop.permute.xlu0 %1962
      %v1964 = vrot.slane %v1963, 4
      %v1965 = vsel %vm1902, %v1964, %v1963
      %v1966 = vunpack.c.l.b16 %v1965
      %v1967 = vunpack.c.h.b16 %v1965
      %v1968 = vunpack.c.l.b16 0
      %v1969 = vunpack.c.h.b16 0
      %vm1970 = vcmp.ne.s32.totalorder %v1966, %v1968
      %vm1971 = vcmp.ne.s32.totalorder %v1967, %v1969
      %vm1972 = vmpackc.low %vm1971, %vm1970
      %v1973 = vunpack.c.l.b16 %v1964
      %v1974 = vunpack.c.h.b16 %v1964
      %v1975 = vunpack.c.l.b16 0
      %v1976 = vunpack.c.h.b16 0
      %vm1977 = vcmp.ne.s32.totalorder %v1973, %v1975
      %vm1978 = vcmp.ne.s32.totalorder %v1974, %v1976
      %vm1979 = vmpackc.low %vm1978, %vm1977
      %v1980 = vsel %vm1972, %v1958, 0
      %v1981 = vsel %vm1979, %v1959, 0
      %v1982 = vsel %vm1972, %v1960, 0
      %v1983 = vsel %vm1979, %v1961, 0
      %v1988 = vrot.slane %v1980, 6
      %v1989 = vrot.slane %v1981, 6
      %v1990 = vrot.slane %v1988, 4
      %v1991 = vrot.slane %v1982, 6
      %v1992 = vsel %vm1694, %v1990, %v1991
      %v1993 = vrot.slane %v1989, 4
      %v1994 = vrot.slane %v1983, 6
      %v1995 = vsel %vm1694, %v1993, %v1994
      %1996 = vrot.lane.b32.xlu0 %v1988, 125
      %v1997 = vpop.permute.xlu0 %1996
      %1998 = vrot.lane.b32.xlu0 %v1989, 125
      %v1999 = vpop.permute.xlu0 %1998
      %2000 = vrot.lane.b32.xlu0 %v1992, 125
      %v2001 = vpop.permute.xlu0 %2000
      %2002 = vrot.lane.b32.xlu0 %v1995, 125
      %v2003 = vpop.permute.xlu0 %2002
      %v2004 = vrot.slane %v1997, 4
      %v2005 = vrot.slane %v1999, 4
      %v2006 = vrot.slane %v2001, 4
      %v2007 = vrot.slane %v2003, 4
      %v2008 = vsel %vm417, %v2004, %v2005
      %v2009 = vsel %vm1857, %v1997, %v2008
      %v2010 = vsel %vm417, %v2006, %v2007
      %v2011 = vsel %vm1857, %v2001, %v2010
      %2014 = vst [vmem:[#allocation4 + $0x70] sm:$0xcc] %v2009
      %2015 = vst [vmem:[#allocation4 + $0x80] sm:$0xff] %v2011
      %v2016 = vld [vmem:[#allocation3 + $0x14] sm:$0xff]
      %v2017 = vld [vmem:[#allocation3 + $0x1c] sm:$0xf]
      %v2018 = vld [vmem:[#allocation3 + $0x34] sm:$0x33]
      %v2019 = vld [vmem:[#allocation3 + $0x3c] sm:$0x3]
      %v2020 = vsel %vm1972, %v2016, 0
      %v2021 = vsel %vm1979, %v2017, 0
      %v2022 = vsel %vm1972, %v2018, 0
      %v2023 = vsel %vm1979, %v2019, 0
      %v2028 = vrot.slane %v2020, 6
      %v2029 = vrot.slane %v2021, 6
      %v2030 = vrot.slane %v2028, 4
      %v2031 = vrot.slane %v2022, 6
      %v2032 = vsel %vm1694, %v2030, %v2031
      %v2033 = vrot.slane %v2029, 4
      %v2034 = vrot.slane %v2023, 6
      %v2035 = vsel %vm1694, %v2033, %v2034
      %2036 = vrot.lane.b32.xlu0 %v2028, 125
      %v2037 = vpop.permute.xlu0 %2036
      %2038 = vrot.lane.b32.xlu0 %v2029, 125
      %v2039 = vpop.permute.xlu0 %2038
      %2040 = vrot.lane.b32.xlu0 %v2032, 125
      %v2041 = vpop.permute.xlu0 %2040
      %2042 = vrot.lane.b32.xlu0 %v2035, 125
      %v2043 = vpop.permute.xlu0 %2042
      %v2044 = vrot.slane %v2037, 4
      %v2045 = vrot.slane %v2039, 4
      %v2046 = vrot.slane %v2041, 4
      %v2047 = vrot.slane %v2043, 4
      %v2048 = vsel %vm417, %v2044, %v2045
      %v2049 = vsel %vm1857, %v2037, %v2048
      %v2050 = vsel %vm417, %v2046, %v2047
      %v2051 = vsel %vm1857, %v2041, %v2050
      %2054 = vst [vmem:[#allocation4 + $0x78] sm:$0xcc] %v2049
      %2055 = vst [vmem:[#allocation4 + $0x88] sm:$0xff] %v2051
      %v2056 = vld [vmem:[#allocation3 + $0x4] sm:$0xff]
      %v2057 = vld [vmem:[#allocation3 + $0xc] sm:$0xf]
      %v2058 = vld [vmem:[#allocation3 + $0x24] sm:$0x33]
      %v2059 = vld [vmem:[#allocation3 + $0x2c] sm:$0x3]
      %2060 = vrot.lane.b32.xlu0 %v1603, 45
      %v2061 = vpop.permute.xlu0 %2060
      %v2062 = vrot.slane %v2061, 4
      %v2063 = vsel %vm1810, %v2062, %v2061
      %v2064 = vunpack.c.l.b16 %v2063
      %v2065 = vunpack.c.h.b16 %v2063
      %v2066 = vunpack.c.l.b16 0
      %v2067 = vunpack.c.h.b16 0
      %vm2068 = vcmp.ne.s32.totalorder %v2064, %v2066
      %vm2069 = vcmp.ne.s32.totalorder %v2065, %v2067
      %vm2070 = vmpackc.low %vm2069, %vm2068
      %v2071 = vunpack.c.l.b16 %v2062
      %v2072 = vunpack.c.h.b16 %v2062
      %v2073 = vunpack.c.l.b16 0
      %v2074 = vunpack.c.h.b16 0
      %vm2075 = vcmp.ne.s32.totalorder %v2071, %v2073
      %vm2076 = vcmp.ne.s32.totalorder %v2072, %v2074
      %vm2077 = vmpackc.low %vm2076, %vm2075
      %v2078 = vsel %vm2070, %v2056, 0
      %v2079 = vsel %vm2077, %v2057, 0
      %v2080 = vsel %vm2070, %v2058, 0
      %v2081 = vsel %vm2077, %v2059, 0
      %2086 = vrot.lane.b32.xlu0 %v2078, 83
      %v2087 = vpop.permute.xlu0 %2086
      %2088 = vrot.lane.b32.xlu0 %v2079, 83
      %v2089 = vpop.permute.xlu0 %2088
      %2090 = vrot.lane.b32.xlu0 %v2080, 83
      %v2091 = vpop.permute.xlu0 %2090
      %2092 = vrot.lane.b32.xlu0 %v2081, 83
      %v2093 = vpop.permute.xlu0 %2092
      %v2094 = vrot.slane %v2087, 4
      %v2095 = vrot.slane %v2089, 4
      %v2096 = vrot.slane %v2091, 4
      %v2097 = vrot.slane %v2093, 4
      %v2098 = vsel %vm417, %v2094, %v2095
      %v2099 = vsel %vm1773, %v2087, %v2098
      %v2100 = vsel %vm417, %v2096, %v2097
      %v2101 = vsel %vm1773, %v2091, %v2100
      %2104 = vst [vmem:[#allocation4 + $0x90] sm:$0xff] %v2099
      %2105 = vst [vmem:[#allocation4 + $0xa0] sm:$0x33] %v2101
      %v2106 = vld [vmem:[#allocation3 + $0x14] sm:$0xff]
      %v2107 = vld [vmem:[#allocation3 + $0x1c] sm:$0xf]
      %v2108 = vld [vmem:[#allocation3 + $0x34] sm:$0x33]
      %v2109 = vld [vmem:[#allocation3 + $0x3c] sm:$0x3]
      %v2110 = vsel %vm2070, %v2106, 0
      %v2111 = vsel %vm2077, %v2107, 0
      %v2112 = vsel %vm2070, %v2108, 0
      %v2113 = vsel %vm2077, %v2109, 0
      %2118 = vrot.lane.b32.xlu0 %v2110, 83
      %v2119 = vpop.permute.xlu0 %2118
      %2120 = vrot.lane.b32.xlu0 %v2111, 83
      %v2121 = vpop.permute.xlu0 %2120
      %2122 = vrot.lane.b32.xlu0 %v2112, 83
      %v2123 = vpop.permute.xlu0 %2122
      %2124 = vrot.lane.b32.xlu0 %v2113, 83
      %v2125 = vpop.permute.xlu0 %2124
      %v2126 = vrot.slane %v2119, 4
      %v2127 = vrot.slane %v2121, 4
      %v2128 = vrot.slane %v2123, 4
      %v2129 = vrot.slane %v2125, 4
      %v2130 = vsel %vm417, %v2126, %v2127
      %v2131 = vsel %vm1773, %v2119, %v2130
      %v2132 = vsel %vm417, %v2128, %v2129
      %v2133 = vsel %vm1773, %v2123, %v2132
      %2136 = vst [vmem:[#allocation4 + $0x98] sm:$0xff] %v2131
      %2137 = vst [vmem:[#allocation4 + $0xa8] sm:$0x33] %v2133
      %v2138 = vld [vmem:[#allocation3 + $0x4] sm:$0xff]
      %v2139 = vld [vmem:[#allocation3 + $0xc] sm:$0xf]
      %v2140 = vld [vmem:[#allocation3 + $0x24] sm:$0x33]
      %v2141 = vld [vmem:[#allocation3 + $0x2c] sm:$0x3]
      %v2146 = vrot.slane %v2138, 6
      %v2147 = vrot.slane %v2139, 6
      %v2148 = vrot.slane %v2146, 4
      %v2149 = vrot.slane %v2140, 6
      %v2150 = vsel %vm1694, %v2148, %v2149
      %v2151 = vrot.slane %v2147, 4
      %v2152 = vrot.slane %v2141, 6
      %v2153 = vsel %vm1694, %v2151, %v2152
      %2154 = vrot.lane.b32.xlu0 %v2146, 80
      %v2155 = vpop.permute.xlu0 %2154
      %2156 = vrot.lane.b32.xlu0 %v2147, 80
      %v2157 = vpop.permute.xlu0 %2156
      %2158 = vrot.lane.b32.xlu0 %v2150, 80
      %v2159 = vpop.permute.xlu0 %2158
      %2160 = vrot.lane.b32.xlu0 %v2153, 80
      %v2161 = vpop.permute.xlu0 %2160
      %v2162 = vrot.slane %v2155, 4
      %v2163 = vrot.slane %v2157, 4
      %v2164 = vrot.slane %v2159, 4
      %v2165 = vrot.slane %v2161, 4
      %v2166 = vsel %vm417, %v2162, %v2163
      %vm2167 = vcmask 654336
      %v2168 = vsel %vm2167, %v2155, %v2166
      %v2169 = vsel %vm417, %v2164, %v2165
      %v2170 = vsel %vm2167, %v2159, %v2169
      %2173 = vst [vmem:[#allocation4 + $0xa0] sm:$0xcc] %v2168
      %2174 = vst [vmem:[#allocation4 + $0xb0] sm:$0xff] %v2170
      %v2175 = vld [vmem:[#allocation3 + $0x14] sm:$0xff]
      %v2176 = vld [vmem:[#allocation3 + $0x1c] sm:$0xf]
      %v2177 = vld [vmem:[#allocation3 + $0x34] sm:$0x33]
      %v2178 = vld [vmem:[#allocation3 + $0x3c] sm:$0x3]
      %v2183 = vrot.slane %v2175, 6
      %v2184 = vrot.slane %v2176, 6
      %v2185 = vrot.slane %v2183, 4
      %v2186 = vrot.slane %v2177, 6
      %v2187 = vsel %vm1694, %v2185, %v2186
      %v2188 = vrot.slane %v2184, 4
      %v2189 = vrot.slane %v2178, 6
      %v2190 = vsel %vm1694, %v2188, %v2189
      %2191 = vrot.lane.b32.xlu0 %v2183, 80
      %v2192 = vpop.permute.xlu0 %2191
      %2193 = vrot.lane.b32.xlu0 %v2184, 80
      %v2194 = vpop.permute.xlu0 %2193
      %2195 = vrot.lane.b32.xlu0 %v2187, 80
      %v2196 = vpop.permute.xlu0 %2195
      %2197 = vrot.lane.b32.xlu0 %v2190, 80
      %v2198 = vpop.permute.xlu0 %2197
      %v2199 = vrot.slane %v2192, 4
      %v2200 = vrot.slane %v2194, 4
      %v2201 = vrot.slane %v2196, 4
      %v2202 = vrot.slane %v2198, 4
      %v2203 = vsel %vm417, %v2199, %v2200
      %v2204 = vsel %vm2167, %v2192, %v2203
      %v2205 = vsel %vm417, %v2201, %v2202
      %v2206 = vsel %vm2167, %v2196, %v2205
      %2209 = vst [vmem:[#allocation4 + $0xa8] sm:$0xcc] %v2204
      %2210 = vst [vmem:[#allocation4 + $0xb8] sm:$0xff] %v2206
      %v2211 = vld [vmem:[#allocation3 + $0x4] sm:$0xff]
      %v2212 = vld [vmem:[#allocation3 + $0xc] sm:$0xf]
      %v2213 = vld [vmem:[#allocation3 + $0x24] sm:$0x33]
      %v2214 = vld [vmem:[#allocation3 + $0x2c] sm:$0x3]
      %2215 = vrot.lane.b32.xlu0 %v1769, 51
      %v2216 = vpop.permute.xlu0 %2215
      %v2217 = vrot.slane %v2216, 4
      %v2218 = vsel %vm1644, %v2217, %v2216
      %v2219 = vunpack.c.l.b16 %v2218
      %v2220 = vunpack.c.h.b16 %v2218
      %v2221 = vunpack.c.l.b16 0
      %v2222 = vunpack.c.h.b16 0
      %vm2223 = vcmp.ne.s32.totalorder %v2219, %v2221
      %vm2224 = vcmp.ne.s32.totalorder %v2220, %v2222
      %vm2225 = vmpackc.low %vm2224, %vm2223
      %v2226 = vunpack.c.l.b16 %v2217
      %v2227 = vunpack.c.h.b16 %v2217
      %v2228 = vunpack.c.l.b16 0
      %v2229 = vunpack.c.h.b16 0
      %vm2230 = vcmp.ne.s32.totalorder %v2226, %v2228
      %vm2231 = vcmp.ne.s32.totalorder %v2227, %v2229
      %vm2232 = vmpackc.low %vm2231, %vm2230
      %v2233 = vsel %vm2225, %v2211, 0
      %v2234 = vsel %vm2232, %v2212, 0
      %v2235 = vsel %vm2225, %v2213, 0
      %v2236 = vsel %vm2232, %v2214, 0
      %2241 = vrot.lane.b32.xlu0 %v2233, 77
      %v2242 = vpop.permute.xlu0 %2241
      %2243 = vrot.lane.b32.xlu0 %v2234, 77
      %v2244 = vpop.permute.xlu0 %2243
      %2245 = vrot.lane.b32.xlu0 %v2235, 77
      %v2246 = vpop.permute.xlu0 %2245
      %2247 = vrot.lane.b32.xlu0 %v2236, 77
      %v2248 = vpop.permute.xlu0 %2247
      %v2249 = vrot.slane %v2242, 4
      %v2250 = vrot.slane %v2244, 4
      %v2251 = vrot.slane %v2246, 4
      %v2252 = vrot.slane %v2248, 4
      %v2253 = vsel %vm417, %v2249, %v2250
      %v2254 = vsel %vm1607, %v2242, %v2253
      %v2255 = vsel %vm417, %v2251, %v2252
      %v2256 = vsel %vm1607, %v2246, %v2255
      %2259 = vst [vmem:[#allocation4 + $0xc0] sm:$0xff] %v2254
      %2260 = vst [vmem:[#allocation4 + $0xd0] sm:$0x33] %v2256
      %v2261 = vld [vmem:[#allocation3 + $0x14] sm:$0xff]
      %v2262 = vld [vmem:[#allocation3 + $0x1c] sm:$0xf]
      %v2263 = vld [vmem:[#allocation3 + $0x34] sm:$0x33]
      %v2264 = vld [vmem:[#allocation3 + $0x3c] sm:$0x3]
      %v2265 = vsel %vm2225, %v2261, 0
      %v2266 = vsel %vm2232, %v2262, 0
      %v2267 = vsel %vm2225, %v2263, 0
      %v2268 = vsel %vm2232, %v2264, 0
      %2273 = vrot.lane.b32.xlu0 %v2265, 77
      %v2274 = vpop.permute.xlu0 %2273
      %2275 = vrot.lane.b32.xlu0 %v2266, 77
      %v2276 = vpop.permute.xlu0 %2275
      %2277 = vrot.lane.b32.xlu0 %v2267, 77
      %v2278 = vpop.permute.xlu0 %2277
      %2279 = vrot.lane.b32.xlu0 %v2268, 77
      %v2280 = vpop.permute.xlu0 %2279
      %v2281 = vrot.slane %v2274, 4
      %v2282 = vrot.slane %v2276, 4
      %v2283 = vrot.slane %v2278, 4
      %v2284 = vrot.slane %v2280, 4
      %v2285 = vsel %vm417, %v2281, %v2282
      %v2286 = vsel %vm1607, %v2274, %v2285
      %v2287 = vsel %vm417, %v2283, %v2284
      %v2288 = vsel %vm1607, %v2278, %v2287
      %2291 = vst [vmem:[#allocation4 + $0xc8] sm:$0xff] %v2286
      %2292 = vst [vmem:[#allocation4 + $0xd8] sm:$0x33] %v2288
      %s2293 = scalar_lea.vmem %s3, 4
      %v2294 = vld [vmem:[%s2293] sm:$0x3]
      %v2295 = vld [vmem:[#allocation4] sm:$0xff]
      %v2296 = vld [vmem:[#allocation4 + $0x8] sm:$0xff]
      %v2297 = vld [vmem:[#allocation4 + $0x10] sm:$0xff]
      %v2298 = vld [vmem:[#allocation4 + $0x18] sm:$0xff]
      %v2299 = vld [vmem:[#allocation4 + $0x20] sm:$0xff]
      %v2300 = vld [vmem:[#allocation4 + $0x28] sm:$0xff]
      %v2301 = vld [vmem:[#allocation4 + $0x30] sm:$0xff]
      %v2302 = vld [vmem:[#allocation4 + $0x38] sm:$0xff]
      %v2303 = vld [vmem:[#allocation4 + $0x40] sm:$0xff]
      %v2304 = vld [vmem:[#allocation4 + $0x48] sm:$0xff]
      %v2305 = vld [vmem:[#allocation4 + $0x50] sm:$0xff]
      %v2306 = vld [vmem:[#allocation4 + $0x58] sm:$0xff]
      %v2307 = vld [vmem:[#allocation4 + $0x60] sm:$0xff]
      %v2308 = vld [vmem:[#allocation4 + $0x68] sm:$0xff]
      %v2309 = vld [vmem:[#allocation4 + $0x70] sm:$0xff]
      %v2310 = vld [vmem:[#allocation4 + $0x78] sm:$0xff]
      %v2311 = vld [vmem:[#allocation4 + $0x80] sm:$0xff]
      %v2312 = vld [vmem:[#allocation4 + $0x88] sm:$0xff]
      %v2313 = vld [vmem:[#allocation4 + $0x90] sm:$0xff]
      %v2314 = vld [vmem:[#allocation4 + $0x98] sm:$0xff]
      %v2315 = vld [vmem:[#allocation4 + $0xa0] sm:$0xff]
      %v2316 = vld [vmem:[#allocation4 + $0xa8] sm:$0xff]
      %v2317 = vld [vmem:[#allocation4 + $0xb0] sm:$0xff]
      %v2318 = vld [vmem:[#allocation4 + $0xb8] sm:$0xff]
      %v2319 = vld [vmem:[#allocation4 + $0xc0] sm:$0xff]
      %v2320 = vld [vmem:[#allocation4 + $0xc8] sm:$0xff]
      %v2321 = vld [vmem:[#allocation4 + $0xd0] sm:$0x33]
      %v2322 = vld [vmem:[#allocation4 + $0xd8] sm:$0x33]
      %v2351 = vunpack.c.l.b16 %v2295
      %v2352 = vunpack.c.h.b16 %v2295
      %v2353 = vunpack.c.l.b16 %v2296
      %v2354 = vunpack.c.h.b16 %v2296
      %v2355 = vunpack.c.l.b16 %v2297
      %v2356 = vunpack.c.h.b16 %v2297
      %v2357 = vunpack.c.l.b16 %v2298
      %v2358 = vunpack.c.h.b16 %v2298
      %v2359 = vunpack.c.l.b16 %v2299
      %v2360 = vunpack.c.h.b16 %v2299
      %v2361 = vunpack.c.l.b16 %v2300
      %v2362 = vunpack.c.h.b16 %v2300
      %v2363 = vunpack.c.l.b16 %v2301
      %v2364 = vunpack.c.h.b16 %v2301
      %v2365 = vunpack.c.l.b16 %v2302
      %v2366 = vunpack.c.h.b16 %v2302
      %v2367 = vunpack.c.l.b16 %v2303
      %v2368 = vunpack.c.h.b16 %v2303
      %v2369 = vunpack.c.l.b16 %v2304
      %v2370 = vunpack.c.h.b16 %v2304
      %v2371 = vunpack.c.l.b16 %v2305
      %v2372 = vunpack.c.h.b16 %v2305
      %v2373 = vunpack.c.l.b16 %v2306
      %v2374 = vunpack.c.h.b16 %v2306
      %v2375 = vunpack.c.l.b16 %v2307
      %v2376 = vunpack.c.h.b16 %v2307
      %v2377 = vunpack.c.l.b16 %v2308
      %v2378 = vunpack.c.h.b16 %v2308
      %v2379 = vunpack.c.l.b16 %v2309
      %v2380 = vunpack.c.h.b16 %v2309
      %v2381 = vunpack.c.l.b16 %v2310
      %v2382 = vunpack.c.h.b16 %v2310
      %v2383 = vunpack.c.l.b16 %v2311
      %v2384 = vunpack.c.h.b16 %v2311
      %v2385 = vunpack.c.l.b16 %v2312
      %v2386 = vunpack.c.h.b16 %v2312
      %v2387 = vunpack.c.l.b16 %v2313
      %v2388 = vunpack.c.h.b16 %v2313
      %v2389 = vunpack.c.l.b16 %v2314
      %v2390 = vunpack.c.h.b16 %v2314
      %v2391 = vunpack.c.l.b16 %v2315
      %v2392 = vunpack.c.h.b16 %v2315
      %v2393 = vunpack.c.l.b16 %v2316
      %v2394 = vunpack.c.h.b16 %v2316
      %v2395 = vunpack.c.l.b16 %v2317
      %v2396 = vunpack.c.h.b16 %v2317
      %v2397 = vunpack.c.l.b16 %v2318
      %v2398 = vunpack.c.h.b16 %v2318
      %v2399 = vunpack.c.l.b16 %v2319
      %v2400 = vunpack.c.h.b16 %v2319
      %v2401 = vunpack.c.l.b16 %v2320
      %v2402 = vunpack.c.h.b16 %v2320
      %v2403 = vunpack.c.l.b16 %v2321
      %v2404 = vunpack.c.h.b16 %v2321
      %v2405 = vunpack.c.l.b16 %v2322
      %v2406 = vunpack.c.h.b16 %v2322
      %v2407 = vpack.c.b16 %v2355, %v2351
      %v2408 = vpack.c.b16 %v2356, %v2352
      %v2409 = vpack.c.b16 %v2357, %v2353
      %v2410 = vpack.c.b16 %v2358, %v2354
      %v2411 = vpack.c.b16 %v2363, %v2359
      %v2412 = vpack.c.b16 %v2364, %v2360
      %v2413 = vpack.c.b16 %v2365, %v2361
      %v2414 = vpack.c.b16 %v2366, %v2362
      %v2415 = vpack.c.b16 %v2371, %v2367
      %v2416 = vpack.c.b16 %v2372, %v2368
      %v2417 = vpack.c.b16 %v2373, %v2369
      %v2418 = vpack.c.b16 %v2374, %v2370
      %v2419 = vpack.c.b16 %v2379, %v2375
      %v2420 = vpack.c.b16 %v2380, %v2376
      %v2421 = vpack.c.b16 %v2381, %v2377
      %v2422 = vpack.c.b16 %v2382, %v2378
      %v2423 = vpack.c.b16 %v2387, %v2383
      %v2424 = vpack.c.b16 %v2388, %v2384
      %v2425 = vpack.c.b16 %v2389, %v2385
      %v2426 = vpack.c.b16 %v2390, %v2386
      %v2427 = vpack.c.b16 %v2395, %v2391
      %v2428 = vpack.c.b16 %v2396, %v2392
      %v2429 = vpack.c.b16 %v2397, %v2393
      %v2430 = vpack.c.b16 %v2398, %v2394
      %v2431 = vpack.c.b16 %v2403, %v2399
      %v2432 = vpack.c.b16 %v2404, %v2400
      %v2433 = vpack.c.b16 %v2405, %v2401
      %v2434 = vpack.c.b16 %v2406, %v2402
      %vm2459 = vcmask 883712
      %v2461 = vsel %vm2459, %v2294, 0
      %vm2463 = vcmask 1045504
      %v2465 = vsel %vm2463, %v2431, 0
      %v2468 = vsel %vm2463, %v2432, 0
      %v2471 = vsel %vm2463, %v2433, 0
      %v2474 = vsel %vm2463, %v2434, 0
      %2476 = vmatpush.bf16.msra.mxu0 0
      %2477 = vmatpush.bf16.msra.mxu0 %v2465
      %2478 = vmatpush.bf16.msra.mxu0 %v2427
      %2479 = vmatpush.bf16.msra.mxu0 %v2423
      %2480 = vmatpush.bf16.msra.mxu0 %v2419
      %2481 = vmatpush.bf16.msra.mxu0 %v2415
      %2482 = vmatpush.bf16.msra.mxu0 %v2411
      %2483 = vmatpush.bf16.msra.mxu0 %v2407
      %2484 = vmatmul.bf16.gmra.mxu0 %v2461
      %v2485 = vpop.f32.mrf.mxu0
      %v2486 = vadd.f32 0.0, %v2485
      %v2487 = vpop.f32.mrf.mxu0
      %2488 = vdwg.mxu0
      %2489 = vmatpush.bf16.msra.mxu0 0
      %2490 = vmatpush.bf16.msra.mxu0 %v2468
      %2491 = vmatpush.bf16.msra.mxu0 %v2428
      %2492 = vmatpush.bf16.msra.mxu0 %v2424
      %2493 = vmatpush.bf16.msra.mxu0 %v2420
      %2494 = vmatpush.bf16.msra.mxu0 %v2416
      %2495 = vmatpush.bf16.msra.mxu0 %v2412
      %2496 = vmatpush.bf16.msra.mxu0 %v2408
      %2497 = vmatmul.bf16.gmra.mxu0 %v2461
      %v2498 = vpop.f32.mrf.mxu0
      %v2499 = vadd.f32 0.0, %v2498
      %v2500 = vpop.f32.mrf.mxu0
      %2501 = vdwg.mxu0
      %2502 = vmatpush.bf16.msra.mxu0 0
      %2503 = vmatpush.bf16.msra.mxu0 %v2471
      %2504 = vmatpush.bf16.msra.mxu0 %v2429
      %2505 = vmatpush.bf16.msra.mxu0 %v2425
      %2506 = vmatpush.bf16.msra.mxu0 %v2421
      %2507 = vmatpush.bf16.msra.mxu0 %v2417
      %2508 = vmatpush.bf16.msra.mxu0 %v2413
      %2509 = vmatpush.bf16.msra.mxu0 %v2409
      %2510 = vmatmul.bf16.gmra.mxu0 %v2461
      %v2511 = vpop.f32.mrf.mxu0
      %v2512 = vadd.f32 0.0, %v2511
      %v2513 = vpop.f32.mrf.mxu0
      %2514 = vdwg.mxu0
      %2515 = vmatpush.bf16.msra.mxu0 0
      %2516 = vmatpush.bf16.msra.mxu0 %v2474
      %2517 = vmatpush.bf16.msra.mxu0 %v2430
      %2518 = vmatpush.bf16.msra.mxu0 %v2426
      %2519 = vmatpush.bf16.msra.mxu0 %v2422
      %2520 = vmatpush.bf16.msra.mxu0 %v2418
      %2521 = vmatpush.bf16.msra.mxu0 %v2414
      %2522 = vmatpush.bf16.msra.mxu0 %v2410
      %2523 = vmatmul.bf16.gmra.mxu0 %v2461
      %v2524 = vpop.f32.mrf.mxu0
      %v2525 = vadd.f32 0.0, %v2524
      %v2526 = vpop.f32.mrf.mxu0
      %2527 = vdwg.mxu0
      %v2532 = vrot.slane %v2486, 4
      %v2533 = vrot.slane %v2499, 4
      %v2534 = vrot.slane %v2512, 4
      %v2535 = vrot.slane %v2525, 4
      %2540 = vst [vmem:[#allocation2 + $0x20] sm:$0xf0] %v2532
      %2541 = vst [vmem:[#allocation2 + $0x28] sm:$0xf0] %v2533
      %2542 = vst [vmem:[#allocation2 + $0x30] sm:$0xf0] %v2534
      %2543 = vst [vmem:[#allocation2 + $0x38] sm:$0xf0] %v2535
      %v2544 = vld [vmem:[#allocation2] sm:$0xff]
      %v2545 = vld [vmem:[#allocation2 + $0x8] sm:$0xff]
      %v2546 = vld [vmem:[#allocation2 + $0x10] sm:$0xff]
      %v2547 = vld [vmem:[#allocation2 + $0x18] sm:$0xff]
      %v2548 = vld [vmem:[#allocation2 + $0x20] sm:$0xff]
      %v2549 = vld [vmem:[#allocation2 + $0x28] sm:$0xff]
      %v2550 = vld [vmem:[#allocation2 + $0x30] sm:$0xff]
      %v2551 = vld [vmem:[#allocation2 + $0x38] sm:$0xff]
      %v2552 = vld [vmem:[%s4] sm:$0xff]
      %v2553 = vld [vmem:[%s4 + $0x8] sm:$0xff]
      %2555 = vset.pattern.permute.xlu0 0
      %2556 = vperm.xlu0 %2555, %v2552
      %v2557 = vpop.permute.xlu0 %2556
      %2560 = vset.pattern.permute.xlu0 0
      %2561 = vperm.xlu0 %2560, %v2553
      %v2562 = vpop.permute.xlu0 %2561
      %v2564 = vmul.f32 %v2544, %v2557
      %v2565 = vmul.f32 %v2545, %v2557
      %v2566 = vmul.f32 %v2546, %v2557
      %v2567 = vmul.f32 %v2547, %v2557
      %v2568 = vmul.f32 %v2548, %v2562
      %v2569 = vmul.f32 %v2549, %v2562
      %v2570 = vmul.f32 %v2550, %v2562
      %v2571 = vmul.f32 %v2551, %v2562
      %v2572 = vld [vmem:[%s5] sm:$0xff]
      %v2573 = vld [vmem:[%s5 + $0x8] sm:$0xff]
      %2575 = vset.pattern.permute.xlu0 0
      %2576 = vperm.xlu0 %2575, %v2572
      %v2577 = vpop.permute.xlu0 %2576
      %2580 = vset.pattern.permute.xlu0 0
      %2581 = vperm.xlu0 %2580, %v2573
      %v2582 = vpop.permute.xlu0 %2581
      %v2584 = vadd.f32 %v2564, %v2577
      %v2585 = vadd.f32 %v2565, %v2577
      %v2586 = vadd.f32 %v2566, %v2577
      %v2587 = vadd.f32 %v2567, %v2577
      %v2588 = vadd.f32 %v2568, %v2582
      %v2589 = vadd.f32 %v2569, %v2582
      %v2590 = vadd.f32 %v2570, %v2582
      %v2591 = vadd.f32 %v2571, %v2582
      %v2592 = vmax.f32 %v2584, 0.0
      %v2593 = vmax.f32 %v2585, 0.0
      %v2594 = vmax.f32 %v2586, 0.0
      %v2595 = vmax.f32 %v2587, 0.0
      %v2596 = vmax.f32 %v2588, 0.0
      %v2597 = vmax.f32 %v2589, 0.0
      %v2598 = vmax.f32 %v2590, 0.0
      %v2599 = vmax.f32 %v2591, 0.0
      %v2600 = vld [vmem:[%s6] sm:$0xf]
      %v2601 = vpack.c.bf16 %v2596, %v2592
      %v2602 = vpack.c.bf16 %v2597, %v2593
      %v2603 = vpack.c.bf16 %v2598, %v2594
      %v2604 = vpack.c.bf16 %v2599, %v2595
      %vm2605 = vcmask 130048
      %v2607 = vsel %vm2605, %v2600, 0
      %2609 = vmatpush.bf16.msra.mxu0 0
      %2610 = vmatpush.bf16.msra.mxu0 0
      %2611 = vmatpush.bf16.msra.mxu0 0
      %2612 = vmatpush.bf16.msra.mxu0 0
      %2613 = vmatpush.bf16.msra.mxu0 0
      %2614 = vmatpush.bf16.msra.mxu0 0
      %2615 = vmatpush.bf16.msra.mxu0 0
      %2616 = vmatpush.bf16.msra.mxu0 %v2601
      %2617 = vmatmul.bf16.gmra.mxu0 %v2607
      %v2618 = vpop.f32.mrf.mxu0
      %v2619 = vadd.f32 0.0, %v2618
      %v2620 = vpop.f32.mrf.mxu0
      %2621 = vdwg.mxu0
      %2622 = vmatpush.bf16.msra.mxu0 0
      %2623 = vmatpush.bf16.msra.mxu0 0
      %2624 = vmatpush.bf16.msra.mxu0 0
      %2625 = vmatpush.bf16.msra.mxu0 0
      %2626 = vmatpush.bf16.msra.mxu0 0
      %2627 = vmatpush.bf16.msra.mxu0 0
      %2628 = vmatpush.bf16.msra.mxu0 0
      %2629 = vmatpush.bf16.msra.mxu0 %v2602
      %2630 = vmatmul.bf16.gmra.mxu0 %v2607
      %v2631 = vpop.f32.mrf.mxu0
      %v2632 = vadd.f32 0.0, %v2631
      %v2633 = vpop.f32.mrf.mxu0
      %2634 = vdwg.mxu0
      %2635 = vmatpush.bf16.msra.mxu0 0
      %2636 = vmatpush.bf16.msra.mxu0 0
      %2637 = vmatpush.bf16.msra.mxu0 0
      %2638 = vmatpush.bf16.msra.mxu0 0
      %2639 = vmatpush.bf16.msra.mxu0 0
      %2640 = vmatpush.bf16.msra.mxu0 0
      %2641 = vmatpush.bf16.msra.mxu0 0
      %2642 = vmatpush.bf16.msra.mxu0 %v2603
      %2643 = vmatmul.bf16.gmra.mxu0 %v2607
      %v2644 = vpop.f32.mrf.mxu0
      %v2645 = vadd.f32 0.0, %v2644
      %v2646 = vpop.f32.mrf.mxu0
      %2647 = vdwg.mxu0
      %2648 = vmatpush.bf16.msra.mxu0 0
      %2649 = vmatpush.bf16.msra.mxu0 0
      %2650 = vmatpush.bf16.msra.mxu0 0
      %2651 = vmatpush.bf16.msra.mxu0 0
      %2652 = vmatpush.bf16.msra.mxu0 0
      %2653 = vmatpush.bf16.msra.mxu0 0
      %2654 = vmatpush.bf16.msra.mxu0 0
      %2655 = vmatpush.bf16.msra.mxu0 %v2604
      %2656 = vmatmul.bf16.gmra.mxu0 %v2607
      %v2657 = vpop.f32.mrf.mxu0
      %v2658 = vadd.f32 0.0, %v2657
      %v2659 = vpop.f32.mrf.mxu0
      %2660 = vdwg.mxu0
      %v2661 = vmax.f32 %v2619, 0.0
      %v2662 = vmax.f32 %v2632, 0.0
      %v2663 = vmax.f32 %v2645, 0.0
      %v2664 = vmax.f32 %v2658, 0.0
      %2665 = vst [vmem:[%s285] sm:$0xff] %v2661
      %2666 = vst [vmem:[%s285 + $0x8] sm:$0xff] %v2662
      %s2667 = scalar_lea.vmem %s285, 16
      %2668 = vst [vmem:[%s2667] sm:$0xff] %v2663
      %2669 = vst [vmem:[%s2667 + $0x8] sm:$0xff] %v2664
      %s2670 = smul.u32 2, %s18
      %p2671 = scmp.lt.s32.totalorder %s2670, 7
      %s2672 = scalar_select %p2671, %s2670, 7
      %s2673 = smul.addr %s2672, 2
      %s2674 = smul.addr %s2673, 8
      %s2675 = scalar_lea.vmem %s7, %s2674
      // Predicated region
      $region49: #{dense_ddcb_forward.1} parent=47 // pred_check
        %p2676 = pneg %p188
      $region50: #{dense_ddcb_forward.1} parent=47 // pred_check_branch
        %2678 = sbr.rel (%p2676) target = $region52
      $region51: #{dense_ddcb_forward.1} parent=47 // pred_region
        %s2679 = smul.u32 2, %s18
      $region52: #{dense_ddcb_forward.1} parent=47 // pred_fallthru
        _
    $region48: #{dense_ddcb_forward.1} parent=5 // pred_fallthru
      _
    %p2680 = scmp.le.s32.totalorder 2, %s13
    // Predicated region
    $region53: #{dense_ddcb_forward.1} parent=5 // pred_check
      %p2681 = pneg %p2680
    $region54: #{dense_ddcb_forward.1} parent=5 // pred_check_branch
      %2683 = sbr.rel (%p2681) target = $region56
    $region55: #{dense_ddcb_forward.1} parent=5 // pred_region
      %s2684 = ssub.s32 %s13, 2
      // Predicated region
      $region57: #{dense_ddcb_forward.1} parent=55 // pred_check
        %p2685 = pneg %p194
      $region58: #{dense_ddcb_forward.1} parent=55 // pred_check_branch
        %2687 = sbr.rel (%p2685) target = $region60
      $region59: #{dense_ddcb_forward.1} parent=55 // pred_region
        %s2688 = smul.u32 2, %s19
        %p2689 = scmp.lt.s32.totalorder %s2688, 7
        %s2690 = scalar_select %p2689, %s2688, 7
        %s2691 = smul.addr %s2690, 2
        %s2692 = smul.addr %s2691, 8
        %s2693 = scalar_lea.vmem %s7, %s2692
      $region60: #{dense_ddcb_forward.1} parent=55 // pred_fallthru
        _
    $region56: #{dense_ddcb_forward.1} parent=5 // pred_fallthru
      _
  $region6: #{dense_ddcb_forward.1} parent=0 // loop_footer
    %s17 = sadd.s32 1, %s13
  $region7: #{dense_ddcb_forward.1} parent=0 // loop_footer_branch
    %12 = sbr.rel target = $region3
  $region8: #{dense_ddcb_forward.1} parent=0 // loop_exit
    _

</llo_original>
